<compile_context>
chip_gen: v5e
topology: v5e:2x2
jax: 0.10.0
libtpu: 0.0.40
codegen_flags: <defaults>
</compile_context>

<pallas_src>
import functools
import math

import jax
import jax.numpy as jnp
from jax import lax
from jax.experimental import pallas as pl
from jax.experimental.pallas import tpu as pltpu

NHEAD = 4


# ----------------------------- in-kernel helpers -----------------------------
def _layer_norm(x, g, b, eps=1e-5):
    mu = jnp.mean(x, axis=-1, keepdims=True)
    var = jnp.mean((x - mu) ** 2, axis=-1, keepdims=True)
    return (x - mu) * jax.lax.rsqrt(var + eps) * g + b


def _gelu_tanh(x):
    # TODO(synk): nn.GELU default is the erf form; the tanh approximation keeps
    # the op on the EUP and avoids relying on an erf lowering (small systematic
    # numeric deviation from the PyTorch reference).
    c = math.sqrt(2.0 / math.pi)
    return 0.5 * x * (1.0 + jnp.tanh(c * (x + 0.044715 * x * x * x)))


# ------------------------ fused decoder-stack kernel -------------------------
def _fused_stack_kernel(x_ref, qpos_ref, bil_ref, src_ref,
                        wqk_ref, bqk_ref, wv_ref, bv_ref, wo_ref, bo_ref,
                        g1_ref, be1_ref,
                        wcv_ref, bcv_ref, wco_ref, bco_ref, g2_ref, be2_ref,
                        w1_ref, bf1_ref, w2_ref, bf2_ref, g3_ref, be3_ref,
                        o_ref, *, num_layers, nhead):
    f32 = jnp.float32
    bf16 = jnp.bfloat16
    n, c = x_ref.shape
    hd = c // nhead

    # residual stream stays on-chip for the whole stack (one batch per step)
    x0 = x_ref[...].astype(f32)                 # (n, c)
    qp = qpos_ref[...].astype(f32)              # (n, c)
    bil = bil_ref[...]                          # (n, S)  f32 (sampling parity)
    src = src_ref[...]                          # (S, c)  f32

    w_qk, b_qk = wqk_ref[...], bqk_ref[...]     # (c, 2c) bf16 / (1, 2c) f32
    w_v, b_v = wv_ref[...], bv_ref[...]         # (c, c)  bf16 / (1, c)  f32
    w_o, b_o = wo_ref[...], bo_ref[...]         # (c, c)  bf16 / (1, c)  f32
    g1, be1 = g1_ref[...], be1_ref[...]
    wcv, bcv = wcv_ref[...], bcv_ref[...]       # f32 (hoisted, one-off)
    wco, bco = wco_ref[...], bco_ref[...]       # f32
    g2, be2 = g2_ref[...], be2_ref[...]
    w1, bf1 = w1_ref[...], bf1_ref[...]         # (c, dff) bf16 / (1, dff) f32
    w2, bf2 = w2_ref[...], bf2_ref[...]         # (dff, c) bf16 / (1, c)  f32
    g3, be3 = g3_ref[...], be3_ref[...]

    # ---- back-tracing cross attention, hoisted out of the layer loop: it
    # depends only on src / bil and the (identical, deepcopy'd) layer params,
    # never on x -- compute once, reuse its residual every layer.
    # TODO(synk): at production BEV/feature sizes replace the dense (n, S)
    # bilinear-weight matmul with a 4-tap gather (scalar-prefetched indices).
    val = jnp.dot(src, wcv, preferred_element_type=f32) + bcv     # (S, c)
    samp = jnp.dot(bil, val, preferred_element_type=f32)          # (n, c)
    cross = jnp.dot(samp, wco, preferred_element_type=f32) + bco  # (n, c)

    dn_qkt = (((1,), (1,)), ((), ()))   # (n,hd) x (n,hd) -> q @ k^T : (n, n)

    def layer(_, x):
        # ---- multi-head self-attention (q = k = x + pos, v = x) ----
        # lane-dense projections; 1/sqrt(hd) already folded into w_qk / b_qk
        xq = (x + qp).astype(bf16)
        qk = jnp.dot(xq, w_qk, preferred_element_type=f32) + b_qk   # (n, 2c)
        v = jnp.dot(x.astype(bf16), w_v, preferred_element_type=f32) + b_v
        q_all = qk[:, :c]
        k_all = qk[:, c:]

        # head split is unavoidable for the score matmul; static lane slices
        ctx_parts = []
        for h in range(nhead):
            sl = slice(h * hd, (h + 1) * hd)
            qh = q_all[:, sl].astype(bf16)                          # (n, hd)
            kh = k_all[:, sl].astype(bf16)
            vh = v[:, sl].astype(bf16)
            s = lax.dot_general(qh, kh, dn_qkt,
                                preferred_element_type=f32)         # (n, n)
            s = s - jnp.max(s, axis=-1, keepdims=True)
            e = jnp.exp(s)                                          # f32 (v5e-safe)
            denom = jnp.sum(e, axis=-1, keepdims=True)              # (n, 1)
            # flash-style late normalization: AV on unnormalized e, then scale
            ctx_h = jnp.dot(e.astype(bf16), vh,
                            preferred_element_type=f32)             # (n, hd)
            ctx_parts.append(ctx_h * pl.reciprocal(denom, approx=True))
        ctx = jnp.concatenate(ctx_parts, axis=-1)                   # (n, c)
        att = jnp.dot(ctx.astype(bf16), w_o,
                      preferred_element_type=f32) + b_o             # (n, c)
        x = _layer_norm(x + att, g1, be1)

        # ---- back-tracing cross attention residual (precomputed above) ----
        x = _layer_norm(x + cross, g2, be2)

        # ---- FFN (Mlp: fc1 -> GELU -> fc2), dropout = identity (eval) ----
        hid = jnp.dot(x.astype(bf16), w1, preferred_element_type=f32) + bf1
        hid = _gelu_tanh(hid)
        ff = jnp.dot(hid.astype(bf16), w2, preferred_element_type=f32) + bf2
        return _layer_norm(x + ff, g3, be3)

    # fori_loop keeps per-layer register pressure flat; fully unroll only for
    # small static num_layers.
    x = lax.fori_loop(0, num_layers, layer, x0, unroll=(num_layers <= 4))
    o_ref[...] = x.astype(o_ref.dtype)


def decoder_stack_apply(tgt, query_pos, bil_w, src, params, num_layers):
    """Run ALL decoder layers in ONE pallas_call; grid is parallel over batch."""
    bs, n, c = tgt.shape
    S = src.shape[1]
    assert c % NHEAD == 0
    hd = c // NHEAD
    bf16 = jnp.bfloat16
    f32 = jnp.float32
    scale = 1.0 / math.sqrt(hd)

    # fold the attention scale into the Q projection (weights AND bias) and
    # pack Q/K into one lane-dense (c, 2c) matmul operand (wrapper-side layout
    # plumbing -- free).
    w_qk = jnp.concatenate([params["wq"] * scale, params["wk"]],
                           axis=1).astype(bf16)                    # (c, 2c)
    b_qk = jnp.concatenate([params["bq"] * scale, params["bk"]],
                           axis=1).astype(f32)                     # (1, 2c)

    shared = (
        w_qk, b_qk,
        params["wv"].astype(bf16), params["bv"],
        params["wo"].astype(bf16), params["bo"],
        params["g1"], params["be1"],
        params["wcv"], params["bcv"],       # f32: hoisted cross branch, parity
        params["wco"], params["bco"],
        params["g2"], params["be2"],
        params["w1"].astype(bf16), params["bf1"],
        params["w2"].astype(bf16), params["bf2"],
        params["g3"], params["be3"],
    )

    def batch_spec(arr):
        nd = arr.ndim
        return pl.BlockSpec((None,) + tuple(arr.shape[1:]),
                            lambda b, _nd=nd: (b,) + (0,) * (_nd - 1))

    def shared_spec(arr):
        nd = arr.ndim
        return pl.BlockSpec(tuple(arr.shape), lambda b, _nd=nd: (0,) * _nd)

    in_specs = ([batch_spec(tgt), batch_spec(query_pos), batch_spec(bil_w),
                 batch_spec(src)]
                + [shared_spec(a) for a in shared])

    out = pl.pallas_call(
        functools.partial(_fused_stack_kernel, num_layers=num_layers,
                          nhead=NHEAD),
        out_shape=jax.ShapeDtypeStruct((bs, n, c), tgt.dtype),
        grid=(bs,),
        in_specs=in_specs,
        out_specs=pl.BlockSpec((None, n, c), lambda b: (b, 0, 0)),
        compiler_params=pltpu.CompilerParams(
            # batch axis parallel -> uses both TensorCores on v7x; serial (and
            # near-free) on v5e/v6e.
            dimension_semantics=("parallel",),
            # headroom below v7x's 64 MiB VMEM while pipelining batches.
            vmem_limit_bytes=48 * 1024 * 1024),
    )(tgt, query_pos, bil_w.astype(f32), src.astype(f32), *shared)
    return out


# ------------------------------- glue (JAX) ---------------------------------
def get_bev_reference_points(polar_bev_shape, bev_valid_ratios):
    # plain jnp: trace-time-cheap constant, not worth a kernel launch
    H, W = polar_bev_shape
    ref_y, ref_x = jnp.meshgrid(
        jnp.linspace(0.5, H - 0.5, H, dtype=jnp.float32),
        jnp.linspace(0.5, W - 0.5, W, dtype=jnp.float32),
        indexing="ij")
    ref_y = ref_y.reshape(-1)[None] / (bev_valid_ratios[:, None, 0, 1] * H)
    ref_x = ref_x.reshape(-1)[None] / (bev_valid_ratios[:, None, 0, 0] * W)
    ref = jnp.stack((ref_x, ref_y), -1)
    return ref[:, :, None] * bev_valid_ratios[:, None]


def build_bilinear_weights(loc, H, W):
    """Dense bilinear-interpolation weights over an HxW level.  loc: (bs,n,2)."""
    px = loc[..., 0] * W - 0.5
    py = loc[..., 1] * H - 0.5
    cols = jnp.arange(W, dtype=jnp.float32)
    rows = jnp.arange(H, dtype=jnp.float32)
    wx = jnp.maximum(0.0, 1.0 - jnp.abs(px[..., None] - cols))   # (bs, n, W)
    wy = jnp.maximum(0.0, 1.0 - jnp.abs(py[..., None] - rows))   # (bs, n, H)
    bil = jnp.einsum("bqh,bqw->bqhw", wy, wx)
    return bil.reshape(loc.shape[0], loc.shape[1], H * W)


def init_params(key, c, dff):
    ks = jax.random.split(key, 8)

    def w(k, shape):
        return 0.02 * jax.random.normal(k, shape, jnp.float32)

    zc = jnp.zeros((1, c), jnp.float32)
    oc = jnp.ones((1, c), jnp.float32)
    return {
        "wq": w(ks[0], (c, c)), "wk": w(ks[1], (c, c)),
        "wv": w(ks[2], (c, c)), "wo": w(ks[3], (c, c)),
        "bq": zc, "bk": zc, "bv": zc, "bo": zc, "g1": oc, "be1": zc,
        "wcv": w(ks[4], (c, c)), "bcv": zc,
        "wco": w(ks[5], (c, c)), "bco": zc, "g2": oc, "be2": zc,
        "w1": w(ks[6], (c, dff)), "bf1": jnp.zeros((1, dff), jnp.float32),
        "w2": w(ks[7], (dff, c)), "bf2": zc, "g3": oc, "be3": zc,
    }
    # NOTE: bbox_embed (Mlp d_model->d_model->2) is built in __init__ but is
    # never used in forward (class_embed is None), so it is omitted here.


def back_tracing_decoder_forward(tgt, focus_points, src, src_spatial_shapes,
                                 src_level_start_index, src_valid_ratios,
                                 params, polar_bev_shape, num_layers,
                                 query_pos=None):
    del src_level_start_index  # only needed by multi-level deformable attention
    bs, n, c = tgt.shape
    assert focus_points.shape[-1] == 2
    if query_pos is None:
        query_pos = jnp.zeros_like(tgt)

    # polar-BEV reference grid (consumed by the real decoder layer's deformable
    # self-attention; the stand-in layer does not need it -> XLA will DCE it).
    bev_valid_ratios = jnp.ones((1, 1, 2), jnp.float32)
    _bev_ref = get_bev_reference_points(polar_bev_shape, bev_valid_ratios)  # noqa: F841
    # TODO(synk): feed _bev_ref / bev_spatial_shapes to the real Ego3RT layer.

    # focus_points_input = focus_points * src_valid_ratios[:, None]
    focus_points_input = focus_points[:, :, None, :] * src_valid_ratios[:, None]

    # src_spatial_shapes is a static python tuple -> no device->host sync here.
    H0, W0 = src_spatial_shapes[0]
    bil_w = build_bilinear_weights(focus_points_input[:, :, 0, :],
                                   int(H0), int(W0))

    # All num_layers decoder layers run inside a single fused Pallas call
    # (_get_clones == deepcopy -> identical per-layer params).
    return decoder_stack_apply(tgt, query_pos, bil_w, src, params, num_layers)


# ---------------------------------- main -------------------------------------
if __name__ == "__main__":
    key = jax.random.PRNGKey(0)
    k1, k2, k3, k4, k5 = jax.random.split(key, 5)

    bs, c, num_layers = 2, 32, 2
    polar_bev_shape = (8, 8)
    n = polar_bev_shape[0] * polar_bev_shape[1]   # polar-BEV ray queries
    H, W = 8, 8                                   # single image-feature level
    S = H * W
    dff = 64

    tgt = jax.random.normal(k1, (bs, n, c), jnp.float32)
    query_pos = 0.1 * jax.random.normal(k2, (bs, n, c), jnp.float32)
    src = jax.random.normal(k3, (bs, S, c), jnp.float32)
    focus_points = jax.random.uniform(k4, (bs, n, 2), jnp.float32)
    src_spatial_shapes = ((H, W),)                # static python ints
    src_level_start_index = jnp.array([0], jnp.int32)
    src_valid_ratios = jnp.full((bs, 1, 2), 0.95, jnp.float32)
    params = init_params(k5, c, dff)

    fwd = jax.jit(back_tracing_decoder_forward,
                  static_argnames=("src_spatial_shapes", "polar_bev_shape",
                                   "num_layers"))
    out = fwd(tgt, focus_points, src,
              src_spatial_shapes=src_spatial_shapes,
              src_level_start_index=src_level_start_index,
              src_valid_ratios=src_valid_ratios,
              params=params,
              polar_bev_shape=polar_bev_shape,
              num_layers=num_layers,
              query_pos=query_pos)
    out = jax.block_until_ready(out)
    assert out.shape == (bs, n, c) and out.dtype == jnp.float32

    print("KERNEL_OK")
</pallas_src>

<mosaic_0001>
module attributes {stable_mosaic.version = 11 : i64} {
  func.func @_fused_stack_kernel(%arg0: i32, %arg1: memref<1x64x32xf32, #tpu.memory_space<vmem>>, %arg2: memref<1x64x32xf32, #tpu.memory_space<vmem>>, %arg3: memref<1x64x64xf32, #tpu.memory_space<vmem>>, %arg4: memref<1x64x32xf32, #tpu.memory_space<vmem>>, %arg5: memref<32x64xbf16, #tpu.memory_space<vmem>>, %arg6: memref<1x64xf32, #tpu.memory_space<vmem>>, %arg7: memref<32x32xbf16, #tpu.memory_space<vmem>>, %arg8: memref<1x32xf32, #tpu.memory_space<vmem>>, %arg9: memref<32x32xbf16, #tpu.memory_space<vmem>>, %arg10: memref<1x32xf32, #tpu.memory_space<vmem>>, %arg11: memref<1x32xf32, #tpu.memory_space<vmem>>, %arg12: memref<1x32xf32, #tpu.memory_space<vmem>>, %arg13: memref<32x32xf32, #tpu.memory_space<vmem>>, %arg14: memref<1x32xf32, #tpu.memory_space<vmem>>, %arg15: memref<32x32xf32, #tpu.memory_space<vmem>>, %arg16: memref<1x32xf32, #tpu.memory_space<vmem>>, %arg17: memref<1x32xf32, #tpu.memory_space<vmem>>, %arg18: memref<1x32xf32, #tpu.memory_space<vmem>>, %arg19: memref<32x64xbf16, #tpu.memory_space<vmem>>, %arg20: memref<1x64xf32, #tpu.memory_space<vmem>>, %arg21: memref<64x32xbf16, #tpu.memory_space<vmem>>, %arg22: memref<1x32xf32, #tpu.memory_space<vmem>>, %arg23: memref<1x32xf32, #tpu.memory_space<vmem>>, %arg24: memref<1x32xf32, #tpu.memory_space<vmem>>, %arg25: memref<1x64x32xf32, #tpu.memory_space<vmem>>) attributes {dimension_semantics = [#tpu.dimension_semantics<parallel>], iteration_bounds = array<i64: 2>, scalar_prefetch = 0 : i64, scratch_operands = 0 : i64, tpu.core_type = #tpu.core_type<tc>, window_params = [{transform_indices = @transform_0, window_bounds = array<i64: 1, 64, 32>}, {transform_indices = @transform_1, window_bounds = array<i64: 1, 64, 32>}, {transform_indices = @transform_2, window_bounds = array<i64: 1, 64, 64>}, {transform_indices = @transform_3, window_bounds = array<i64: 1, 64, 32>}, {pipeline_mode = #tpu.pipeline_mode<synchronous>, transform_indices = @transform_4, window_bounds = array<i64: 32, 64>}, {pipeline_mode = #tpu.pipeline_mode<synchronous>, transform_indices = @transform_5, window_bounds = array<i64: 1, 64>}, {pipeline_mode = #tpu.pipeline_mode<synchronous>, transform_indices = @transform_6, window_bounds = array<i64: 32, 32>}, {pipeline_mode = #tpu.pipeline_mode<synchronous>, transform_indices = @transform_7, window_bounds = array<i64: 1, 32>}, {pipeline_mode = #tpu.pipeline_mode<synchronous>, transform_indices = @transform_8, window_bounds = array<i64: 32, 32>}, {pipeline_mode = #tpu.pipeline_mode<synchronous>, transform_indices = @transform_9, window_bounds = array<i64: 1, 32>}, {pipeline_mode = #tpu.pipeline_mode<synchronous>, transform_indices = @transform_10, window_bounds = array<i64: 1, 32>}, {pipeline_mode = #tpu.pipeline_mode<synchronous>, transform_indices = @transform_11, window_bounds = array<i64: 1, 32>}, {pipeline_mode = #tpu.pipeline_mode<synchronous>, transform_indices = @transform_12, window_bounds = array<i64: 32, 32>}, {pipeline_mode = #tpu.pipeline_mode<synchronous>, transform_indices = @transform_13, window_bounds = array<i64: 1, 32>}, {pipeline_mode = #tpu.pipeline_mode<synchronous>, transform_indices = @transform_14, window_bounds = array<i64: 32, 32>}, {pipeline_mode = #tpu.pipeline_mode<synchronous>, transform_indices = @transform_15, window_bounds = array<i64: 1, 32>}, {pipeline_mode = #tpu.pipeline_mode<synchronous>, transform_indices = @transform_16, window_bounds = array<i64: 1, 32>}, {pipeline_mode = #tpu.pipeline_mode<synchronous>, transform_indices = @transform_17, window_bounds = array<i64: 1, 32>}, {pipeline_mode = #tpu.pipeline_mode<synchronous>, transform_indices = @transform_18, window_bounds = array<i64: 32, 64>}, {pipeline_mode = #tpu.pipeline_mode<synchronous>, transform_indices = @transform_19, window_bounds = array<i64: 1, 64>}, {pipeline_mode = #tpu.pipeline_mode<synchronous>, transform_indices = @transform_20, window_bounds = array<i64: 64, 32>}, {pipeline_mode = #tpu.pipeline_mode<synchronous>, transform_indices = @transform_21, window_bounds = array<i64: 1, 32>}, {pipeline_mode = #tpu.pipeline_mode<synchronous>, transform_indices = @transform_22, window_bounds = array<i64: 1, 32>}, {pipeline_mode = #tpu.pipeline_mode<synchronous>, transform_indices = @transform_23, window_bounds = array<i64: 1, 32>}, {transform_indices = @transform_24, window_bounds = array<i64: 1, 64, 32>}]} {
    %c0 = arith.constant 0 : index
    %c0_0 = arith.constant 0 : index
    %c0_1 = arith.constant 0 : index
    %0 = vector.load %arg1[%c0, %c0_0, %c0_1] : memref<1x64x32xf32, #tpu.memory_space<vmem>>, vector<1x64x32xf32>
    %1 = vector.shape_cast %0 : vector<1x64x32xf32> to vector<64x32xf32>
    %c0_2 = arith.constant 0 : index
    %c0_3 = arith.constant 0 : index
    %c0_4 = arith.constant 0 : index
    %2 = vector.load %arg2[%c0_2, %c0_3, %c0_4] : memref<1x64x32xf32, #tpu.memory_space<vmem>>, vector<1x64x32xf32>
    %3 = vector.shape_cast %2 : vector<1x64x32xf32> to vector<64x32xf32>
    %c0_5 = arith.constant 0 : index
    %c0_6 = arith.constant 0 : index
    %c0_7 = arith.constant 0 : index
    %4 = vector.load %arg3[%c0_5, %c0_6, %c0_7] : memref<1x64x64xf32, #tpu.memory_space<vmem>>, vector<1x64x64xf32>
    %5 = vector.shape_cast %4 : vector<1x64x64xf32> to vector<64x64xf32>
    %c0_8 = arith.constant 0 : index
    %c0_9 = arith.constant 0 : index
    %c0_10 = arith.constant 0 : index
    %6 = vector.load %arg4[%c0_8, %c0_9, %c0_10] : memref<1x64x32xf32, #tpu.memory_space<vmem>>, vector<1x64x32xf32>
    %7 = vector.shape_cast %6 : vector<1x64x32xf32> to vector<64x32xf32>
    %c0_11 = arith.constant 0 : index
    %c0_12 = arith.constant 0 : index
    %8 = vector.load %arg5[%c0_11, %c0_12] : memref<32x64xbf16, #tpu.memory_space<vmem>>, vector<32x64xbf16>
    %c0_13 = arith.constant 0 : index
    %c0_14 = arith.constant 0 : index
    %9 = vector.load %arg6[%c0_13, %c0_14] : memref<1x64xf32, #tpu.memory_space<vmem>>, vector<1x64xf32>
    %c0_15 = arith.constant 0 : index
    %c0_16 = arith.constant 0 : index
    %10 = vector.load %arg7[%c0_15, %c0_16] : memref<32x32xbf16, #tpu.memory_space<vmem>>, vector<32x32xbf16>
    %c0_17 = arith.constant 0 : index
    %c0_18 = arith.constant 0 : index
    %11 = vector.load %arg8[%c0_17, %c0_18] : memref<1x32xf32, #tpu.memory_space<vmem>>, vector<1x32xf32>
    %c0_19 = arith.constant 0 : index
    %c0_20 = arith.constant 0 : index
    %12 = vector.load %arg9[%c0_19, %c0_20] : memref<32x32xbf16, #tpu.memory_space<vmem>>, vector<32x32xbf16>
    %c0_21 = arith.constant 0 : index
    %c0_22 = arith.constant 0 : index
    %13 = vector.load %arg10[%c0_21, %c0_22] : memref<1x32xf32, #tpu.memory_space<vmem>>, vector<1x32xf32>
    %c0_23 = arith.constant 0 : index
    %c0_24 = arith.constant 0 : index
    %14 = vector.load %arg11[%c0_23, %c0_24] : memref<1x32xf32, #tpu.memory_space<vmem>>, vector<1x32xf32>
    %c0_25 = arith.constant 0 : index
    %c0_26 = arith.constant 0 : index
    %15 = vector.load %arg12[%c0_25, %c0_26] : memref<1x32xf32, #tpu.memory_space<vmem>>, vector<1x32xf32>
    %c0_27 = arith.constant 0 : index
    %c0_28 = arith.constant 0 : index
    %16 = vector.load %arg13[%c0_27, %c0_28] : memref<32x32xf32, #tpu.memory_space<vmem>>, vector<32x32xf32>
    %c0_29 = arith.constant 0 : index
    %c0_30 = arith.constant 0 : index
    %17 = vector.load %arg14[%c0_29, %c0_30] : memref<1x32xf32, #tpu.memory_space<vmem>>, vector<1x32xf32>
    %c0_31 = arith.constant 0 : index
    %c0_32 = arith.constant 0 : index
    %18 = vector.load %arg15[%c0_31, %c0_32] : memref<32x32xf32, #tpu.memory_space<vmem>>, vector<32x32xf32>
    %c0_33 = arith.constant 0 : index
    %c0_34 = arith.constant 0 : index
    %19 = vector.load %arg16[%c0_33, %c0_34] : memref<1x32xf32, #tpu.memory_space<vmem>>, vector<1x32xf32>
    %c0_35 = arith.constant 0 : index
    %c0_36 = arith.constant 0 : index
    %20 = vector.load %arg17[%c0_35, %c0_36] : memref<1x32xf32, #tpu.memory_space<vmem>>, vector<1x32xf32>
    %c0_37 = arith.constant 0 : index
    %c0_38 = arith.constant 0 : index
    %21 = vector.load %arg18[%c0_37, %c0_38] : memref<1x32xf32, #tpu.memory_space<vmem>>, vector<1x32xf32>
    %c0_39 = arith.constant 0 : index
    %c0_40 = arith.constant 0 : index
    %22 = vector.load %arg19[%c0_39, %c0_40] : memref<32x64xbf16, #tpu.memory_space<vmem>>, vector<32x64xbf16>
    %c0_41 = arith.constant 0 : index
    %c0_42 = arith.constant 0 : index
    %23 = vector.load %arg20[%c0_41, %c0_42] : memref<1x64xf32, #tpu.memory_space<vmem>>, vector<1x64xf32>
    %c0_43 = arith.constant 0 : index
    %c0_44 = arith.constant 0 : index
    %24 = vector.load %arg21[%c0_43, %c0_44] : memref<64x32xbf16, #tpu.memory_space<vmem>>, vector<64x32xbf16>
    %c0_45 = arith.constant 0 : index
    %c0_46 = arith.constant 0 : index
    %25 = vector.load %arg22[%c0_45, %c0_46] : memref<1x32xf32, #tpu.memory_space<vmem>>, vector<1x32xf32>
    %c0_47 = arith.constant 0 : index
    %c0_48 = arith.constant 0 : index
    %26 = vector.load %arg23[%c0_47, %c0_48] : memref<1x32xf32, #tpu.memory_space<vmem>>, vector<1x32xf32>
    %c0_49 = arith.constant 0 : index
    %c0_50 = arith.constant 0 : index
    %27 = vector.load %arg24[%c0_49, %c0_50] : memref<1x32xf32, #tpu.memory_space<vmem>>, vector<1x32xf32>
    %cst = arith.constant dense<0.000000e+00> : vector<64x32xf32>
    %28 = tpu.matmul %7, %16, %cst {dimension_numbers = #tpu.dot_dimension_numbers<[1], [0], [0], [1], [0, 0, 1, 1], [], []>} : vector<64x32xf32>, vector<32x32xf32>, vector<64x32xf32> -> vector<64x32xf32>
    %29 = vector.broadcast %17 : vector<1x32xf32> to vector<64x32xf32>
    %30 = arith.addf %28, %29 : vector<64x32xf32>
    %cst_51 = arith.constant dense<0.000000e+00> : vector<64x32xf32>
    %31 = tpu.matmul %5, %30, %cst_51 {dimension_numbers = #tpu.dot_dimension_numbers<[1], [0], [0], [1], [0, 0, 1, 1], [], []>} : vector<64x64xf32>, vector<64x32xf32>, vector<64x32xf32> -> vector<64x32xf32>
    %cst_52 = arith.constant dense<0.000000e+00> : vector<64x32xf32>
    %32 = tpu.matmul %31, %18, %cst_52 {dimension_numbers = #tpu.dot_dimension_numbers<[1], [0], [0], [1], [0, 0, 1, 1], [], []>} : vector<64x32xf32>, vector<32x32xf32>, vector<64x32xf32> -> vector<64x32xf32>
    %33 = vector.broadcast %19 : vector<1x32xf32> to vector<64x32xf32>
    %34 = arith.addf %32, %33 : vector<64x32xf32>
    %c0_i32 = arith.constant 0 : i32
    %35 = arith.addf %1, %3 : vector<64x32xf32>
    %36 = arith.truncf %35 : vector<64x32xf32> to vector<64x32xbf16>
    %cst_53 = arith.constant dense<0.000000e+00> : vector<64x64xf32>
    %37 = tpu.matmul %36, %8, %cst_53 {dimension_numbers = #tpu.dot_dimension_numbers<[1], [0], [0], [1], [0, 0, 1, 1], [], []>} : vector<64x32xbf16>, vector<32x64xbf16>, vector<64x64xf32> -> vector<64x64xf32>
    %38 = vector.broadcast %9 : vector<1x64xf32> to vector<64x64xf32>
    %39 = arith.addf %37, %38 : vector<64x64xf32>
    %40 = arith.truncf %1 : vector<64x32xf32> to vector<64x32xbf16>
    %cst_54 = arith.constant dense<0.000000e+00> : vector<64x32xf32>
    %41 = tpu.matmul %40, %10, %cst_54 {dimension_numbers = #tpu.dot_dimension_numbers<[1], [0], [0], [1], [0, 0, 1, 1], [], []>} : vector<64x32xbf16>, vector<32x32xbf16>, vector<64x32xf32> -> vector<64x32xf32>
    %42 = vector.broadcast %11 : vector<1x32xf32> to vector<64x32xf32>
    %43 = arith.addf %41, %42 : vector<64x32xf32>
    %44 = vector.extract_strided_slice %39 {offsets = [0, 0], sizes = [64, 32], strides = [1, 1]} : vector<64x64xf32> to vector<64x32xf32>
    %45 = vector.extract_strided_slice %39 {offsets = [0, 32], sizes = [64, 32], strides = [1, 1]} : vector<64x64xf32> to vector<64x32xf32>
    %46 = vector.extract_strided_slice %44 {offsets = [0, 0], sizes = [64, 8], strides = [1, 1]} : vector<64x32xf32> to vector<64x8xf32>
    %47 = arith.truncf %46 : vector<64x8xf32> to vector<64x8xbf16>
    %48 = vector.extract_strided_slice %45 {offsets = [0, 0], sizes = [64, 8], strides = [1, 1]} : vector<64x32xf32> to vector<64x8xf32>
    %49 = arith.truncf %48 : vector<64x8xf32> to vector<64x8xbf16>
    %50 = vector.extract_strided_slice %43 {offsets = [0, 0], sizes = [64, 8], strides = [1, 1]} : vector<64x32xf32> to vector<64x8xf32>
    %51 = arith.truncf %50 : vector<64x8xf32> to vector<64x8xbf16>
    %cst_55 = arith.constant dense<0.000000e+00> : vector<64x64xf32>
    %52 = tpu.matmul %47, %49, %cst_55 {dimension_numbers = #tpu.dot_dimension_numbers<[1], [1], [0], [0], [0, 0, 1, 0], [], []>} : vector<64x8xbf16>, vector<64x8xbf16>, vector<64x64xf32> -> vector<64x64xf32>
    %cst_56 = arith.constant dense<0xFF800000> : vector<64xf32>
    %53 = vector.multi_reduction <maximumf>, %52, %cst_56 [1] : vector<64x64xf32> to vector<64xf32>
    %54 = vector.shape_cast %53 : vector<64xf32> to vector<64x1xf32>
    %55 = vector.broadcast %54 : vector<64x1xf32> to vector<64x64xf32>
    %56 = arith.subf %52, %55 : vector<64x64xf32>
    %57 = math.exp %56 : vector<64x64xf32>
    %cst_57 = arith.constant dense<0.000000e+00> : vector<64xf32>
    %58 = vector.multi_reduction <add>, %57, %cst_57 [1] : vector<64x64xf32> to vector<64xf32>
    %59 = vector.shape_cast %58 : vector<64xf32> to vector<64x1xf32>
    %60 = arith.truncf %57 : vector<64x64xf32> to vector<64x64xbf16>
    %cst_58 = arith.constant dense<0.000000e+00> : vector<64x8xf32>
    %61 = tpu.matmul %60, %51, %cst_58 {dimension_numbers = #tpu.dot_dimension_numbers<[1], [0], [0], [1], [0, 0, 1, 1], [], []>} : vector<64x64xbf16>, vector<64x8xbf16>, vector<64x8xf32> -> vector<64x8xf32>
    %62 = tpu.reciprocal %59 {approx = true} : vector<64x1xf32> -> vector<64x1xf32>
    %63 = vector.broadcast %62 : vector<64x1xf32> to vector<64x8xf32>
    %64 = arith.mulf %61, %63 : vector<64x8xf32>
    %65 = vector.extract_strided_slice %44 {offsets = [0, 8], sizes = [64, 8], strides = [1, 1]} : vector<64x32xf32> to vector<64x8xf32>
    %66 = arith.truncf %65 : vector<64x8xf32> to vector<64x8xbf16>
    %67 = vector.extract_strided_slice %45 {offsets = [0, 8], sizes = [64, 8], strides = [1, 1]} : vector<64x32xf32> to vector<64x8xf32>
    %68 = arith.truncf %67 : vector<64x8xf32> to vector<64x8xbf16>
    %69 = vector.extract_strided_slice %43 {offsets = [0, 8], sizes = [64, 8], strides = [1, 1]} : vector<64x32xf32> to vector<64x8xf32>
    %70 = arith.truncf %69 : vector<64x8xf32> to vector<64x8xbf16>
    %cst_59 = arith.constant dense<0.000000e+00> : vector<64x64xf32>
    %71 = tpu.matmul %66, %68, %cst_59 {dimension_numbers = #tpu.dot_dimension_numbers<[1], [1], [0], [0], [0, 0, 1, 0], [], []>} : vector<64x8xbf16>, vector<64x8xbf16>, vector<64x64xf32> -> vector<64x64xf32>
    %cst_60 = arith.constant dense<0xFF800000> : vector<64xf32>
    %72 = vector.multi_reduction <maximumf>, %71, %cst_60 [1] : vector<64x64xf32> to vector<64xf32>
    %73 = vector.shape_cast %72 : vector<64xf32> to vector<64x1xf32>
    %74 = vector.broadcast %73 : vector<64x1xf32> to vector<64x64xf32>
    %75 = arith.subf %71, %74 : vector<64x64xf32>
    %76 = math.exp %75 : vector<64x64xf32>
    %cst_61 = arith.constant dense<0.000000e+00> : vector<64xf32>
    %77 = vector.multi_reduction <add>, %76, %cst_61 [1] : vector<64x64xf32> to vector<64xf32>
    %78 = vector.shape_cast %77 : vector<64xf32> to vector<64x1xf32>
    %79 = arith.truncf %76 : vector<64x64xf32> to vector<64x64xbf16>
    %cst_62 = arith.constant dense<0.000000e+00> : vector<64x8xf32>
    %80 = tpu.matmul %79, %70, %cst_62 {dimension_numbers = #tpu.dot_dimension_numbers<[1], [0], [0], [1], [0, 0, 1, 1], [], []>} : vector<64x64xbf16>, vector<64x8xbf16>, vector<64x8xf32> -> vector<64x8xf32>
    %81 = tpu.reciprocal %78 {approx = true} : vector<64x1xf32> -> vector<64x1xf32>
    %82 = vector.broadcast %81 : vector<64x1xf32> to vector<64x8xf32>
    %83 = arith.mulf %80, %82 : vector<64x8xf32>
    %84 = vector.extract_strided_slice %44 {offsets = [0, 16], sizes = [64, 8], strides = [1, 1]} : vector<64x32xf32> to vector<64x8xf32>
    %85 = arith.truncf %84 : vector<64x8xf32> to vector<64x8xbf16>
    %86 = vector.extract_strided_slice %45 {offsets = [0, 16], sizes = [64, 8], strides = [1, 1]} : vector<64x32xf32> to vector<64x8xf32>
    %87 = arith.truncf %86 : vector<64x8xf32> to vector<64x8xbf16>
    %88 = vector.extract_strided_slice %43 {offsets = [0, 16], sizes = [64, 8], strides = [1, 1]} : vector<64x32xf32> to vector<64x8xf32>
    %89 = arith.truncf %88 : vector<64x8xf32> to vector<64x8xbf16>
    %cst_63 = arith.constant dense<0.000000e+00> : vector<64x64xf32>
    %90 = tpu.matmul %85, %87, %cst_63 {dimension_numbers = #tpu.dot_dimension_numbers<[1], [1], [0], [0], [0, 0, 1, 0], [], []>} : vector<64x8xbf16>, vector<64x8xbf16>, vector<64x64xf32> -> vector<64x64xf32>
    %cst_64 = arith.constant dense<0xFF800000> : vector<64xf32>
    %91 = vector.multi_reduction <maximumf>, %90, %cst_64 [1] : vector<64x64xf32> to vector<64xf32>
    %92 = vector.shape_cast %91 : vector<64xf32> to vector<64x1xf32>
    %93 = vector.broadcast %92 : vector<64x1xf32> to vector<64x64xf32>
    %94 = arith.subf %90, %93 : vector<64x64xf32>
    %95 = math.exp %94 : vector<64x64xf32>
    %cst_65 = arith.constant dense<0.000000e+00> : vector<64xf32>
    %96 = vector.multi_reduction <add>, %95, %cst_65 [1] : vector<64x64xf32> to vector<64xf32>
    %97 = vector.shape_cast %96 : vector<64xf32> to vector<64x1xf32>
    %98 = arith.truncf %95 : vector<64x64xf32> to vector<64x64xbf16>
    %cst_66 = arith.constant dense<0.000000e+00> : vector<64x8xf32>
    %99 = tpu.matmul %98, %89, %cst_66 {dimension_numbers = #tpu.dot_dimension_numbers<[1], [0], [0], [1], [0, 0, 1, 1], [], []>} : vector<64x64xbf16>, vector<64x8xbf16>, vector<64x8xf32> -> vector<64x8xf32>
    %100 = tpu.reciprocal %97 {approx = true} : vector<64x1xf32> -> vector<64x1xf32>
    %101 = vector.broadcast %100 : vector<64x1xf32> to vector<64x8xf32>
    %102 = arith.mulf %99, %101 : vector<64x8xf32>
    %103 = vector.extract_strided_slice %44 {offsets = [0, 24], sizes = [64, 8], strides = [1, 1]} : vector<64x32xf32> to vector<64x8xf32>
    %104 = arith.truncf %103 : vector<64x8xf32> to vector<64x8xbf16>
    %105 = vector.extract_strided_slice %45 {offsets = [0, 24], sizes = [64, 8], strides = [1, 1]} : vector<64x32xf32> to vector<64x8xf32>
    %106 = arith.truncf %105 : vector<64x8xf32> to vector<64x8xbf16>
    %107 = vector.extract_strided_slice %43 {offsets = [0, 24], sizes = [64, 8], strides = [1, 1]} : vector<64x32xf32> to vector<64x8xf32>
    %108 = arith.truncf %107 : vector<64x8xf32> to vector<64x8xbf16>
    %cst_67 = arith.constant dense<0.000000e+00> : vector<64x64xf32>
    %109 = tpu.matmul %104, %106, %cst_67 {dimension_numbers = #tpu.dot_dimension_numbers<[1], [1], [0], [0], [0, 0, 1, 0], [], []>} : vector<64x8xbf16>, vector<64x8xbf16>, vector<64x64xf32> -> vector<64x64xf32>
    %cst_68 = arith.constant dense<0xFF800000> : vector<64xf32>
    %110 = vector.multi_reduction <maximumf>, %109, %cst_68 [1] : vector<64x64xf32> to vector<64xf32>
    %111 = vector.shape_cast %110 : vector<64xf32> to vector<64x1xf32>
    %112 = vector.broadcast %111 : vector<64x1xf32> to vector<64x64xf32>
    %113 = arith.subf %109, %112 : vector<64x64xf32>
    %114 = math.exp %113 : vector<64x64xf32>
    %cst_69 = arith.constant dense<0.000000e+00> : vector<64xf32>
    %115 = vector.multi_reduction <add>, %114, %cst_69 [1] : vector<64x64xf32> to vector<64xf32>
    %116 = vector.shape_cast %115 : vector<64xf32> to vector<64x1xf32>
    %117 = arith.truncf %114 : vector<64x64xf32> to vector<64x64xbf16>
    %cst_70 = arith.constant dense<0.000000e+00> : vector<64x8xf32>
    %118 = tpu.matmul %117, %108, %cst_70 {dimension_numbers = #tpu.dot_dimension_numbers<[1], [0], [0], [1], [0, 0, 1, 1], [], []>} : vector<64x64xbf16>, vector<64x8xbf16>, vector<64x8xf32> -> vector<64x8xf32>
    %119 = tpu.reciprocal %116 {approx = true} : vector<64x1xf32> -> vector<64x1xf32>
    %120 = vector.broadcast %119 : vector<64x1xf32> to vector<64x8xf32>
    %121 = arith.mulf %118, %120 : vector<64x8xf32>
    %122 = tpu.concatenate %64, %83, %102, %121 in 1 : vector<64x8xf32>, vector<64x8xf32>, vector<64x8xf32>, vector<64x8xf32> -> vector<64x32xf32>
    %123 = arith.truncf %122 : vector<64x32xf32> to vector<64x32xbf16>
    %cst_71 = arith.constant dense<0.000000e+00> : vector<64x32xf32>
    %124 = tpu.matmul %123, %12, %cst_71 {dimension_numbers = #tpu.dot_dimension_numbers<[1], [0], [0], [1], [0, 0, 1, 1], [], []>} : vector<64x32xbf16>, vector<32x32xbf16>, vector<64x32xf32> -> vector<64x32xf32>
    %125 = vector.broadcast %13 : vector<1x32xf32> to vector<64x32xf32>
    %126 = arith.addf %124, %125 : vector<64x32xf32>
    %127 = arith.addf %1, %126 : vector<64x32xf32>
    %cst_72 = arith.constant dense<0.000000e+00> : vector<64xf32>
    %128 = vector.multi_reduction <add>, %127, %cst_72 [1] : vector<64x32xf32> to vector<64xf32>
    %129 = vector.shape_cast %128 : vector<64xf32> to vector<64x1xf32>
    %cst_73 = arith.constant 3.200000e+01 : f32
    %130 = vector.broadcast %cst_73 : f32 to vector<64x1xf32>
    %131 = arith.divf %129, %130 : vector<64x1xf32>
    %132 = vector.broadcast %131 : vector<64x1xf32> to vector<64x32xf32>
    %133 = arith.subf %127, %132 : vector<64x32xf32>
    %134 = arith.mulf %133, %133 : vector<64x32xf32>
    %cst_74 = arith.constant dense<0.000000e+00> : vector<64xf32>
    %135 = vector.multi_reduction <add>, %134, %cst_74 [1] : vector<64x32xf32> to vector<64xf32>
    %136 = vector.shape_cast %135 : vector<64xf32> to vector<64x1xf32>
    %cst_75 = arith.constant 3.200000e+01 : f32
    %137 = vector.broadcast %cst_75 : f32 to vector<64x1xf32>
    %138 = arith.divf %136, %137 : vector<64x1xf32>
    %139 = vector.broadcast %131 : vector<64x1xf32> to vector<64x32xf32>
    %140 = arith.subf %127, %139 : vector<64x32xf32>
    %cst_76 = arith.constant 9.99999974E-6 : f32
    %141 = vector.broadcast %cst_76 : f32 to vector<64x1xf32>
    %142 = arith.addf %138, %141 : vector<64x1xf32>
    %143 = math.rsqrt %142 : vector<64x1xf32>
    %144 = vector.broadcast %143 : vector<64x1xf32> to vector<64x32xf32>
    %145 = arith.mulf %140, %144 : vector<64x32xf32>
    %146 = vector.broadcast %14 : vector<1x32xf32> to vector<64x32xf32>
    %147 = arith.mulf %145, %146 : vector<64x32xf32>
    %148 = vector.broadcast %15 : vector<1x32xf32> to vector<64x32xf32>
    %149 = arith.addf %147, %148 : vector<64x32xf32>
    %150 = arith.addf %149, %34 : vector<64x32xf32>
    %cst_77 = arith.constant dense<0.000000e+00> : vector<64xf32>
    %151 = vector.multi_reduction <add>, %150, %cst_77 [1] : vector<64x32xf32> to vector<64xf32>
    %152 = vector.shape_cast %151 : vector<64xf32> to vector<64x1xf32>
    %cst_78 = arith.constant 3.200000e+01 : f32
    %153 = vector.broadcast %cst_78 : f32 to vector<64x1xf32>
    %154 = arith.divf %152, %153 : vector<64x1xf32>
    %155 = vector.broadcast %154 : vector<64x1xf32> to vector<64x32xf32>
    %156 = arith.subf %150, %155 : vector<64x32xf32>
    %157 = arith.mulf %156, %156 : vector<64x32xf32>
    %cst_79 = arith.constant dense<0.000000e+00> : vector<64xf32>
    %158 = vector.multi_reduction <add>, %157, %cst_79 [1] : vector<64x32xf32> to vector<64xf32>
    %159 = vector.shape_cast %158 : vector<64xf32> to vector<64x1xf32>
    %cst_80 = arith.constant 3.200000e+01 : f32
    %160 = vector.broadcast %cst_80 : f32 to vector<64x1xf32>
    %161 = arith.divf %159, %160 : vector<64x1xf32>
    %162 = vector.broadcast %154 : vector<64x1xf32> to vector<64x32xf32>
    %163 = arith.subf %150, %162 : vector<64x32xf32>
    %cst_81 = arith.constant 9.99999974E-6 : f32
    %164 = vector.broadcast %cst_81 : f32 to vector<64x1xf32>
    %165 = arith.addf %161, %164 : vector<64x1xf32>
    %166 = math.rsqrt %165 : vector<64x1xf32>
    %167 = vector.broadcast %166 : vector<64x1xf32> to vector<64x32xf32>
    %168 = arith.mulf %163, %167 : vector<64x32xf32>
    %169 = vector.broadcast %20 : vector<1x32xf32> to vector<64x32xf32>
    %170 = arith.mulf %168, %169 : vector<64x32xf32>
    %171 = vector.broadcast %21 : vector<1x32xf32> to vector<64x32xf32>
    %172 = arith.addf %170, %171 : vector<64x32xf32>
    %173 = arith.truncf %172 : vector<64x32xf32> to vector<64x32xbf16>
    %cst_82 = arith.constant dense<0.000000e+00> : vector<64x64xf32>
    %174 = tpu.matmul %173, %22, %cst_82 {dimension_numbers = #tpu.dot_dimension_numbers<[1], [0], [0], [1], [0, 0, 1, 1], [], []>} : vector<64x32xbf16>, vector<32x64xbf16>, vector<64x64xf32> -> vector<64x64xf32>
    %175 = vector.broadcast %23 : vector<1x64xf32> to vector<64x64xf32>
    %176 = arith.addf %174, %175 : vector<64x64xf32>
    %cst_83 = arith.constant 5.000000e-01 : f32
    %177 = vector.broadcast %cst_83 : f32 to vector<64x64xf32>
    %178 = arith.mulf %177, %176 : vector<64x64xf32>
    %cst_84 = arith.constant 4.471500e-02 : f32
    %179 = vector.broadcast %cst_84 : f32 to vector<64x64xf32>
    %180 = arith.mulf %179, %176 : vector<64x64xf32>
    %181 = arith.mulf %180, %176 : vector<64x64xf32>
    %182 = arith.mulf %181, %176 : vector<64x64xf32>
    %183 = arith.addf %176, %182 : vector<64x64xf32>
    %cst_85 = arith.constant 0.797884583 : f32
    %184 = vector.broadcast %cst_85 : f32 to vector<64x64xf32>
    %185 = arith.mulf %184, %183 : vector<64x64xf32>
    %186 = math.tanh %185 : vector<64x64xf32>
    %cst_86 = arith.constant 1.000000e+00 : f32
    %187 = vector.broadcast %cst_86 : f32 to vector<64x64xf32>
    %188 = arith.addf %187, %186 : vector<64x64xf32>
    %189 = arith.mulf %178, %188 : vector<64x64xf32>
    %190 = arith.truncf %189 : vector<64x64xf32> to vector<64x64xbf16>
    %cst_87 = arith.constant dense<0.000000e+00> : vector<64x32xf32>
    %191 = tpu.matmul %190, %24, %cst_87 {dimension_numbers = #tpu.dot_dimension_numbers<[1], [0], [0], [1], [0, 0, 1, 1], [], []>} : vector<64x64xbf16>, vector<64x32xbf16>, vector<64x32xf32> -> vector<64x32xf32>
    %192 = vector.broadcast %25 : vector<1x32xf32> to vector<64x32xf32>
    %193 = arith.addf %191, %192 : vector<64x32xf32>
    %194 = arith.addf %172, %193 : vector<64x32xf32>
    %cst_88 = arith.constant dense<0.000000e+00> : vector<64xf32>
    %195 = vector.multi_reduction <add>, %194, %cst_88 [1] : vector<64x32xf32> to vector<64xf32>
    %196 = vector.shape_cast %195 : vector<64xf32> to vector<64x1xf32>
    %cst_89 = arith.constant 3.200000e+01 : f32
    %197 = vector.broadcast %cst_89 : f32 to vector<64x1xf32>
    %198 = arith.divf %196, %197 : vector<64x1xf32>
    %199 = vector.broadcast %198 : vector<64x1xf32> to vector<64x32xf32>
    %200 = arith.subf %194, %199 : vector<64x32xf32>
    %201 = arith.mulf %200, %200 : vector<64x32xf32>
    %cst_90 = arith.constant dense<0.000000e+00> : vector<64xf32>
    %202 = vector.multi_reduction <add>, %201, %cst_90 [1] : vector<64x32xf32> to vector<64xf32>
    %203 = vector.shape_cast %202 : vector<64xf32> to vector<64x1xf32>
    %cst_91 = arith.constant 3.200000e+01 : f32
    %204 = vector.broadcast %cst_91 : f32 to vector<64x1xf32>
    %205 = arith.divf %203, %204 : vector<64x1xf32>
    %206 = vector.broadcast %198 : vector<64x1xf32> to vector<64x32xf32>
    %207 = arith.subf %194, %206 : vector<64x32xf32>
    %cst_92 = arith.constant 9.99999974E-6 : f32
    %208 = vector.broadcast %cst_92 : f32 to vector<64x1xf32>
    %209 = arith.addf %205, %208 : vector<64x1xf32>
    %210 = math.rsqrt %209 : vector<64x1xf32>
    %211 = vector.broadcast %210 : vector<64x1xf32> to vector<64x32xf32>
    %212 = arith.mulf %207, %211 : vector<64x32xf32>
    %213 = vector.broadcast %26 : vector<1x32xf32> to vector<64x32xf32>
    %214 = arith.mulf %212, %213 : vector<64x32xf32>
    %215 = vector.broadcast %27 : vector<1x32xf32> to vector<64x32xf32>
    %216 = arith.addf %214, %215 : vector<64x32xf32>
    %c1_i32 = arith.constant 1 : i32
    %217 = arith.addf %216, %3 : vector<64x32xf32>
    %218 = arith.truncf %217 : vector<64x32xf32> to vector<64x32xbf16>
    %cst_93 = arith.constant dense<0.000000e+00> : vector<64x64xf32>
    %219 = tpu.matmul %218, %8, %cst_93 {dimension_numbers = #tpu.dot_dimension_numbers<[1], [0], [0], [1], [0, 0, 1, 1], [], []>} : vector<64x32xbf16>, vector<32x64xbf16>, vector<64x64xf32> -> vector<64x64xf32>
    %220 = vector.broadcast %9 : vector<1x64xf32> to vector<64x64xf32>
    %221 = arith.addf %219, %220 : vector<64x64xf32>
    %222 = arith.truncf %216 : vector<64x32xf32> to vector<64x32xbf16>
    %cst_94 = arith.constant dense<0.000000e+00> : vector<64x32xf32>
    %223 = tpu.matmul %222, %10, %cst_94 {dimension_numbers = #tpu.dot_dimension_numbers<[1], [0], [0], [1], [0, 0, 1, 1], [], []>} : vector<64x32xbf16>, vector<32x32xbf16>, vector<64x32xf32> -> vector<64x32xf32>
    %224 = vector.broadcast %11 : vector<1x32xf32> to vector<64x32xf32>
    %225 = arith.addf %223, %224 : vector<64x32xf32>
    %226 = vector.extract_strided_slice %221 {offsets = [0, 0], sizes = [64, 32], strides = [1, 1]} : vector<64x64xf32> to vector<64x32xf32>
    %227 = vector.extract_strided_slice %221 {offsets = [0, 32], sizes = [64, 32], strides = [1, 1]} : vector<64x64xf32> to vector<64x32xf32>
    %228 = vector.extract_strided_slice %226 {offsets = [0, 0], sizes = [64, 8], strides = [1, 1]} : vector<64x32xf32> to vector<64x8xf32>
    %229 = arith.truncf %228 : vector<64x8xf32> to vector<64x8xbf16>
    %230 = vector.extract_strided_slice %227 {offsets = [0, 0], sizes = [64, 8], strides = [1, 1]} : vector<64x32xf32> to vector<64x8xf32>
    %231 = arith.truncf %230 : vector<64x8xf32> to vector<64x8xbf16>
    %232 = vector.extract_strided_slice %225 {offsets = [0, 0], sizes = [64, 8], strides = [1, 1]} : vector<64x32xf32> to vector<64x8xf32>
    %233 = arith.truncf %232 : vector<64x8xf32> to vector<64x8xbf16>
    %cst_95 = arith.constant dense<0.000000e+00> : vector<64x64xf32>
    %234 = tpu.matmul %229, %231, %cst_95 {dimension_numbers = #tpu.dot_dimension_numbers<[1], [1], [0], [0], [0, 0, 1, 0], [], []>} : vector<64x8xbf16>, vector<64x8xbf16>, vector<64x64xf32> -> vector<64x64xf32>
    %cst_96 = arith.constant dense<0xFF800000> : vector<64xf32>
    %235 = vector.multi_reduction <maximumf>, %234, %cst_96 [1] : vector<64x64xf32> to vector<64xf32>
    %236 = vector.shape_cast %235 : vector<64xf32> to vector<64x1xf32>
    %237 = vector.broadcast %236 : vector<64x1xf32> to vector<64x64xf32>
    %238 = arith.subf %234, %237 : vector<64x64xf32>
    %239 = math.exp %238 : vector<64x64xf32>
    %cst_97 = arith.constant dense<0.000000e+00> : vector<64xf32>
    %240 = vector.multi_reduction <add>, %239, %cst_97 [1] : vector<64x64xf32> to vector<64xf32>
    %241 = vector.shape_cast %240 : vector<64xf32> to vector<64x1xf32>
    %242 = arith.truncf %239 : vector<64x64xf32> to vector<64x64xbf16>
    %cst_98 = arith.constant dense<0.000000e+00> : vector<64x8xf32>
    %243 = tpu.matmul %242, %233, %cst_98 {dimension_numbers = #tpu.dot_dimension_numbers<[1], [0], [0], [1], [0, 0, 1, 1], [], []>} : vector<64x64xbf16>, vector<64x8xbf16>, vector<64x8xf32> -> vector<64x8xf32>
    %244 = tpu.reciprocal %241 {approx = true} : vector<64x1xf32> -> vector<64x1xf32>
    %245 = vector.broadcast %244 : vector<64x1xf32> to vector<64x8xf32>
    %246 = arith.mulf %243, %245 : vector<64x8xf32>
    %247 = vector.extract_strided_slice %226 {offsets = [0, 8], sizes = [64, 8], strides = [1, 1]} : vector<64x32xf32> to vector<64x8xf32>
    %248 = arith.truncf %247 : vector<64x8xf32> to vector<64x8xbf16>
    %249 = vector.extract_strided_slice %227 {offsets = [0, 8], sizes = [64, 8], strides = [1, 1]} : vector<64x32xf32> to vector<64x8xf32>
    %250 = arith.truncf %249 : vector<64x8xf32> to vector<64x8xbf16>
    %251 = vector.extract_strided_slice %225 {offsets = [0, 8], sizes = [64, 8], strides = [1, 1]} : vector<64x32xf32> to vector<64x8xf32>
    %252 = arith.truncf %251 : vector<64x8xf32> to vector<64x8xbf16>
    %cst_99 = arith.constant dense<0.000000e+00> : vector<64x64xf32>
    %253 = tpu.matmul %248, %250, %cst_99 {dimension_numbers = #tpu.dot_dimension_numbers<[1], [1], [0], [0], [0, 0, 1, 0], [], []>} : vector<64x8xbf16>, vector<64x8xbf16>, vector<64x64xf32> -> vector<64x64xf32>
    %cst_100 = arith.constant dense<0xFF800000> : vector<64xf32>
    %254 = vector.multi_reduction <maximumf>, %253, %cst_100 [1] : vector<64x64xf32> to vector<64xf32>
    %255 = vector.shape_cast %254 : vector<64xf32> to vector<64x1xf32>
    %256 = vector.broadcast %255 : vector<64x1xf32> to vector<64x64xf32>
    %257 = arith.subf %253, %256 : vector<64x64xf32>
    %258 = math.exp %257 : vector<64x64xf32>
    %cst_101 = arith.constant dense<0.000000e+00> : vector<64xf32>
    %259 = vector.multi_reduction <add>, %258, %cst_101 [1] : vector<64x64xf32> to vector<64xf32>
    %260 = vector.shape_cast %259 : vector<64xf32> to vector<64x1xf32>
    %261 = arith.truncf %258 : vector<64x64xf32> to vector<64x64xbf16>
    %cst_102 = arith.constant dense<0.000000e+00> : vector<64x8xf32>
    %262 = tpu.matmul %261, %252, %cst_102 {dimension_numbers = #tpu.dot_dimension_numbers<[1], [0], [0], [1], [0, 0, 1, 1], [], []>} : vector<64x64xbf16>, vector<64x8xbf16>, vector<64x8xf32> -> vector<64x8xf32>
    %263 = tpu.reciprocal %260 {approx = true} : vector<64x1xf32> -> vector<64x1xf32>
    %264 = vector.broadcast %263 : vector<64x1xf32> to vector<64x8xf32>
    %265 = arith.mulf %262, %264 : vector<64x8xf32>
    %266 = vector.extract_strided_slice %226 {offsets = [0, 16], sizes = [64, 8], strides = [1, 1]} : vector<64x32xf32> to vector<64x8xf32>
    %267 = arith.truncf %266 : vector<64x8xf32> to vector<64x8xbf16>
    %268 = vector.extract_strided_slice %227 {offsets = [0, 16], sizes = [64, 8], strides = [1, 1]} : vector<64x32xf32> to vector<64x8xf32>
    %269 = arith.truncf %268 : vector<64x8xf32> to vector<64x8xbf16>
    %270 = vector.extract_strided_slice %225 {offsets = [0, 16], sizes = [64, 8], strides = [1, 1]} : vector<64x32xf32> to vector<64x8xf32>
    %271 = arith.truncf %270 : vector<64x8xf32> to vector<64x8xbf16>
    %cst_103 = arith.constant dense<0.000000e+00> : vector<64x64xf32>
    %272 = tpu.matmul %267, %269, %cst_103 {dimension_numbers = #tpu.dot_dimension_numbers<[1], [1], [0], [0], [0, 0, 1, 0], [], []>} : vector<64x8xbf16>, vector<64x8xbf16>, vector<64x64xf32> -> vector<64x64xf32>
    %cst_104 = arith.constant dense<0xFF800000> : vector<64xf32>
    %273 = vector.multi_reduction <maximumf>, %272, %cst_104 [1] : vector<64x64xf32> to vector<64xf32>
    %274 = vector.shape_cast %273 : vector<64xf32> to vector<64x1xf32>
    %275 = vector.broadcast %274 : vector<64x1xf32> to vector<64x64xf32>
    %276 = arith.subf %272, %275 : vector<64x64xf32>
    %277 = math.exp %276 : vector<64x64xf32>
    %cst_105 = arith.constant dense<0.000000e+00> : vector<64xf32>
    %278 = vector.multi_reduction <add>, %277, %cst_105 [1] : vector<64x64xf32> to vector<64xf32>
    %279 = vector.shape_cast %278 : vector<64xf32> to vector<64x1xf32>
    %280 = arith.truncf %277 : vector<64x64xf32> to vector<64x64xbf16>
    %cst_106 = arith.constant dense<0.000000e+00> : vector<64x8xf32>
    %281 = tpu.matmul %280, %271, %cst_106 {dimension_numbers = #tpu.dot_dimension_numbers<[1], [0], [0], [1], [0, 0, 1, 1], [], []>} : vector<64x64xbf16>, vector<64x8xbf16>, vector<64x8xf32> -> vector<64x8xf32>
    %282 = tpu.reciprocal %279 {approx = true} : vector<64x1xf32> -> vector<64x1xf32>
    %283 = vector.broadcast %282 : vector<64x1xf32> to vector<64x8xf32>
    %284 = arith.mulf %281, %283 : vector<64x8xf32>
    %285 = vector.extract_strided_slice %226 {offsets = [0, 24], sizes = [64, 8], strides = [1, 1]} : vector<64x32xf32> to vector<64x8xf32>
    %286 = arith.truncf %285 : vector<64x8xf32> to vector<64x8xbf16>
    %287 = vector.extract_strided_slice %227 {offsets = [0, 24], sizes = [64, 8], strides = [1, 1]} : vector<64x32xf32> to vector<64x8xf32>
    %288 = arith.truncf %287 : vector<64x8xf32> to vector<64x8xbf16>
    %289 = vector.extract_strided_slice %225 {offsets = [0, 24], sizes = [64, 8], strides = [1, 1]} : vector<64x32xf32> to vector<64x8xf32>
    %290 = arith.truncf %289 : vector<64x8xf32> to vector<64x8xbf16>
    %cst_107 = arith.constant dense<0.000000e+00> : vector<64x64xf32>
    %291 = tpu.matmul %286, %288, %cst_107 {dimension_numbers = #tpu.dot_dimension_numbers<[1], [1], [0], [0], [0, 0, 1, 0], [], []>} : vector<64x8xbf16>, vector<64x8xbf16>, vector<64x64xf32> -> vector<64x64xf32>
    %cst_108 = arith.constant dense<0xFF800000> : vector<64xf32>
    %292 = vector.multi_reduction <maximumf>, %291, %cst_108 [1] : vector<64x64xf32> to vector<64xf32>
    %293 = vector.shape_cast %292 : vector<64xf32> to vector<64x1xf32>
    %294 = vector.broadcast %293 : vector<64x1xf32> to vector<64x64xf32>
    %295 = arith.subf %291, %294 : vector<64x64xf32>
    %296 = math.exp %295 : vector<64x64xf32>
    %cst_109 = arith.constant dense<0.000000e+00> : vector<64xf32>
    %297 = vector.multi_reduction <add>, %296, %cst_109 [1] : vector<64x64xf32> to vector<64xf32>
    %298 = vector.shape_cast %297 : vector<64xf32> to vector<64x1xf32>
    %299 = arith.truncf %296 : vector<64x64xf32> to vector<64x64xbf16>
    %cst_110 = arith.constant dense<0.000000e+00> : vector<64x8xf32>
    %300 = tpu.matmul %299, %290, %cst_110 {dimension_numbers = #tpu.dot_dimension_numbers<[1], [0], [0], [1], [0, 0, 1, 1], [], []>} : vector<64x64xbf16>, vector<64x8xbf16>, vector<64x8xf32> -> vector<64x8xf32>
    %301 = tpu.reciprocal %298 {approx = true} : vector<64x1xf32> -> vector<64x1xf32>
    %302 = vector.broadcast %301 : vector<64x1xf32> to vector<64x8xf32>
    %303 = arith.mulf %300, %302 : vector<64x8xf32>
    %304 = tpu.concatenate %246, %265, %284, %303 in 1 : vector<64x8xf32>, vector<64x8xf32>, vector<64x8xf32>, vector<64x8xf32> -> vector<64x32xf32>
    %305 = arith.truncf %304 : vector<64x32xf32> to vector<64x32xbf16>
    %cst_111 = arith.constant dense<0.000000e+00> : vector<64x32xf32>
    %306 = tpu.matmul %305, %12, %cst_111 {dimension_numbers = #tpu.dot_dimension_numbers<[1], [0], [0], [1], [0, 0, 1, 1], [], []>} : vector<64x32xbf16>, vector<32x32xbf16>, vector<64x32xf32> -> vector<64x32xf32>
    %307 = vector.broadcast %13 : vector<1x32xf32> to vector<64x32xf32>
    %308 = arith.addf %306, %307 : vector<64x32xf32>
    %309 = arith.addf %216, %308 : vector<64x32xf32>
    %cst_112 = arith.constant dense<0.000000e+00> : vector<64xf32>
    %310 = vector.multi_reduction <add>, %309, %cst_112 [1] : vector<64x32xf32> to vector<64xf32>
    %311 = vector.shape_cast %310 : vector<64xf32> to vector<64x1xf32>
    %cst_113 = arith.constant 3.200000e+01 : f32
    %312 = vector.broadcast %cst_113 : f32 to vector<64x1xf32>
    %313 = arith.divf %311, %312 : vector<64x1xf32>
    %314 = vector.broadcast %313 : vector<64x1xf32> to vector<64x32xf32>
    %315 = arith.subf %309, %314 : vector<64x32xf32>
    %316 = arith.mulf %315, %315 : vector<64x32xf32>
    %cst_114 = arith.constant dense<0.000000e+00> : vector<64xf32>
    %317 = vector.multi_reduction <add>, %316, %cst_114 [1] : vector<64x32xf32> to vector<64xf32>
    %318 = vector.shape_cast %317 : vector<64xf32> to vector<64x1xf32>
    %cst_115 = arith.constant 3.200000e+01 : f32
    %319 = vector.broadcast %cst_115 : f32 to vector<64x1xf32>
    %320 = arith.divf %318, %319 : vector<64x1xf32>
    %321 = vector.broadcast %313 : vector<64x1xf32> to vector<64x32xf32>
    %322 = arith.subf %309, %321 : vector<64x32xf32>
    %cst_116 = arith.constant 9.99999974E-6 : f32
    %323 = vector.broadcast %cst_116 : f32 to vector<64x1xf32>
    %324 = arith.addf %320, %323 : vector<64x1xf32>
    %325 = math.rsqrt %324 : vector<64x1xf32>
    %326 = vector.broadcast %325 : vector<64x1xf32> to vector<64x32xf32>
    %327 = arith.mulf %322, %326 : vector<64x32xf32>
    %328 = vector.broadcast %14 : vector<1x32xf32> to vector<64x32xf32>
    %329 = arith.mulf %327, %328 : vector<64x32xf32>
    %330 = vector.broadcast %15 : vector<1x32xf32> to vector<64x32xf32>
    %331 = arith.addf %329, %330 : vector<64x32xf32>
    %332 = arith.addf %331, %34 : vector<64x32xf32>
    %cst_117 = arith.constant dense<0.000000e+00> : vector<64xf32>
    %333 = vector.multi_reduction <add>, %332, %cst_117 [1] : vector<64x32xf32> to vector<64xf32>
    %334 = vector.shape_cast %333 : vector<64xf32> to vector<64x1xf32>
    %cst_118 = arith.constant 3.200000e+01 : f32
    %335 = vector.broadcast %cst_118 : f32 to vector<64x1xf32>
    %336 = arith.divf %334, %335 : vector<64x1xf32>
    %337 = vector.broadcast %336 : vector<64x1xf32> to vector<64x32xf32>
    %338 = arith.subf %332, %337 : vector<64x32xf32>
    %339 = arith.mulf %338, %338 : vector<64x32xf32>
    %cst_119 = arith.constant dense<0.000000e+00> : vector<64xf32>
    %340 = vector.multi_reduction <add>, %339, %cst_119 [1] : vector<64x32xf32> to vector<64xf32>
    %341 = vector.shape_cast %340 : vector<64xf32> to vector<64x1xf32>
    %cst_120 = arith.constant 3.200000e+01 : f32
    %342 = vector.broadcast %cst_120 : f32 to vector<64x1xf32>
    %343 = arith.divf %341, %342 : vector<64x1xf32>
    %344 = vector.broadcast %336 : vector<64x1xf32> to vector<64x32xf32>
    %345 = arith.subf %332, %344 : vector<64x32xf32>
    %cst_121 = arith.constant 9.99999974E-6 : f32
    %346 = vector.broadcast %cst_121 : f32 to vector<64x1xf32>
    %347 = arith.addf %343, %346 : vector<64x1xf32>
    %348 = math.rsqrt %347 : vector<64x1xf32>
    %349 = vector.broadcast %348 : vector<64x1xf32> to vector<64x32xf32>
    %350 = arith.mulf %345, %349 : vector<64x32xf32>
    %351 = vector.broadcast %20 : vector<1x32xf32> to vector<64x32xf32>
    %352 = arith.mulf %350, %351 : vector<64x32xf32>
    %353 = vector.broadcast %21 : vector<1x32xf32> to vector<64x32xf32>
    %354 = arith.addf %352, %353 : vector<64x32xf32>
    %355 = arith.truncf %354 : vector<64x32xf32> to vector<64x32xbf16>
    %cst_122 = arith.constant dense<0.000000e+00> : vector<64x64xf32>
    %356 = tpu.matmul %355, %22, %cst_122 {dimension_numbers = #tpu.dot_dimension_numbers<[1], [0], [0], [1], [0, 0, 1, 1], [], []>} : vector<64x32xbf16>, vector<32x64xbf16>, vector<64x64xf32> -> vector<64x64xf32>
    %357 = vector.broadcast %23 : vector<1x64xf32> to vector<64x64xf32>
    %358 = arith.addf %356, %357 : vector<64x64xf32>
    %cst_123 = arith.constant 5.000000e-01 : f32
    %359 = vector.broadcast %cst_123 : f32 to vector<64x64xf32>
    %360 = arith.mulf %359, %358 : vector<64x64xf32>
    %cst_124 = arith.constant 4.471500e-02 : f32
    %361 = vector.broadcast %cst_124 : f32 to vector<64x64xf32>
    %362 = arith.mulf %361, %358 : vector<64x64xf32>
    %363 = arith.mulf %362, %358 : vector<64x64xf32>
    %364 = arith.mulf %363, %358 : vector<64x64xf32>
    %365 = arith.addf %358, %364 : vector<64x64xf32>
    %cst_125 = arith.constant 0.797884583 : f32
    %366 = vector.broadcast %cst_125 : f32 to vector<64x64xf32>
    %367 = arith.mulf %366, %365 : vector<64x64xf32>
    %368 = math.tanh %367 : vector<64x64xf32>
    %cst_126 = arith.constant 1.000000e+00 : f32
    %369 = vector.broadcast %cst_126 : f32 to vector<64x64xf32>
    %370 = arith.addf %369, %368 : vector<64x64xf32>
    %371 = arith.mulf %360, %370 : vector<64x64xf32>
    %372 = arith.truncf %371 : vector<64x64xf32> to vector<64x64xbf16>
    %cst_127 = arith.constant dense<0.000000e+00> : vector<64x32xf32>
    %373 = tpu.matmul %372, %24, %cst_127 {dimension_numbers = #tpu.dot_dimension_numbers<[1], [0], [0], [1], [0, 0, 1, 1], [], []>} : vector<64x64xbf16>, vector<64x32xbf16>, vector<64x32xf32> -> vector<64x32xf32>
    %374 = vector.broadcast %25 : vector<1x32xf32> to vector<64x32xf32>
    %375 = arith.addf %373, %374 : vector<64x32xf32>
    %376 = arith.addf %354, %375 : vector<64x32xf32>
    %cst_128 = arith.constant dense<0.000000e+00> : vector<64xf32>
    %377 = vector.multi_reduction <add>, %376, %cst_128 [1] : vector<64x32xf32> to vector<64xf32>
    %378 = vector.shape_cast %377 : vector<64xf32> to vector<64x1xf32>
    %cst_129 = arith.constant 3.200000e+01 : f32
    %379 = vector.broadcast %cst_129 : f32 to vector<64x1xf32>
    %380 = arith.divf %378, %379 : vector<64x1xf32>
    %381 = vector.broadcast %380 : vector<64x1xf32> to vector<64x32xf32>
    %382 = arith.subf %376, %381 : vector<64x32xf32>
    %383 = arith.mulf %382, %382 : vector<64x32xf32>
    %cst_130 = arith.constant dense<0.000000e+00> : vector<64xf32>
    %384 = vector.multi_reduction <add>, %383, %cst_130 [1] : vector<64x32xf32> to vector<64xf32>
    %385 = vector.shape_cast %384 : vector<64xf32> to vector<64x1xf32>
    %cst_131 = arith.constant 3.200000e+01 : f32
    %386 = vector.broadcast %cst_131 : f32 to vector<64x1xf32>
    %387 = arith.divf %385, %386 : vector<64x1xf32>
    %388 = vector.broadcast %380 : vector<64x1xf32> to vector<64x32xf32>
    %389 = arith.subf %376, %388 : vector<64x32xf32>
    %cst_132 = arith.constant 9.99999974E-6 : f32
    %390 = vector.broadcast %cst_132 : f32 to vector<64x1xf32>
    %391 = arith.addf %387, %390 : vector<64x1xf32>
    %392 = math.rsqrt %391 : vector<64x1xf32>
    %393 = vector.broadcast %392 : vector<64x1xf32> to vector<64x32xf32>
    %394 = arith.mulf %389, %393 : vector<64x32xf32>
    %395 = vector.broadcast %26 : vector<1x32xf32> to vector<64x32xf32>
    %396 = arith.mulf %394, %395 : vector<64x32xf32>
    %397 = vector.broadcast %27 : vector<1x32xf32> to vector<64x32xf32>
    %398 = arith.addf %396, %397 : vector<64x32xf32>
    %c0_133 = arith.constant 0 : index
    %c0_134 = arith.constant 0 : index
    %c0_135 = arith.constant 0 : index
    %399 = vector.load %arg25[%c0_133, %c0_134, %c0_135] : memref<1x64x32xf32, #tpu.memory_space<vmem>>, vector<1x64x32xf32>
    %400 = vector.shape_cast %399 : vector<1x64x32xf32> to vector<64x32xf32>
    %401 = vector.shape_cast %398 : vector<64x32xf32> to vector<1x64x32xf32>
    tpu.vector_store %arg25[%c0_133, %c0_134, %c0_135], %401 {strides = array<i32>} : memref<1x64x32xf32, #tpu.memory_space<vmem>>, vector<1x64x32xf32>,
    return
  }
  func.func @transform_0(%arg0: i32) -> (i32, i32, i32) {
    %c0_i32 = arith.constant 0 : i32
    %c0_i32_0 = arith.constant 0 : i32
    %c0_i32_1 = arith.constant 0 : i32
    return %arg0, %c0_i32, %c0_i32_0 : i32, i32, i32
  }
  func.func @transform_1(%arg0: i32) -> (i32, i32, i32) {
    %c0_i32 = arith.constant 0 : i32
    %c0_i32_0 = arith.constant 0 : i32
    %c0_i32_1 = arith.constant 0 : i32
    return %arg0, %c0_i32, %c0_i32_0 : i32, i32, i32
  }
  func.func @transform_2(%arg0: i32) -> (i32, i32, i32) {
    %c0_i32 = arith.constant 0 : i32
    %c0_i32_0 = arith.constant 0 : i32
    %c0_i32_1 = arith.constant 0 : i32
    return %arg0, %c0_i32, %c0_i32_0 : i32, i32, i32
  }
  func.func @transform_3(%arg0: i32) -> (i32, i32, i32) {
    %c0_i32 = arith.constant 0 : i32
    %c0_i32_0 = arith.constant 0 : i32
    %c0_i32_1 = arith.constant 0 : i32
    return %arg0, %c0_i32, %c0_i32_0 : i32, i32, i32
  }
  func.func @transform_4(%arg0: i32) -> (i32, i32) {
    %c0_i32 = arith.constant 0 : i32
    %c0_i32_0 = arith.constant 0 : i32
    %c0_i32_1 = arith.constant 0 : i32
    return %c0_i32, %c0_i32_0 : i32, i32
  }
  func.func @transform_5(%arg0: i32) -> (i32, i32) {
    %c0_i32 = arith.constant 0 : i32
    %c0_i32_0 = arith.constant 0 : i32
    %c0_i32_1 = arith.constant 0 : i32
    return %c0_i32, %c0_i32_0 : i32, i32
  }
  func.func @transform_6(%arg0: i32) -> (i32, i32) {
    %c0_i32 = arith.constant 0 : i32
    %c0_i32_0 = arith.constant 0 : i32
    %c0_i32_1 = arith.constant 0 : i32
    return %c0_i32, %c0_i32_0 : i32, i32
  }
  func.func @transform_7(%arg0: i32) -> (i32, i32) {
    %c0_i32 = arith.constant 0 : i32
    %c0_i32_0 = arith.constant 0 : i32
    %c0_i32_1 = arith.constant 0 : i32
    return %c0_i32, %c0_i32_0 : i32, i32
  }
  func.func @transform_8(%arg0: i32) -> (i32, i32) {
    %c0_i32 = arith.constant 0 : i32
    %c0_i32_0 = arith.constant 0 : i32
    %c0_i32_1 = arith.constant 0 : i32
    return %c0_i32, %c0_i32_0 : i32, i32
  }
  func.func @transform_9(%arg0: i32) -> (i32, i32) {
    %c0_i32 = arith.constant 0 : i32
    %c0_i32_0 = arith.constant 0 : i32
    %c0_i32_1 = arith.constant 0 : i32
    return %c0_i32, %c0_i32_0 : i32, i32
  }
  func.func @transform_10(%arg0: i32) -> (i32, i32) {
    %c0_i32 = arith.constant 0 : i32
    %c0_i32_0 = arith.constant 0 : i32
    %c0_i32_1 = arith.constant 0 : i32
    return %c0_i32, %c0_i32_0 : i32, i32
  }
  func.func @transform_11(%arg0: i32) -> (i32, i32) {
    %c0_i32 = arith.constant 0 : i32
    %c0_i32_0 = arith.constant 0 : i32
    %c0_i32_1 = arith.constant 0 : i32
    return %c0_i32, %c0_i32_0 : i32, i32
  }
  func.func @transform_12(%arg0: i32) -> (i32, i32) {
    %c0_i32 = arith.constant 0 : i32
    %c0_i32_0 = arith.constant 0 : i32
    %c0_i32_1 = arith.constant 0 : i32
    return %c0_i32, %c0_i32_0 : i32, i32
  }
  func.func @transform_13(%arg0: i32) -> (i32, i32) {
    %c0_i32 = arith.constant 0 : i32
    %c0_i32_0 = arith.constant 0 : i32
    %c0_i32_1 = arith.constant 0 : i32
    return %c0_i32, %c0_i32_0 : i32, i32
  }
  func.func @transform_14(%arg0: i32) -> (i32, i32) {
    %c0_i32 = arith.constant 0 : i32
    %c0_i32_0 = arith.constant 0 : i32
    %c0_i32_1 = arith.constant 0 : i32
    return %c0_i32, %c0_i32_0 : i32, i32
  }
  func.func @transform_15(%arg0: i32) -> (i32, i32) {
    %c0_i32 = arith.constant 0 : i32
    %c0_i32_0 = arith.constant 0 : i32
    %c0_i32_1 = arith.constant 0 : i32
    return %c0_i32, %c0_i32_0 : i32, i32
  }
  func.func @transform_16(%arg0: i32) -> (i32, i32) {
    %c0_i32 = arith.constant 0 : i32
    %c0_i32_0 = arith.constant 0 : i32
    %c0_i32_1 = arith.constant 0 : i32
    return %c0_i32, %c0_i32_0 : i32, i32
  }
  func.func @transform_17(%arg0: i32) -> (i32, i32) {
    %c0_i32 = arith.constant 0 : i32
    %c0_i32_0 = arith.constant 0 : i32
    %c0_i32_1 = arith.constant 0 : i32
    return %c0_i32, %c0_i32_0 : i32, i32
  }
  func.func @transform_18(%arg0: i32) -> (i32, i32) {
    %c0_i32 = arith.constant 0 : i32
    %c0_i32_0 = arith.constant 0 : i32
    %c0_i32_1 = arith.constant 0 : i32
    return %c0_i32, %c0_i32_0 : i32, i32
  }
  func.func @transform_19(%arg0: i32) -> (i32, i32) {
    %c0_i32 = arith.constant 0 : i32
    %c0_i32_0 = arith.constant 0 : i32
    %c0_i32_1 = arith.constant 0 : i32
    return %c0_i32, %c0_i32_0 : i32, i32
  }
  func.func @transform_20(%arg0: i32) -> (i32, i32) {
    %c0_i32 = arith.constant 0 : i32
    %c0_i32_0 = arith.constant 0 : i32
    %c0_i32_1 = arith.constant 0 : i32
    return %c0_i32, %c0_i32_0 : i32, i32
  }
  func.func @transform_21(%arg0: i32) -> (i32, i32) {
    %c0_i32 = arith.constant 0 : i32
    %c0_i32_0 = arith.constant 0 : i32
    %c0_i32_1 = arith.constant 0 : i32
    return %c0_i32, %c0_i32_0 : i32, i32
  }
  func.func @transform_22(%arg0: i32) -> (i32, i32) {
    %c0_i32 = arith.constant 0 : i32
    %c0_i32_0 = arith.constant 0 : i32
    %c0_i32_1 = arith.constant 0 : i32
    return %c0_i32, %c0_i32_0 : i32, i32
  }
  func.func @transform_23(%arg0: i32) -> (i32, i32) {
    %c0_i32 = arith.constant 0 : i32
    %c0_i32_0 = arith.constant 0 : i32
    %c0_i32_1 = arith.constant 0 : i32
    return %c0_i32, %c0_i32_0 : i32, i32
  }
  func.func @transform_24(%arg0: i32) -> (i32, i32, i32) {
    %c0_i32 = arith.constant 0 : i32
    %c0_i32_0 = arith.constant 0 : i32
    %c0_i32_1 = arith.constant 0 : i32
    return %arg0, %c0_i32, %c0_i32_0 : i32, i32, i32
  }
}

</mosaic_0001>

<llo_original>
// kernel: back_tracing_decoder_forward.1
$region0: #{back_tracing_decoder_forward.1}
  #allocation0 [shape = 'u32[]', space=smem, size = 0x4, offset = 0x4, fixed_abs, tag = 'smem constant byte address 0x4 - core index']
  #allocation1 [shape = 'u32[72,128]{1,0:T(1,128)}', space=vmem, size = 0x9000, scoped, tag = 'internal scratch']
  %s0 = inlined_call_operand.vmem [shape: f32[2,64,32], index: 0, kind: input, shape index: {}]
  %s1 = inlined_call_operand.vmem [shape: f32[2,64,32], index: 1, kind: input, shape index: {}]
  %s2 = inlined_call_operand.vmem [shape: f32[2,64,64], index: 2, kind: input, shape index: {}]
  %s3 = inlined_call_operand.vmem [shape: f32[2,64,32], index: 3, kind: input, shape index: {}]
  %s4 = inlined_call_operand.vmem [shape: bf16[32,64], index: 4, kind: input, shape index: {}]
  %s5 = inlined_call_operand.vmem [shape: f32[1,64], index: 5, kind: input, shape index: {}]
  %s6 = inlined_call_operand.vmem [shape: bf16[32,32], index: 6, kind: input, shape index: {}]
  %s7 = inlined_call_operand.vmem [shape: f32[1,32], index: 7, kind: input, shape index: {}]
  %s8 = inlined_call_operand.vmem [shape: bf16[32,32], index: 8, kind: input, shape index: {}]
  %s9 = inlined_call_operand.vmem [shape: f32[1,32], index: 9, kind: input, shape index: {}]
  %s10 = inlined_call_operand.vmem [shape: f32[1,32], index: 10, kind: input, shape index: {}]
  %s11 = inlined_call_operand.vmem [shape: f32[1,32], index: 11, kind: input, shape index: {}]
  %s12 = inlined_call_operand.vmem [shape: f32[32,32], index: 12, kind: input, shape index: {}]
  %s13 = inlined_call_operand.vmem [shape: f32[1,32], index: 13, kind: input, shape index: {}]
  %s14 = inlined_call_operand.vmem [shape: f32[32,32], index: 14, kind: input, shape index: {}]
  %s15 = inlined_call_operand.vmem [shape: f32[1,32], index: 15, kind: input, shape index: {}]
  %s16 = inlined_call_operand.vmem [shape: f32[1,32], index: 16, kind: input, shape index: {}]
  %s17 = inlined_call_operand.vmem [shape: f32[1,32], index: 17, kind: input, shape index: {}]
  %s18 = inlined_call_operand.vmem [shape: bf16[32,64], index: 18, kind: input, shape index: {}]
  %s19 = inlined_call_operand.vmem [shape: f32[1,64], index: 19, kind: input, shape index: {}]
  %s20 = inlined_call_operand.vmem [shape: bf16[64,32], index: 20, kind: input, shape index: {}]
  %s21 = inlined_call_operand.vmem [shape: f32[1,32], index: 21, kind: input, shape index: {}]
  %s22 = inlined_call_operand.vmem [shape: f32[1,32], index: 22, kind: input, shape index: {}]
  %s23 = inlined_call_operand.vmem [shape: f32[1,32], index: 23, kind: input, shape index: {}]
  %s24 = inlined_call_operand.vmem [shape: f32[2,64,32], index: 24, kind: output, shape index: {}]
  %s25 = sld [smem:[#allocation0]]
  $region129: #{back_tracing_decoder_forward.1} parent=0
    _
  %s27 = ssub.s32 1, %s25
  %s28 = scalar_select 0, %s27, %s25
  loop: start=0, step=1, limit=4
  $region2: #{back_tracing_decoder_forward.1} parent=0 // loop_pre_header
    _
  $region3: #{back_tracing_decoder_forward.1} parent=0 // loop_header
    %s30 = sphi 0, %s34
    %p31 = scmp.ge.s32.totalorder %s30, 4
    %s40 = sphi 0, %s42
    %s43 = sphi 0, %s40
    %s44 = sphi 0, %s43
    %s60 = sphi 0, %s44
    %s66 = sphi 0, %s68
    %s69 = sphi 0, %s66
    %s70 = sphi 0, %s69
    %s86 = sphi 0, %s70
    %s92 = sphi 0, %s94
    %s95 = sphi 0, %s92
    %s96 = sphi 0, %s95
    %s112 = sphi 0, %s96
    %s118 = sphi 0, %s120
    %s121 = sphi 0, %s118
    %s122 = sphi 0, %s121
    %s138 = sphi 0, %s122
    %s142 = sphi 0, %s142
    %s144 = sphi 0, %s142
    %s145 = sphi 0, %s144
    %s159 = sphi 0, %s145
    %s163 = sphi 0, %s163
    %s165 = sphi 0, %s163
    %s166 = sphi 0, %s165
    %s180 = sphi 0, %s166
    %s184 = sphi 0, %s184
    %s186 = sphi 0, %s184
    %s187 = sphi 0, %s186
    %s201 = sphi 0, %s187
    %s205 = sphi 0, %s205
    %s207 = sphi 0, %s205
    %s208 = sphi 0, %s207
    %s222 = sphi 0, %s208
    %s226 = sphi 0, %s226
    %s228 = sphi 0, %s226
    %s229 = sphi 0, %s228
    %s243 = sphi 0, %s229
    %s247 = sphi 0, %s247
    %s249 = sphi 0, %s247
    %s250 = sphi 0, %s249
    %s264 = sphi 0, %s250
    %s268 = sphi 0, %s268
    %s270 = sphi 0, %s268
    %s271 = sphi 0, %s270
    %s285 = sphi 0, %s271
    %s289 = sphi 0, %s289
    %s291 = sphi 0, %s289
    %s292 = sphi 0, %s291
    %s306 = sphi 0, %s292
    %s310 = sphi 0, %s310
    %s312 = sphi 0, %s310
    %s313 = sphi 0, %s312
    %s327 = sphi 0, %s313
    %s331 = sphi 0, %s331
    %s333 = sphi 0, %s331
    %s334 = sphi 0, %s333
    %s348 = sphi 0, %s334
    %s352 = sphi 0, %s352
    %s354 = sphi 0, %s352
    %s355 = sphi 0, %s354
    %s369 = sphi 0, %s355
    %s373 = sphi 0, %s373
    %s375 = sphi 0, %s373
    %s376 = sphi 0, %s375
    %s390 = sphi 0, %s376
    %s394 = sphi 0, %s394
    %s396 = sphi 0, %s394
    %s397 = sphi 0, %s396
    %s411 = sphi 0, %s397
    %s415 = sphi 0, %s415
    %s417 = sphi 0, %s415
    %s418 = sphi 0, %s417
    %s432 = sphi 0, %s418
    %s436 = sphi 0, %s436
    %s438 = sphi 0, %s436
    %s439 = sphi 0, %s438
    %s453 = sphi 0, %s439
    %s457 = sphi 0, %s457
    %s459 = sphi 0, %s457
    %s460 = sphi 0, %s459
    %s474 = sphi 0, %s460
    %s478 = sphi 0, %s478
    %s480 = sphi 0, %s478
    %s481 = sphi 0, %s480
    %s495 = sphi 0, %s481
    %s499 = sphi 0, %s499
    %s501 = sphi 0, %s499
    %s502 = sphi 0, %s501
    %s516 = sphi 0, %s502
    %s520 = sphi 0, %s520
    %s522 = sphi 0, %s520
    %s523 = sphi 0, %s522
    %s537 = sphi 0, %s523
    %s541 = sphi 0, %s541
    %s543 = sphi 0, %s541
    %s544 = sphi 0, %s543
    %s558 = sphi 0, %s544
    %s564 = sphi 0, %s566
    %s567 = sphi 0, %s564
    %s568 = sphi 0, %s567
    %s584 = sphi 0, %s568
  $region4: #{back_tracing_decoder_forward.1} parent=0 // loop_header_branch
    %33 = sbr.rel (%p31) target = $region8
  $region5: #{back_tracing_decoder_forward.1} parent=0 // loop_body
    %s35 = ssub.s32 %s30, 1
    %s36 = ssub.s32 %s30, 2
    %s37 = sadd.s32 %s30, 1
    %s38 = ssub.s32 %s30, %s37
    %p39 = scmp.eq.s32.totalorder %s38, 0
    %s41 = sadd.s32 %s40, 1
    %s42 = scalar_select %p39, %s40, %s41
    %p45 = pneg %p39
    %p46 = scmp.eq.s32.totalorder %s30, 1
    %p47 = por %p45, %p46
    %p48 = scmp.ne.s32.totalorder %s40, %s43
    %p49 = scmp.eq.s32.totalorder %s30, 0
    %p50 = por %p48, %p49
    %p51 = scmp.ne.s32.totalorder %s40, %s43
    %p52 = scmp.eq.s32.totalorder %s35, 1
    %p53 = por %p51, %p52
    %p54 = scmp.ne.s32.totalorder %s43, %s44
    %p55 = scmp.eq.s32.totalorder %s35, 0
    %p56 = por %p54, %p55
    %p57 = scmp.ne.s32.totalorder %s43, %s44
    %p58 = scmp.eq.s32.totalorder %s36, 1
    %p59 = por %p57, %p58
    %p61 = scmp.ne.s32.totalorder %s44, %s60
    %p62 = scmp.eq.s32.totalorder %s36, 0
    %p63 = por %p61, %p62
    %s64 = ssub.s32 %s30, %s37
    %p65 = scmp.eq.s32.totalorder %s64, 0
    %s67 = sadd.s32 %s66, 1
    %s68 = scalar_select %p65, %s66, %s67
    %p71 = pneg %p65
    %p72 = scmp.eq.s32.totalorder %s30, 1
    %p73 = por %p71, %p72
    %p74 = scmp.ne.s32.totalorder %s66, %s69
    %p75 = scmp.eq.s32.totalorder %s30, 0
    %p76 = por %p74, %p75
    %p77 = scmp.ne.s32.totalorder %s66, %s69
    %p78 = scmp.eq.s32.totalorder %s35, 1
    %p79 = por %p77, %p78
    %p80 = scmp.ne.s32.totalorder %s69, %s70
    %p81 = scmp.eq.s32.totalorder %s35, 0
    %p82 = por %p80, %p81
    %p83 = scmp.ne.s32.totalorder %s69, %s70
    %p84 = scmp.eq.s32.totalorder %s36, 1
    %p85 = por %p83, %p84
    %p87 = scmp.ne.s32.totalorder %s70, %s86
    %p88 = scmp.eq.s32.totalorder %s36, 0
    %p89 = por %p87, %p88
    %s90 = ssub.s32 %s30, %s37
    %p91 = scmp.eq.s32.totalorder %s90, 0
    %s93 = sadd.s32 %s92, 1
    %s94 = scalar_select %p91, %s92, %s93
    %p97 = pneg %p91
    %p98 = scmp.eq.s32.totalorder %s30, 1
    %p99 = por %p97, %p98
    %p100 = scmp.ne.s32.totalorder %s92, %s95
    %p101 = scmp.eq.s32.totalorder %s30, 0
    %p102 = por %p100, %p101
    %p103 = scmp.ne.s32.totalorder %s92, %s95
    %p104 = scmp.eq.s32.totalorder %s35, 1
    %p105 = por %p103, %p104
    %p106 = scmp.ne.s32.totalorder %s95, %s96
    %p107 = scmp.eq.s32.totalorder %s35, 0
    %p108 = por %p106, %p107
    %p109 = scmp.ne.s32.totalorder %s95, %s96
    %p110 = scmp.eq.s32.totalorder %s36, 1
    %p111 = por %p109, %p110
    %p113 = scmp.ne.s32.totalorder %s96, %s112
    %p114 = scmp.eq.s32.totalorder %s36, 0
    %p115 = por %p113, %p114
    %s116 = ssub.s32 %s30, %s37
    %p117 = scmp.eq.s32.totalorder %s116, 0
    %s119 = sadd.s32 %s118, 1
    %s120 = scalar_select %p117, %s118, %s119
    %p123 = pneg %p117
    %p124 = scmp.eq.s32.totalorder %s30, 1
    %p125 = por %p123, %p124
    %p126 = scmp.ne.s32.totalorder %s118, %s121
    %p127 = scmp.eq.s32.totalorder %s30, 0
    %p128 = por %p126, %p127
    %p129 = scmp.ne.s32.totalorder %s118, %s121
    %p130 = scmp.eq.s32.totalorder %s35, 1
    %p131 = por %p129, %p130
    %p132 = scmp.ne.s32.totalorder %s121, %s122
    %p133 = scmp.eq.s32.totalorder %s35, 0
    %p134 = por %p132, %p133
    %p135 = scmp.ne.s32.totalorder %s121, %s122
    %p136 = scmp.eq.s32.totalorder %s36, 1
    %p137 = por %p135, %p136
    %p139 = scmp.ne.s32.totalorder %s122, %s138
    %p140 = scmp.eq.s32.totalorder %s36, 0
    %p141 = por %p139, %p140
    %s143 = sadd.s32 %s142, 1
    %p146 = scmp.eq.s32.totalorder %s30, 1
    %p147 = scmp.ne.s32.totalorder %s142, %s144
    %p148 = scmp.eq.s32.totalorder %s30, 0
    %p149 = por %p147, %p148
    %p150 = scmp.ne.s32.totalorder %s142, %s144
    %p151 = scmp.eq.s32.totalorder %s35, 1
    %p152 = por %p150, %p151
    %p153 = scmp.ne.s32.totalorder %s144, %s145
    %p154 = scmp.eq.s32.totalorder %s35, 0
    %p155 = por %p153, %p154
    %p156 = scmp.ne.s32.totalorder %s144, %s145
    %p157 = scmp.eq.s32.totalorder %s36, 1
    %p158 = por %p156, %p157
    %p160 = scmp.ne.s32.totalorder %s145, %s159
    %p161 = scmp.eq.s32.totalorder %s36, 0
    %p162 = por %p160, %p161
    %s164 = sadd.s32 %s163, 1
    %p167 = scmp.eq.s32.totalorder %s30, 1
    %p168 = scmp.ne.s32.totalorder %s163, %s165
    %p169 = scmp.eq.s32.totalorder %s30, 0
    %p170 = por %p168, %p169
    %p171 = scmp.ne.s32.totalorder %s163, %s165
    %p172 = scmp.eq.s32.totalorder %s35, 1
    %p173 = por %p171, %p172
    %p174 = scmp.ne.s32.totalorder %s165, %s166
    %p175 = scmp.eq.s32.totalorder %s35, 0
    %p176 = por %p174, %p175
    %p177 = scmp.ne.s32.totalorder %s165, %s166
    %p178 = scmp.eq.s32.totalorder %s36, 1
    %p179 = por %p177, %p178
    %p181 = scmp.ne.s32.totalorder %s166, %s180
    %p182 = scmp.eq.s32.totalorder %s36, 0
    %p183 = por %p181, %p182
    %s185 = sadd.s32 %s184, 1
    %p188 = scmp.eq.s32.totalorder %s30, 1
    %p189 = scmp.ne.s32.totalorder %s184, %s186
    %p190 = scmp.eq.s32.totalorder %s30, 0
    %p191 = por %p189, %p190
    %p192 = scmp.ne.s32.totalorder %s184, %s186
    %p193 = scmp.eq.s32.totalorder %s35, 1
    %p194 = por %p192, %p193
    %p195 = scmp.ne.s32.totalorder %s186, %s187
    %p196 = scmp.eq.s32.totalorder %s35, 0
    %p197 = por %p195, %p196
    %p198 = scmp.ne.s32.totalorder %s186, %s187
    %p199 = scmp.eq.s32.totalorder %s36, 1
    %p200 = por %p198, %p199
    %p202 = scmp.ne.s32.totalorder %s187, %s201
    %p203 = scmp.eq.s32.totalorder %s36, 0
    %p204 = por %p202, %p203
    %s206 = sadd.s32 %s205, 1
    %p209 = scmp.eq.s32.totalorder %s30, 1
    %p210 = scmp.ne.s32.totalorder %s205, %s207
    %p211 = scmp.eq.s32.totalorder %s30, 0
    %p212 = por %p210, %p211
    %p213 = scmp.ne.s32.totalorder %s205, %s207
    %p214 = scmp.eq.s32.totalorder %s35, 1
    %p215 = por %p213, %p214
    %p216 = scmp.ne.s32.totalorder %s207, %s208
    %p217 = scmp.eq.s32.totalorder %s35, 0
    %p218 = por %p216, %p217
    %p219 = scmp.ne.s32.totalorder %s207, %s208
    %p220 = scmp.eq.s32.totalorder %s36, 1
    %p221 = por %p219, %p220
    %p223 = scmp.ne.s32.totalorder %s208, %s222
    %p224 = scmp.eq.s32.totalorder %s36, 0
    %p225 = por %p223, %p224
    %s227 = sadd.s32 %s226, 1
    %p230 = scmp.eq.s32.totalorder %s30, 1
    %p231 = scmp.ne.s32.totalorder %s226, %s228
    %p232 = scmp.eq.s32.totalorder %s30, 0
    %p233 = por %p231, %p232
    %p234 = scmp.ne.s32.totalorder %s226, %s228
    %p235 = scmp.eq.s32.totalorder %s35, 1
    %p236 = por %p234, %p235
    %p237 = scmp.ne.s32.totalorder %s228, %s229
    %p238 = scmp.eq.s32.totalorder %s35, 0
    %p239 = por %p237, %p238
    %p240 = scmp.ne.s32.totalorder %s228, %s229
    %p241 = scmp.eq.s32.totalorder %s36, 1
    %p242 = por %p240, %p241
    %p244 = scmp.ne.s32.totalorder %s229, %s243
    %p245 = scmp.eq.s32.totalorder %s36, 0
    %p246 = por %p244, %p245
    %s248 = sadd.s32 %s247, 1
    %p251 = scmp.eq.s32.totalorder %s30, 1
    %p252 = scmp.ne.s32.totalorder %s247, %s249
    %p253 = scmp.eq.s32.totalorder %s30, 0
    %p254 = por %p252, %p253
    %p255 = scmp.ne.s32.totalorder %s247, %s249
    %p256 = scmp.eq.s32.totalorder %s35, 1
    %p257 = por %p255, %p256
    %p258 = scmp.ne.s32.totalorder %s249, %s250
    %p259 = scmp.eq.s32.totalorder %s35, 0
    %p260 = por %p258, %p259
    %p261 = scmp.ne.s32.totalorder %s249, %s250
    %p262 = scmp.eq.s32.totalorder %s36, 1
    %p263 = por %p261, %p262
    %p265 = scmp.ne.s32.totalorder %s250, %s264
    %p266 = scmp.eq.s32.totalorder %s36, 0
    %p267 = por %p265, %p266
    %s269 = sadd.s32 %s268, 1
    %p272 = scmp.eq.s32.totalorder %s30, 1
    %p273 = scmp.ne.s32.totalorder %s268, %s270
    %p274 = scmp.eq.s32.totalorder %s30, 0
    %p275 = por %p273, %p274
    %p276 = scmp.ne.s32.totalorder %s268, %s270
    %p277 = scmp.eq.s32.totalorder %s35, 1
    %p278 = por %p276, %p277
    %p279 = scmp.ne.s32.totalorder %s270, %s271
    %p280 = scmp.eq.s32.totalorder %s35, 0
    %p281 = por %p279, %p280
    %p282 = scmp.ne.s32.totalorder %s270, %s271
    %p283 = scmp.eq.s32.totalorder %s36, 1
    %p284 = por %p282, %p283
    %p286 = scmp.ne.s32.totalorder %s271, %s285
    %p287 = scmp.eq.s32.totalorder %s36, 0
    %p288 = por %p286, %p287
    %s290 = sadd.s32 %s289, 1
    %p293 = scmp.eq.s32.totalorder %s30, 1
    %p294 = scmp.ne.s32.totalorder %s289, %s291
    %p295 = scmp.eq.s32.totalorder %s30, 0
    %p296 = por %p294, %p295
    %p297 = scmp.ne.s32.totalorder %s289, %s291
    %p298 = scmp.eq.s32.totalorder %s35, 1
    %p299 = por %p297, %p298
    %p300 = scmp.ne.s32.totalorder %s291, %s292
    %p301 = scmp.eq.s32.totalorder %s35, 0
    %p302 = por %p300, %p301
    %p303 = scmp.ne.s32.totalorder %s291, %s292
    %p304 = scmp.eq.s32.totalorder %s36, 1
    %p305 = por %p303, %p304
    %p307 = scmp.ne.s32.totalorder %s292, %s306
    %p308 = scmp.eq.s32.totalorder %s36, 0
    %p309 = por %p307, %p308
    %s311 = sadd.s32 %s310, 1
    %p314 = scmp.eq.s32.totalorder %s30, 1
    %p315 = scmp.ne.s32.totalorder %s310, %s312
    %p316 = scmp.eq.s32.totalorder %s30, 0
    %p317 = por %p315, %p316
    %p318 = scmp.ne.s32.totalorder %s310, %s312
    %p319 = scmp.eq.s32.totalorder %s35, 1
    %p320 = por %p318, %p319
    %p321 = scmp.ne.s32.totalorder %s312, %s313
    %p322 = scmp.eq.s32.totalorder %s35, 0
    %p323 = por %p321, %p322
    %p324 = scmp.ne.s32.totalorder %s312, %s313
    %p325 = scmp.eq.s32.totalorder %s36, 1
    %p326 = por %p324, %p325
    %p328 = scmp.ne.s32.totalorder %s313, %s327
    %p329 = scmp.eq.s32.totalorder %s36, 0
    %p330 = por %p328, %p329
    %s332 = sadd.s32 %s331, 1
    %p335 = scmp.eq.s32.totalorder %s30, 1
    %p336 = scmp.ne.s32.totalorder %s331, %s333
    %p337 = scmp.eq.s32.totalorder %s30, 0
    %p338 = por %p336, %p337
    %p339 = scmp.ne.s32.totalorder %s331, %s333
    %p340 = scmp.eq.s32.totalorder %s35, 1
    %p341 = por %p339, %p340
    %p342 = scmp.ne.s32.totalorder %s333, %s334
    %p343 = scmp.eq.s32.totalorder %s35, 0
    %p344 = por %p342, %p343
    %p345 = scmp.ne.s32.totalorder %s333, %s334
    %p346 = scmp.eq.s32.totalorder %s36, 1
    %p347 = por %p345, %p346
    %p349 = scmp.ne.s32.totalorder %s334, %s348
    %p350 = scmp.eq.s32.totalorder %s36, 0
    %p351 = por %p349, %p350
    %s353 = sadd.s32 %s352, 1
    %p356 = scmp.eq.s32.totalorder %s30, 1
    %p357 = scmp.ne.s32.totalorder %s352, %s354
    %p358 = scmp.eq.s32.totalorder %s30, 0
    %p359 = por %p357, %p358
    %p360 = scmp.ne.s32.totalorder %s352, %s354
    %p361 = scmp.eq.s32.totalorder %s35, 1
    %p362 = por %p360, %p361
    %p363 = scmp.ne.s32.totalorder %s354, %s355
    %p364 = scmp.eq.s32.totalorder %s35, 0
    %p365 = por %p363, %p364
    %p366 = scmp.ne.s32.totalorder %s354, %s355
    %p367 = scmp.eq.s32.totalorder %s36, 1
    %p368 = por %p366, %p367
    %p370 = scmp.ne.s32.totalorder %s355, %s369
    %p371 = scmp.eq.s32.totalorder %s36, 0
    %p372 = por %p370, %p371
    %s374 = sadd.s32 %s373, 1
    %p377 = scmp.eq.s32.totalorder %s30, 1
    %p378 = scmp.ne.s32.totalorder %s373, %s375
    %p379 = scmp.eq.s32.totalorder %s30, 0
    %p380 = por %p378, %p379
    %p381 = scmp.ne.s32.totalorder %s373, %s375
    %p382 = scmp.eq.s32.totalorder %s35, 1
    %p383 = por %p381, %p382
    %p384 = scmp.ne.s32.totalorder %s375, %s376
    %p385 = scmp.eq.s32.totalorder %s35, 0
    %p386 = por %p384, %p385
    %p387 = scmp.ne.s32.totalorder %s375, %s376
    %p388 = scmp.eq.s32.totalorder %s36, 1
    %p389 = por %p387, %p388
    %p391 = scmp.ne.s32.totalorder %s376, %s390
    %p392 = scmp.eq.s32.totalorder %s36, 0
    %p393 = por %p391, %p392
    %s395 = sadd.s32 %s394, 1
    %p398 = scmp.eq.s32.totalorder %s30, 1
    %p399 = scmp.ne.s32.totalorder %s394, %s396
    %p400 = scmp.eq.s32.totalorder %s30, 0
    %p401 = por %p399, %p400
    %p402 = scmp.ne.s32.totalorder %s394, %s396
    %p403 = scmp.eq.s32.totalorder %s35, 1
    %p404 = por %p402, %p403
    %p405 = scmp.ne.s32.totalorder %s396, %s397
    %p406 = scmp.eq.s32.totalorder %s35, 0
    %p407 = por %p405, %p406
    %p408 = scmp.ne.s32.totalorder %s396, %s397
    %p409 = scmp.eq.s32.totalorder %s36, 1
    %p410 = por %p408, %p409
    %p412 = scmp.ne.s32.totalorder %s397, %s411
    %p413 = scmp.eq.s32.totalorder %s36, 0
    %p414 = por %p412, %p413
    %s416 = sadd.s32 %s415, 1
    %p419 = scmp.eq.s32.totalorder %s30, 1
    %p420 = scmp.ne.s32.totalorder %s415, %s417
    %p421 = scmp.eq.s32.totalorder %s30, 0
    %p422 = por %p420, %p421
    %p423 = scmp.ne.s32.totalorder %s415, %s417
    %p424 = scmp.eq.s32.totalorder %s35, 1
    %p425 = por %p423, %p424
    %p426 = scmp.ne.s32.totalorder %s417, %s418
    %p427 = scmp.eq.s32.totalorder %s35, 0
    %p428 = por %p426, %p427
    %p429 = scmp.ne.s32.totalorder %s417, %s418
    %p430 = scmp.eq.s32.totalorder %s36, 1
    %p431 = por %p429, %p430
    %p433 = scmp.ne.s32.totalorder %s418, %s432
    %p434 = scmp.eq.s32.totalorder %s36, 0
    %p435 = por %p433, %p434
    %s437 = sadd.s32 %s436, 1
    %p440 = scmp.eq.s32.totalorder %s30, 1
    %p441 = scmp.ne.s32.totalorder %s436, %s438
    %p442 = scmp.eq.s32.totalorder %s30, 0
    %p443 = por %p441, %p442
    %p444 = scmp.ne.s32.totalorder %s436, %s438
    %p445 = scmp.eq.s32.totalorder %s35, 1
    %p446 = por %p444, %p445
    %p447 = scmp.ne.s32.totalorder %s438, %s439
    %p448 = scmp.eq.s32.totalorder %s35, 0
    %p449 = por %p447, %p448
    %p450 = scmp.ne.s32.totalorder %s438, %s439
    %p451 = scmp.eq.s32.totalorder %s36, 1
    %p452 = por %p450, %p451
    %p454 = scmp.ne.s32.totalorder %s439, %s453
    %p455 = scmp.eq.s32.totalorder %s36, 0
    %p456 = por %p454, %p455
    %s458 = sadd.s32 %s457, 1
    %p461 = scmp.eq.s32.totalorder %s30, 1
    %p462 = scmp.ne.s32.totalorder %s457, %s459
    %p463 = scmp.eq.s32.totalorder %s30, 0
    %p464 = por %p462, %p463
    %p465 = scmp.ne.s32.totalorder %s457, %s459
    %p466 = scmp.eq.s32.totalorder %s35, 1
    %p467 = por %p465, %p466
    %p468 = scmp.ne.s32.totalorder %s459, %s460
    %p469 = scmp.eq.s32.totalorder %s35, 0
    %p470 = por %p468, %p469
    %p471 = scmp.ne.s32.totalorder %s459, %s460
    %p472 = scmp.eq.s32.totalorder %s36, 1
    %p473 = por %p471, %p472
    %p475 = scmp.ne.s32.totalorder %s460, %s474
    %p476 = scmp.eq.s32.totalorder %s36, 0
    %p477 = por %p475, %p476
    %s479 = sadd.s32 %s478, 1
    %p482 = scmp.eq.s32.totalorder %s30, 1
    %p483 = scmp.ne.s32.totalorder %s478, %s480
    %p484 = scmp.eq.s32.totalorder %s30, 0
    %p485 = por %p483, %p484
    %p486 = scmp.ne.s32.totalorder %s478, %s480
    %p487 = scmp.eq.s32.totalorder %s35, 1
    %p488 = por %p486, %p487
    %p489 = scmp.ne.s32.totalorder %s480, %s481
    %p490 = scmp.eq.s32.totalorder %s35, 0
    %p491 = por %p489, %p490
    %p492 = scmp.ne.s32.totalorder %s480, %s481
    %p493 = scmp.eq.s32.totalorder %s36, 1
    %p494 = por %p492, %p493
    %p496 = scmp.ne.s32.totalorder %s481, %s495
    %p497 = scmp.eq.s32.totalorder %s36, 0
    %p498 = por %p496, %p497
    %s500 = sadd.s32 %s499, 1
    %p503 = scmp.eq.s32.totalorder %s30, 1
    %p504 = scmp.ne.s32.totalorder %s499, %s501
    %p505 = scmp.eq.s32.totalorder %s30, 0
    %p506 = por %p504, %p505
    %p507 = scmp.ne.s32.totalorder %s499, %s501
    %p508 = scmp.eq.s32.totalorder %s35, 1
    %p509 = por %p507, %p508
    %p510 = scmp.ne.s32.totalorder %s501, %s502
    %p511 = scmp.eq.s32.totalorder %s35, 0
    %p512 = por %p510, %p511
    %p513 = scmp.ne.s32.totalorder %s501, %s502
    %p514 = scmp.eq.s32.totalorder %s36, 1
    %p515 = por %p513, %p514
    %p517 = scmp.ne.s32.totalorder %s502, %s516
    %p518 = scmp.eq.s32.totalorder %s36, 0
    %p519 = por %p517, %p518
    %s521 = sadd.s32 %s520, 1
    %p524 = scmp.eq.s32.totalorder %s30, 1
    %p525 = scmp.ne.s32.totalorder %s520, %s522
    %p526 = scmp.eq.s32.totalorder %s30, 0
    %p527 = por %p525, %p526
    %p528 = scmp.ne.s32.totalorder %s520, %s522
    %p529 = scmp.eq.s32.totalorder %s35, 1
    %p530 = por %p528, %p529
    %p531 = scmp.ne.s32.totalorder %s522, %s523
    %p532 = scmp.eq.s32.totalorder %s35, 0
    %p533 = por %p531, %p532
    %p534 = scmp.ne.s32.totalorder %s522, %s523
    %p535 = scmp.eq.s32.totalorder %s36, 1
    %p536 = por %p534, %p535
    %p538 = scmp.ne.s32.totalorder %s523, %s537
    %p539 = scmp.eq.s32.totalorder %s36, 0
    %p540 = por %p538, %p539
    %s542 = sadd.s32 %s541, 1
    %p545 = scmp.eq.s32.totalorder %s30, 1
    %p546 = scmp.ne.s32.totalorder %s541, %s543
    %p547 = scmp.eq.s32.totalorder %s30, 0
    %p548 = por %p546, %p547
    %p549 = scmp.ne.s32.totalorder %s541, %s543
    %p550 = scmp.eq.s32.totalorder %s35, 1
    %p551 = por %p549, %p550
    %p552 = scmp.ne.s32.totalorder %s543, %s544
    %p553 = scmp.eq.s32.totalorder %s35, 0
    %p554 = por %p552, %p553
    %p555 = scmp.ne.s32.totalorder %s543, %s544
    %p556 = scmp.eq.s32.totalorder %s36, 1
    %p557 = por %p555, %p556
    %p559 = scmp.ne.s32.totalorder %s544, %s558
    %p560 = scmp.eq.s32.totalorder %s36, 0
    %p561 = por %p559, %p560
    %s562 = ssub.s32 %s30, %s37
    %p563 = scmp.eq.s32.totalorder %s562, 0
    %s565 = sadd.s32 %s564, 1
    %s566 = scalar_select %p563, %s564, %s565
    %p569 = pneg %p563
    %p570 = scmp.eq.s32.totalorder %s30, 1
    %p571 = por %p569, %p570
    %p572 = scmp.ne.s32.totalorder %s564, %s567
    %p573 = scmp.eq.s32.totalorder %s30, 0
    %p574 = por %p572, %p573
    %p575 = scmp.ne.s32.totalorder %s564, %s567
    %p576 = scmp.eq.s32.totalorder %s35, 1
    %p577 = por %p575, %p576
    %p578 = scmp.ne.s32.totalorder %s567, %s568
    %p579 = scmp.eq.s32.totalorder %s35, 0
    %p580 = por %p578, %p579
    %p581 = scmp.ne.s32.totalorder %s567, %s568
    %p582 = scmp.eq.s32.totalorder %s36, 1
    %p583 = por %p581, %p582
    %p585 = scmp.ne.s32.totalorder %s568, %s584
    %p586 = scmp.eq.s32.totalorder %s36, 0
    %p587 = por %p585, %p586
    %p588 = scmp.le.s32.totalorder 1, %s30
    %p589 = scmp.lt.s32.totalorder %s30, 3
    %p590 = pnand %p588, %p589
    %p591 = pneg %p590
    // Predicated region
    $region9: #{back_tracing_decoder_forward.1} parent=5 // pred_check
      _
    $region10: #{back_tracing_decoder_forward.1} parent=5 // pred_check_branch
      %593 = sbr.rel (%p590) target = $region12
    $region11: #{back_tracing_decoder_forward.1} parent=5 // pred_region
      %s594 = ssub.s32 %s30, 1
      // Predicated region
      $region13: #{back_tracing_decoder_forward.1} parent=11 // pred_check
        %p595 = pneg %p155
      $region14: #{back_tracing_decoder_forward.1} parent=11 // pred_check_branch
        %597 = sbr.rel (%p595) target = $region16
      $region15: #{back_tracing_decoder_forward.1} parent=11 // pred_region
        _
      $region16: #{back_tracing_decoder_forward.1} parent=11 // pred_fallthru
        _
      // Predicated region
      $region17: #{back_tracing_decoder_forward.1} parent=11 // pred_check
        %p598 = pneg %p176
      $region18: #{back_tracing_decoder_forward.1} parent=11 // pred_check_branch
        %600 = sbr.rel (%p598) target = $region20
      $region19: #{back_tracing_decoder_forward.1} parent=11 // pred_region
        _
      $region20: #{back_tracing_decoder_forward.1} parent=11 // pred_fallthru
        _
      // Predicated region
      $region21: #{back_tracing_decoder_forward.1} parent=11 // pred_check
        %p601 = pneg %p197
      $region22: #{back_tracing_decoder_forward.1} parent=11 // pred_check_branch
        %603 = sbr.rel (%p601) target = $region24
      $region23: #{back_tracing_decoder_forward.1} parent=11 // pred_region
        _
      $region24: #{back_tracing_decoder_forward.1} parent=11 // pred_fallthru
        _
      // Predicated region
      $region25: #{back_tracing_decoder_forward.1} parent=11 // pred_check
        %p604 = pneg %p218
      $region26: #{back_tracing_decoder_forward.1} parent=11 // pred_check_branch
        %606 = sbr.rel (%p604) target = $region28
      $region27: #{back_tracing_decoder_forward.1} parent=11 // pred_region
        _
      $region28: #{back_tracing_decoder_forward.1} parent=11 // pred_fallthru
        _
      // Predicated region
      $region29: #{back_tracing_decoder_forward.1} parent=11 // pred_check
        %p607 = pneg %p239
      $region30: #{back_tracing_decoder_forward.1} parent=11 // pred_check_branch
        %609 = sbr.rel (%p607) target = $region32
      $region31: #{back_tracing_decoder_forward.1} parent=11 // pred_region
        _
      $region32: #{back_tracing_decoder_forward.1} parent=11 // pred_fallthru
        _
      // Predicated region
      $region33: #{back_tracing_decoder_forward.1} parent=11 // pred_check
        %p610 = pneg %p260
      $region34: #{back_tracing_decoder_forward.1} parent=11 // pred_check_branch
        %612 = sbr.rel (%p610) target = $region36
      $region35: #{back_tracing_decoder_forward.1} parent=11 // pred_region
        _
      $region36: #{back_tracing_decoder_forward.1} parent=11 // pred_fallthru
        _
      // Predicated region
      $region37: #{back_tracing_decoder_forward.1} parent=11 // pred_check
        %p613 = pneg %p281
      $region38: #{back_tracing_decoder_forward.1} parent=11 // pred_check_branch
        %615 = sbr.rel (%p613) target = $region40
      $region39: #{back_tracing_decoder_forward.1} parent=11 // pred_region
        _
      $region40: #{back_tracing_decoder_forward.1} parent=11 // pred_fallthru
        _
      // Predicated region
      $region41: #{back_tracing_decoder_forward.1} parent=11 // pred_check
        %p616 = pneg %p302
      $region42: #{back_tracing_decoder_forward.1} parent=11 // pred_check_branch
        %618 = sbr.rel (%p616) target = $region44
      $region43: #{back_tracing_decoder_forward.1} parent=11 // pred_region
        _
      $region44: #{back_tracing_decoder_forward.1} parent=11 // pred_fallthru
        _
      // Predicated region
      $region45: #{back_tracing_decoder_forward.1} parent=11 // pred_check
        %p619 = pneg %p323
      $region46: #{back_tracing_decoder_forward.1} parent=11 // pred_check_branch
        %621 = sbr.rel (%p619) target = $region48
      $region47: #{back_tracing_decoder_forward.1} parent=11 // pred_region
        _
      $region48: #{back_tracing_decoder_forward.1} parent=11 // pred_fallthru
        _
      // Predicated region
      $region49: #{back_tracing_decoder_forward.1} parent=11 // pred_check
        %p622 = pneg %p344
      $region50: #{back_tracing_decoder_forward.1} parent=11 // pred_check_branch
        %624 = sbr.rel (%p622) target = $region52
      $region51: #{back_tracing_decoder_forward.1} parent=11 // pred_region
        _
      $region52: #{back_tracing_decoder_forward.1} parent=11 // pred_fallthru
        _
      // Predicated region
      $region53: #{back_tracing_decoder_forward.1} parent=11 // pred_check
        %p625 = pneg %p365
      $region54: #{back_tracing_decoder_forward.1} parent=11 // pred_check_branch
        %627 = sbr.rel (%p625) target = $region56
      $region55: #{back_tracing_decoder_forward.1} parent=11 // pred_region
        _
      $region56: #{back_tracing_decoder_forward.1} parent=11 // pred_fallthru
        _
      // Predicated region
      $region57: #{back_tracing_decoder_forward.1} parent=11 // pred_check
        %p628 = pneg %p386
      $region58: #{back_tracing_decoder_forward.1} parent=11 // pred_check_branch
        %630 = sbr.rel (%p628) target = $region60
      $region59: #{back_tracing_decoder_forward.1} parent=11 // pred_region
        _
      $region60: #{back_tracing_decoder_forward.1} parent=11 // pred_fallthru
        _
      // Predicated region
      $region61: #{back_tracing_decoder_forward.1} parent=11 // pred_check
        %p631 = pneg %p407
      $region62: #{back_tracing_decoder_forward.1} parent=11 // pred_check_branch
        %633 = sbr.rel (%p631) target = $region64
      $region63: #{back_tracing_decoder_forward.1} parent=11 // pred_region
        _
      $region64: #{back_tracing_decoder_forward.1} parent=11 // pred_fallthru
        _
      // Predicated region
      $region65: #{back_tracing_decoder_forward.1} parent=11 // pred_check
        %p634 = pneg %p428
      $region66: #{back_tracing_decoder_forward.1} parent=11 // pred_check_branch
        %636 = sbr.rel (%p634) target = $region68
      $region67: #{back_tracing_decoder_forward.1} parent=11 // pred_region
        _
      $region68: #{back_tracing_decoder_forward.1} parent=11 // pred_fallthru
        _
      // Predicated region
      $region69: #{back_tracing_decoder_forward.1} parent=11 // pred_check
        %p637 = pneg %p449
      $region70: #{back_tracing_decoder_forward.1} parent=11 // pred_check_branch
        %639 = sbr.rel (%p637) target = $region72
      $region71: #{back_tracing_decoder_forward.1} parent=11 // pred_region
        _
      $region72: #{back_tracing_decoder_forward.1} parent=11 // pred_fallthru
        _
      // Predicated region
      $region73: #{back_tracing_decoder_forward.1} parent=11 // pred_check
        %p640 = pneg %p470
      $region74: #{back_tracing_decoder_forward.1} parent=11 // pred_check_branch
        %642 = sbr.rel (%p640) target = $region76
      $region75: #{back_tracing_decoder_forward.1} parent=11 // pred_region
        _
      $region76: #{back_tracing_decoder_forward.1} parent=11 // pred_fallthru
        _
      // Predicated region
      $region77: #{back_tracing_decoder_forward.1} parent=11 // pred_check
        %p643 = pneg %p491
      $region78: #{back_tracing_decoder_forward.1} parent=11 // pred_check_branch
        %645 = sbr.rel (%p643) target = $region80
      $region79: #{back_tracing_decoder_forward.1} parent=11 // pred_region
        _
      $region80: #{back_tracing_decoder_forward.1} parent=11 // pred_fallthru
        _
      // Predicated region
      $region81: #{back_tracing_decoder_forward.1} parent=11 // pred_check
        %p646 = pneg %p512
      $region82: #{back_tracing_decoder_forward.1} parent=11 // pred_check_branch
        %648 = sbr.rel (%p646) target = $region84
      $region83: #{back_tracing_decoder_forward.1} parent=11 // pred_region
        _
      $region84: #{back_tracing_decoder_forward.1} parent=11 // pred_fallthru
        _
      // Predicated region
      $region85: #{back_tracing_decoder_forward.1} parent=11 // pred_check
        %p649 = pneg %p533
      $region86: #{back_tracing_decoder_forward.1} parent=11 // pred_check_branch
        %651 = sbr.rel (%p649) target = $region88
      $region87: #{back_tracing_decoder_forward.1} parent=11 // pred_region
        _
      $region88: #{back_tracing_decoder_forward.1} parent=11 // pred_fallthru
        _
      // Predicated region
      $region89: #{back_tracing_decoder_forward.1} parent=11 // pred_check
        %p652 = pneg %p554
      $region90: #{back_tracing_decoder_forward.1} parent=11 // pred_check_branch
        %654 = sbr.rel (%p652) target = $region92
      $region91: #{back_tracing_decoder_forward.1} parent=11 // pred_region
        _
      $region92: #{back_tracing_decoder_forward.1} parent=11 // pred_fallthru
        _
    $region12: #{back_tracing_decoder_forward.1} parent=5 // pred_fallthru
      _
    %p655 = scmp.lt.s32.totalorder %s30, 2
    // Predicated region
    $region93: #{back_tracing_decoder_forward.1} parent=5 // pred_check
      %p656 = pneg %p655
    $region94: #{back_tracing_decoder_forward.1} parent=5 // pred_check_branch
      %658 = sbr.rel (%p656) target = $region96
    $region95: #{back_tracing_decoder_forward.1} parent=5 // pred_region
      // Predicated region
      $region97: #{back_tracing_decoder_forward.1} parent=95 // pred_check
        %p659 = pneg %p50
      $region98: #{back_tracing_decoder_forward.1} parent=95 // pred_check_branch
        %661 = sbr.rel (%p659) target = $region100
      $region99: #{back_tracing_decoder_forward.1} parent=95 // pred_region
        %p662 = scmp.lt.s32.totalorder %s30, 1
        %s663 = scalar_select %p662, %s30, 1
        %s664 = smul.addr %s663, 8
        %s665 = smul.addr %s664, 8
        %s666 = scalar_lea.vmem %s0, %s665
      $region100: #{back_tracing_decoder_forward.1} parent=95 // pred_fallthru
        _
      // Predicated region
      $region101: #{back_tracing_decoder_forward.1} parent=95 // pred_check
        %p667 = pneg %p76
      $region102: #{back_tracing_decoder_forward.1} parent=95 // pred_check_branch
        %669 = sbr.rel (%p667) target = $region104
      $region103: #{back_tracing_decoder_forward.1} parent=95 // pred_region
        %p670 = scmp.lt.s32.totalorder %s30, 1
        %s671 = scalar_select %p670, %s30, 1
        %s672 = smul.addr %s671, 8
        %s673 = smul.addr %s672, 8
        %s674 = scalar_lea.vmem %s1, %s673
      $region104: #{back_tracing_decoder_forward.1} parent=95 // pred_fallthru
        _
      // Predicated region
      $region105: #{back_tracing_decoder_forward.1} parent=95 // pred_check
        %p675 = pneg %p102
      $region106: #{back_tracing_decoder_forward.1} parent=95 // pred_check_branch
        %677 = sbr.rel (%p675) target = $region108
      $region107: #{back_tracing_decoder_forward.1} parent=95 // pred_region
        %p678 = scmp.lt.s32.totalorder %s30, 1
        %s679 = scalar_select %p678, %s30, 1
        %s680 = smul.addr %s679, 8
        %s681 = smul.addr %s680, 8
        %s682 = scalar_lea.vmem %s2, %s681
      $region108: #{back_tracing_decoder_forward.1} parent=95 // pred_fallthru
        _
      // Predicated region
      $region109: #{back_tracing_decoder_forward.1} parent=95 // pred_check
        %p683 = pneg %p128
      $region110: #{back_tracing_decoder_forward.1} parent=95 // pred_check_branch
        %685 = sbr.rel (%p683) target = $region112
      $region111: #{back_tracing_decoder_forward.1} parent=95 // pred_region
        %p686 = scmp.lt.s32.totalorder %s30, 1
        %s687 = scalar_select %p686, %s30, 1
        %s688 = smul.addr %s687, 8
        %s689 = smul.addr %s688, 8
        %s690 = scalar_lea.vmem %s3, %s689
      $region112: #{back_tracing_decoder_forward.1} parent=95 // pred_fallthru
        _
    $region96: #{back_tracing_decoder_forward.1} parent=5 // pred_fallthru
      _
    %p691 = scmp.le.s32.totalorder 1, %s30
    %p692 = scmp.lt.s32.totalorder %s30, 3
    %p693 = pnand %p691, %p692
    %p694 = pneg %p693
    // Predicated region
    $region113: #{back_tracing_decoder_forward.1} parent=5 // pred_check
      _
    $region114: #{back_tracing_decoder_forward.1} parent=5 // pred_check_branch
      %696 = sbr.rel (%p693) target = $region116
    $region115: #{back_tracing_decoder_forward.1} parent=5 // pred_region
      %s697 = ssub.s32 %s30, 1
      %p698 = scmp.lt.s32.totalorder %s35, 1
      %s699 = scalar_select %p698, %s35, 1
      %s700 = smul.addr %s699, 8
      %s701 = smul.addr %s700, 8
      %s702 = scalar_lea.vmem %s0, %s701
      %p703 = pneg %p56
      %p704 = pneg %p53
      %p705 = scmp.lt.s32.totalorder %s35, 1
      %s706 = scalar_select %p705, %s35, 1
      %s707 = smul.addr %s706, 8
      %s708 = smul.addr %s707, 8
      %s709 = scalar_lea.vmem %s1, %s708
      %p710 = pneg %p82
      %p711 = pneg %p79
      %p712 = scmp.lt.s32.totalorder %s35, 1
      %s713 = scalar_select %p712, %s35, 1
      %s714 = smul.addr %s713, 8
      %s715 = smul.addr %s714, 8
      %s716 = scalar_lea.vmem %s2, %s715
      %p717 = pneg %p108
      %p718 = pneg %p105
      %p719 = scmp.lt.s32.totalorder %s35, 1
      %s720 = scalar_select %p719, %s35, 1
      %s721 = smul.addr %s720, 8
      %s722 = smul.addr %s721, 8
      %s723 = scalar_lea.vmem %s3, %s722
      %p724 = pneg %p134
      %p725 = pneg %p131
      %p726 = pneg %p155
      %p727 = pneg %p152
      %p728 = pneg %p176
      %p729 = pneg %p173
      %p730 = pneg %p197
      %p731 = pneg %p194
      %p732 = pneg %p218
      %p733 = pneg %p215
      %p734 = pneg %p239
      %p735 = pneg %p236
      %p736 = pneg %p260
      %p737 = pneg %p257
      %p738 = pneg %p281
      %p739 = pneg %p278
      %p740 = pneg %p302
      %p741 = pneg %p299
      %p742 = pneg %p323
      %p743 = pneg %p320
      %p744 = pneg %p344
      %p745 = pneg %p341
      %p746 = pneg %p365
      %p747 = pneg %p362
      %p748 = pneg %p386
      %p749 = pneg %p383
      %p750 = pneg %p407
      %p751 = pneg %p404
      %p752 = pneg %p428
      %p753 = pneg %p425
      %p754 = pneg %p449
      %p755 = pneg %p446
      %p756 = pneg %p470
      %p757 = pneg %p467
      %p758 = pneg %p491
      %p759 = pneg %p488
      %p760 = pneg %p512
      %p761 = pneg %p509
      %p762 = pneg %p533
      %p763 = pneg %p530
      %p764 = pneg %p554
      %p765 = pneg %p551
      %p766 = pneg %p580
      %p767 = pneg %p577
      %p768 = scmp.lt.s32.totalorder %s35, 1
      %s769 = scalar_select %p768, %s35, 1
      %s770 = smul.addr %s769, 8
      %s771 = smul.addr %s770, 8
      %s772 = scalar_lea.vmem %s24, %s771
      %p773 = scmp.lt.s32.totalorder %s35, 1
      %s774 = scalar_select %p773, %s35, 1
      %s775 = smul.addr %s774, 8
      %s776 = smul.addr %s775, 8
      %s777 = scalar_lea.vmem %s0, %s776
      %p778 = scmp.lt.s32.totalorder %s35, 1
      %s779 = scalar_select %p778, %s35, 1
      %s780 = smul.addr %s779, 8
      %s781 = smul.addr %s780, 8
      %s782 = scalar_lea.vmem %s1, %s781
      %p783 = scmp.lt.s32.totalorder %s35, 1
      %s784 = scalar_select %p783, %s35, 1
      %s785 = smul.addr %s784, 8
      %s786 = smul.addr %s785, 8
      %s787 = scalar_lea.vmem %s2, %s786
      %p788 = scmp.lt.s32.totalorder %s35, 1
      %s789 = scalar_select %p788, %s35, 1
      %s790 = smul.addr %s789, 8
      %s791 = smul.addr %s790, 8
      %s792 = scalar_lea.vmem %s3, %s791
      %p793 = scmp.lt.s32.totalorder %s35, 1
      %s794 = scalar_select %p793, %s35, 1
      %s795 = smul.addr %s794, 8
      %s796 = smul.addr %s795, 8
      %s797 = scalar_lea.vmem %s24, %s796
      %v799 = vld [vmem:[%s777] sm:$0xff]
      %v800 = vld [vmem:[%s777 + $0x8] sm:$0xff]
      %v801 = vld [vmem:[%s777 + $0x10] sm:$0xff]
      %v802 = vld [vmem:[%s777 + $0x18] sm:$0xff]
      %v803 = vld [vmem:[%s777 + $0x20] sm:$0xff]
      %v804 = vld [vmem:[%s777 + $0x28] sm:$0xff]
      %v805 = vld [vmem:[%s777 + $0x30] sm:$0xff]
      %v806 = vld [vmem:[%s777 + $0x38] sm:$0xff]
      %v807 = vld [vmem:[%s782] sm:$0xff]
      %v808 = vld [vmem:[%s782 + $0x8] sm:$0xff]
      %v809 = vld [vmem:[%s782 + $0x10] sm:$0xff]
      %v810 = vld [vmem:[%s782 + $0x18] sm:$0xff]
      %v811 = vld [vmem:[%s782 + $0x20] sm:$0xff]
      %v812 = vld [vmem:[%s782 + $0x28] sm:$0xff]
      %v813 = vld [vmem:[%s782 + $0x30] sm:$0xff]
      %v814 = vld [vmem:[%s782 + $0x38] sm:$0xff]
      %v815 = vld [vmem:[%s787] sm:$0xff]
      %v816 = vld [vmem:[%s787 + $0x8] sm:$0xff]
      %v817 = vld [vmem:[%s787 + $0x10] sm:$0xff]
      %v818 = vld [vmem:[%s787 + $0x18] sm:$0xff]
      %v819 = vld [vmem:[%s787 + $0x20] sm:$0xff]
      %v820 = vld [vmem:[%s787 + $0x28] sm:$0xff]
      %v821 = vld [vmem:[%s787 + $0x30] sm:$0xff]
      %v822 = vld [vmem:[%s787 + $0x38] sm:$0xff]
      %v823 = vld [vmem:[%s792] sm:$0xff]
      %v824 = vld [vmem:[%s792 + $0x8] sm:$0xff]
      %v825 = vld [vmem:[%s792 + $0x10] sm:$0xff]
      %v826 = vld [vmem:[%s792 + $0x18] sm:$0xff]
      %v827 = vld [vmem:[%s792 + $0x20] sm:$0xff]
      %v828 = vld [vmem:[%s792 + $0x28] sm:$0xff]
      %v829 = vld [vmem:[%s792 + $0x30] sm:$0xff]
      %v830 = vld [vmem:[%s792 + $0x38] sm:$0xff]
      %v831 = vld [vmem:[%s4] sm:$0xf]
      %v832 = vld [vmem:[%s4 + $0x4] sm:$0xf]
      %v833 = vld [vmem:[%s4 + $0x8] sm:$0xf]
      %v834 = vld [vmem:[%s4 + $0xc] sm:$0xf]
      %v835 = vld [vmem:[%s5] sm:$0x1]
      %v836 = vld [vmem:[%s6] sm:$0xf]
      %v837 = vld [vmem:[%s6 + $0x4] sm:$0xf]
      %v838 = vld [vmem:[%s6 + $0x8] sm:$0xf]
      %v839 = vld [vmem:[%s6 + $0xc] sm:$0xf]
      %v840 = vld [vmem:[%s7] sm:$0x1]
      %v841 = vld [vmem:[%s8] sm:$0xf]
      %v842 = vld [vmem:[%s8 + $0x4] sm:$0xf]
      %v843 = vld [vmem:[%s8 + $0x8] sm:$0xf]
      %v844 = vld [vmem:[%s8 + $0xc] sm:$0xf]
      %v845 = vld [vmem:[%s9] sm:$0x1]
      %v846 = vld [vmem:[%s10] sm:$0x1]
      %v847 = vld [vmem:[%s11] sm:$0x1]
      %v848 = vld [vmem:[%s12] sm:$0xff]
      %v849 = vld [vmem:[%s12 + $0x8] sm:$0xff]
      %v850 = vld [vmem:[%s12 + $0x10] sm:$0xff]
      %v851 = vld [vmem:[%s12 + $0x18] sm:$0xff]
      %v852 = vld [vmem:[%s13] sm:$0x1]
      %v853 = vld [vmem:[%s14] sm:$0xff]
      %v854 = vld [vmem:[%s14 + $0x8] sm:$0xff]
      %v855 = vld [vmem:[%s14 + $0x10] sm:$0xff]
      %v856 = vld [vmem:[%s14 + $0x18] sm:$0xff]
      %v857 = vld [vmem:[%s15] sm:$0x1]
      %v858 = vld [vmem:[%s16] sm:$0x1]
      %v859 = vld [vmem:[%s17] sm:$0x1]
      %v860 = vld [vmem:[%s18] sm:$0xf]
      %v861 = vld [vmem:[%s18 + $0x4] sm:$0xf]
      %v862 = vld [vmem:[%s18 + $0x8] sm:$0xf]
      %v863 = vld [vmem:[%s18 + $0xc] sm:$0xf]
      %v864 = vld [vmem:[%s19] sm:$0x1]
      %v865 = vld [vmem:[%s20] sm:$0xf]
      %v866 = vld [vmem:[%s20 + $0x4] sm:$0xf]
      %v867 = vld [vmem:[%s20 + $0x8] sm:$0xf]
      %v868 = vld [vmem:[%s20 + $0xc] sm:$0xf]
      %v869 = vld [vmem:[%s20 + $0x10] sm:$0xf]
      %v870 = vld [vmem:[%s20 + $0x14] sm:$0xf]
      %v871 = vld [vmem:[%s20 + $0x18] sm:$0xf]
      %v872 = vld [vmem:[%s20 + $0x1c] sm:$0xf]
      %v873 = vld [vmem:[%s21] sm:$0x1]
      %v874 = vld [vmem:[%s22] sm:$0x1]
      %v875 = vld [vmem:[%s23] sm:$0x1]
      %v877 = vperm.slane %v852, 0
      %vm879 = vcmask 261120
      %v881 = vsel %vm879, %v823, 0
      %v884 = vsel %vm879, %v824, 0
      %v887 = vsel %vm879, %v825, 0
      %v890 = vsel %vm879, %v826, 0
      %v893 = vsel %vm879, %v827, 0
      %v896 = vsel %vm879, %v828, 0
      %v899 = vsel %vm879, %v829, 0
      %v902 = vsel %vm879, %v830, 0
      %904 = vmatpush.msra.mxu0 0.0
      %905 = vmatpush.msra.mxu0 0.0
      %906 = vmatpush.msra.mxu0 0.0
      %907 = vmatpush.msra.mxu0 0.0
      %908 = vmatpush.msra.mxu0 0.0
      %909 = vmatpush.msra.mxu0 0.0
      %910 = vmatpush.msra.mxu0 0.0
      %911 = vmatpush.msra.mxu0 0.0
      %912 = vmatpush.msra.mxu0 0.0
      %913 = vmatpush.msra.mxu0 0.0
      %914 = vmatpush.msra.mxu0 0.0
      %915 = vmatpush.msra.mxu0 0.0
      %916 = vmatpush.msra.mxu0 %v851
      %917 = vmatpush.msra.mxu0 %v850
      %918 = vmatpush.msra.mxu0 %v849
      %919 = vmatpush.msra.mxu0 %v848
      %920 = vmatmul.f32.gmra.mxu0 %v881
      %v921 = vpop.f32.mrf.mxu0
      %v922 = vadd.f32 %v877, %v921
      %923 = vmatmul.f32.gmra.mxu0 %v884
      %v924 = vpop.f32.mrf.mxu0
      %v925 = vadd.f32 %v877, %v924
      %926 = vmatmul.f32.gmra.mxu0 %v887
      %v927 = vpop.f32.mrf.mxu0
      %v928 = vadd.f32 %v877, %v927
      %929 = vmatmul.f32.gmra.mxu0 %v890
      %v930 = vpop.f32.mrf.mxu0
      %v931 = vadd.f32 %v877, %v930
      %932 = vmatmul.f32.gmra.mxu0 %v893
      %v933 = vpop.f32.mrf.mxu0
      %v934 = vadd.f32 %v877, %v933
      %935 = vmatmul.f32.gmra.mxu0 %v896
      %v936 = vpop.f32.mrf.mxu0
      %v937 = vadd.f32 %v877, %v936
      %938 = vmatmul.f32.gmra.mxu0 %v899
      %v939 = vpop.f32.mrf.mxu0
      %v940 = vadd.f32 %v877, %v939
      %941 = vmatmul.f32.gmra.mxu0 %v902
      %v942 = vpop.f32.mrf.mxu0
      %v943 = vadd.f32 %v877, %v942
      %944 = vdwg.mxu0
      %vm945 = vcmask 523264
      %v947 = vsel %vm945, %v815, 0
      %v950 = vsel %vm945, %v816, 0
      %v953 = vsel %vm945, %v817, 0
      %v956 = vsel %vm945, %v818, 0
      %v959 = vsel %vm945, %v819, 0
      %v962 = vsel %vm945, %v820, 0
      %v965 = vsel %vm945, %v821, 0
      %v968 = vsel %vm945, %v822, 0
      %970 = vmatpush.msra.mxu0 0.0
      %971 = vmatpush.msra.mxu0 0.0
      %972 = vmatpush.msra.mxu0 0.0
      %973 = vmatpush.msra.mxu0 0.0
      %974 = vmatpush.msra.mxu0 0.0
      %975 = vmatpush.msra.mxu0 0.0
      %976 = vmatpush.msra.mxu0 0.0
      %977 = vmatpush.msra.mxu0 0.0
      %978 = vmatpush.msra.mxu0 %v943
      %979 = vmatpush.msra.mxu0 %v940
      %980 = vmatpush.msra.mxu0 %v937
      %981 = vmatpush.msra.mxu0 %v934
      %982 = vmatpush.msra.mxu0 %v931
      %983 = vmatpush.msra.mxu0 %v928
      %984 = vmatpush.msra.mxu0 %v925
      %985 = vmatpush.msra.mxu0 %v922
      %986 = vmatmul.f32.gmra.mxu0 %v947
      %v987 = vpop.f32.mrf.mxu0
      %v988 = vadd.f32 0.0, %v987
      %989 = vmatmul.f32.gmra.mxu0 %v950
      %v990 = vpop.f32.mrf.mxu0
      %v991 = vadd.f32 0.0, %v990
      %992 = vmatmul.f32.gmra.mxu0 %v953
      %v993 = vpop.f32.mrf.mxu0
      %v994 = vadd.f32 0.0, %v993
      %995 = vmatmul.f32.gmra.mxu0 %v956
      %v996 = vpop.f32.mrf.mxu0
      %v997 = vadd.f32 0.0, %v996
      %998 = vmatmul.f32.gmra.mxu0 %v959
      %v999 = vpop.f32.mrf.mxu0
      %v1000 = vadd.f32 0.0, %v999
      %1001 = vmatmul.f32.gmra.mxu0 %v962
      %v1002 = vpop.f32.mrf.mxu0
      %v1003 = vadd.f32 0.0, %v1002
      %1004 = vmatmul.f32.gmra.mxu0 %v965
      %v1005 = vpop.f32.mrf.mxu0
      %v1006 = vadd.f32 0.0, %v1005
      %1007 = vmatmul.f32.gmra.mxu0 %v968
      %v1008 = vpop.f32.mrf.mxu0
      %v1009 = vadd.f32 0.0, %v1008
      %1010 = vdwg.mxu0
      %v1012 = vperm.slane %v857, 0
      %v1015 = vsel %vm879, %v988, 0
      %v1018 = vsel %vm879, %v991, 0
      %v1021 = vsel %vm879, %v994, 0
      %v1024 = vsel %vm879, %v997, 0
      %v1027 = vsel %vm879, %v1000, 0
      %v1030 = vsel %vm879, %v1003, 0
      %v1033 = vsel %vm879, %v1006, 0
      %v1036 = vsel %vm879, %v1009, 0
      %1038 = vmatpush.msra.mxu0 0.0
      %1039 = vmatpush.msra.mxu0 0.0
      %1040 = vmatpush.msra.mxu0 0.0
      %1041 = vmatpush.msra.mxu0 0.0
      %1042 = vmatpush.msra.mxu0 0.0
      %1043 = vmatpush.msra.mxu0 0.0
      %1044 = vmatpush.msra.mxu0 0.0
      %1045 = vmatpush.msra.mxu0 0.0
      %1046 = vmatpush.msra.mxu0 0.0
      %1047 = vmatpush.msra.mxu0 0.0
      %1048 = vmatpush.msra.mxu0 0.0
      %1049 = vmatpush.msra.mxu0 0.0
      %1050 = vmatpush.msra.mxu0 %v856
      %1051 = vmatpush.msra.mxu0 %v855
      %1052 = vmatpush.msra.mxu0 %v854
      %1053 = vmatpush.msra.mxu0 %v853
      %1054 = vmatmul.f32.gmra.mxu0 %v1015
      %v1055 = vpop.f32.mrf.mxu0
      %v1056 = vadd.f32 %v1012, %v1055
      %1057 = vmatmul.f32.gmra.mxu0 %v1018
      %v1058 = vpop.f32.mrf.mxu0
      %v1059 = vadd.f32 %v1012, %v1058
      %1060 = vmatmul.f32.gmra.mxu0 %v1021
      %v1061 = vpop.f32.mrf.mxu0
      %v1062 = vadd.f32 %v1012, %v1061
      %1063 = vmatmul.f32.gmra.mxu0 %v1024
      %v1064 = vpop.f32.mrf.mxu0
      %v1065 = vadd.f32 %v1012, %v1064
      %1066 = vmatmul.f32.gmra.mxu0 %v1027
      %v1067 = vpop.f32.mrf.mxu0
      %v1068 = vadd.f32 %v1012, %v1067
      %1069 = vmatmul.f32.gmra.mxu0 %v1030
      %v1070 = vpop.f32.mrf.mxu0
      %v1071 = vadd.f32 %v1012, %v1070
      %1072 = vmatmul.f32.gmra.mxu0 %v1033
      %v1073 = vpop.f32.mrf.mxu0
      %v1074 = vadd.f32 %v1012, %v1073
      %1075 = vmatmul.f32.gmra.mxu0 %v1036
      %v1076 = vpop.f32.mrf.mxu0
      %v1077 = vadd.f32 %v1012, %v1076
      %1078 = vdwg.mxu0
      %v1079 = vadd.f32 %v799, %v807
      %v1080 = vadd.f32 %v800, %v808
      %v1081 = vadd.f32 %v801, %v809
      %v1082 = vadd.f32 %v802, %v810
      %v1083 = vadd.f32 %v803, %v811
      %v1084 = vadd.f32 %v804, %v812
      %v1085 = vadd.f32 %v805, %v813
      %v1086 = vadd.f32 %v806, %v814
      %v1087 = vpack.c.bf16 %v1080, %v1079
      %v1088 = vpack.c.bf16 %v1082, %v1081
      %v1089 = vpack.c.bf16 %v1084, %v1083
      %v1090 = vpack.c.bf16 %v1086, %v1085
      %v1092 = vperm.slane %v835, 0
      %v1098 = vunpack.c.l.b16 %v831
      %v1099 = vunpack.c.l.b16 %v832
      %v1100 = vunpack.c.l.b16 %v833
      %v1101 = vunpack.c.l.b16 %v834
      %v1102 = vpack.c.b16 %v1099, %v1098
      %v1103 = vpack.c.b16 %v1101, %v1100
      %v1107 = vsel %vm879, %v1087, 0
      %v1110 = vsel %vm879, %v1088, 0
      %v1113 = vsel %vm879, %v1089, 0
      %v1116 = vsel %vm879, %v1090, 0
      %1118 = vmatpush.bf16.msra.mxu0 0
      %1119 = vmatpush.bf16.msra.mxu0 0
      %1120 = vmatpush.bf16.msra.mxu0 0
      %1121 = vmatpush.bf16.msra.mxu0 0
      %1122 = vmatpush.bf16.msra.mxu0 0
      %1123 = vmatpush.bf16.msra.mxu0 0
      %1124 = vmatpush.bf16.msra.mxu0 %v1103
      %1125 = vmatpush.bf16.msra.mxu0 %v1102
      %1126 = vmatmul.bf16.gmra.mxu0 %v1107
      %v1127 = vpop.f32.mrf.mxu0
      %v1128 = vadd.f32 %v1092, %v1127
      %v1129 = vpop.f32.mrf.mxu0
      %v1130 = vadd.f32 %v1092, %v1129
      %1131 = vmatmul.bf16.gmra.mxu0 %v1110
      %v1132 = vpop.f32.mrf.mxu0
      %v1133 = vadd.f32 %v1092, %v1132
      %v1134 = vpop.f32.mrf.mxu0
      %v1135 = vadd.f32 %v1092, %v1134
      %1136 = vmatmul.bf16.gmra.mxu0 %v1113
      %v1137 = vpop.f32.mrf.mxu0
      %v1138 = vadd.f32 %v1092, %v1137
      %v1139 = vpop.f32.mrf.mxu0
      %v1140 = vadd.f32 %v1092, %v1139
      %1141 = vmatmul.bf16.gmra.mxu0 %v1116
      %v1142 = vpop.f32.mrf.mxu0
      %v1143 = vadd.f32 %v1092, %v1142
      %v1144 = vpop.f32.mrf.mxu0
      %v1145 = vadd.f32 %v1092, %v1144
      %1146 = vdwg.mxu0
      %v1147 = vpack.c.bf16 %v800, %v799
      %v1148 = vpack.c.bf16 %v802, %v801
      %v1149 = vpack.c.bf16 %v804, %v803
      %v1150 = vpack.c.bf16 %v806, %v805
      %v1152 = vperm.slane %v840, 0
      %v1158 = vunpack.c.l.b16 %v836
      %v1159 = vunpack.c.l.b16 %v837
      %v1160 = vunpack.c.l.b16 %v838
      %v1161 = vunpack.c.l.b16 %v839
      %v1162 = vpack.c.b16 %v1159, %v1158
      %v1163 = vpack.c.b16 %v1161, %v1160
      %v1167 = vsel %vm879, %v1147, 0
      %v1170 = vsel %vm879, %v1148, 0
      %v1173 = vsel %vm879, %v1149, 0
      %v1176 = vsel %vm879, %v1150, 0
      %1178 = vmatpush.bf16.msra.mxu0 0
      %1179 = vmatpush.bf16.msra.mxu0 0
      %1180 = vmatpush.bf16.msra.mxu0 0
      %1181 = vmatpush.bf16.msra.mxu0 0
      %1182 = vmatpush.bf16.msra.mxu0 0
      %1183 = vmatpush.bf16.msra.mxu0 0
      %1184 = vmatpush.bf16.msra.mxu0 %v1163
      %1185 = vmatpush.bf16.msra.mxu0 %v1162
      %1186 = vmatmul.bf16.gmra.mxu0 %v1167
      %v1187 = vpop.f32.mrf.mxu0
      %v1188 = vadd.f32 %v1152, %v1187
      %v1189 = vpop.f32.mrf.mxu0
      %v1190 = vadd.f32 %v1152, %v1189
      %1191 = vmatmul.bf16.gmra.mxu0 %v1170
      %v1192 = vpop.f32.mrf.mxu0
      %v1193 = vadd.f32 %v1152, %v1192
      %v1194 = vpop.f32.mrf.mxu0
      %v1195 = vadd.f32 %v1152, %v1194
      %1196 = vmatmul.bf16.gmra.mxu0 %v1173
      %v1197 = vpop.f32.mrf.mxu0
      %v1198 = vadd.f32 %v1152, %v1197
      %v1199 = vpop.f32.mrf.mxu0
      %v1200 = vadd.f32 %v1152, %v1199
      %1201 = vmatmul.bf16.gmra.mxu0 %v1176
      %v1202 = vpop.f32.mrf.mxu0
      %v1203 = vadd.f32 %v1152, %v1202
      %v1204 = vpop.f32.mrf.mxu0
      %v1205 = vadd.f32 %v1152, %v1204
      %1206 = vdwg.mxu0
      %v1207 = vpack.c.bf16 %v1130, %v1128
      %v1208 = vpack.c.bf16 %v1135, %v1133
      %v1209 = vpack.c.bf16 %v1140, %v1138
      %v1210 = vpack.c.bf16 %v1145, %v1143
      %v1211 = vpack.c.bf16 %v1190, %v1188
      %v1212 = vpack.c.bf16 %v1195, %v1193
      %v1213 = vpack.c.bf16 %v1200, %v1198
      %v1214 = vpack.c.bf16 %v1205, %v1203
      %1219 = vrot.lane.b32.xlu0 %v1207, 96
      %v1220 = vpop.permute.xlu0 %1219
      %1221 = vrot.lane.b32.xlu0 %v1208, 96
      %v1222 = vpop.permute.xlu0 %1221
      %1223 = vrot.lane.b32.xlu0 %v1209, 96
      %v1224 = vpop.permute.xlu0 %1223
      %1225 = vrot.lane.b32.xlu0 %v1210, 96
      %v1226 = vpop.permute.xlu0 %1225
      %vm1227 = vcmask 64512
      %v1229 = vsel %vm1227, %v1207, 0
      %v1232 = vsel %vm1227, %v1208, 0
      %v1235 = vsel %vm1227, %v1209, 0
      %v1238 = vsel %vm1227, %v1210, 0
      %v1241 = vsel %vm1227, %v1220, 0
      %v1244 = vsel %vm1227, %v1222, 0
      %v1247 = vsel %vm1227, %v1224, 0
      %v1250 = vsel %vm1227, %v1226, 0
      %1252 = vmatpush.bf16.xpose.msra.mxu0 0
      %1253 = vmatpush.bf16.xpose.msra.mxu0 0
      %1254 = vmatpush.bf16.xpose.msra.mxu0 0
      %1255 = vmatpush.bf16.xpose.msra.mxu0 0
      %1256 = vmatpush.bf16.xpose.msra.mxu0 %v1250
      %1257 = vmatpush.bf16.xpose.msra.mxu0 %v1247
      %1258 = vmatpush.bf16.xpose.msra.mxu0 %v1244
      %1259 = vmatpush.bf16.xpose.msra.mxu0 %v1241
      %1260 = vmatmul.bf16.gmra.mxu0 %v1229
      %v1261 = vpop.f32.mrf.mxu0
      %v1262 = vadd.f32 0.0, %v1261
      %v1263 = vpop.f32.mrf.mxu0
      %v1264 = vadd.f32 0.0, %v1263
      %1265 = vmatmul.bf16.gmra.mxu0 %v1232
      %v1266 = vpop.f32.mrf.mxu0
      %v1267 = vadd.f32 0.0, %v1266
      %v1268 = vpop.f32.mrf.mxu0
      %v1269 = vadd.f32 0.0, %v1268
      %1270 = vmatmul.bf16.gmra.mxu0 %v1235
      %v1271 = vpop.f32.mrf.mxu0
      %v1272 = vadd.f32 0.0, %v1271
      %v1273 = vpop.f32.mrf.mxu0
      %v1274 = vadd.f32 0.0, %v1273
      %1275 = vmatmul.bf16.gmra.mxu0 %v1238
      %v1276 = vpop.f32.mrf.mxu0
      %v1277 = vadd.f32 0.0, %v1276
      %v1278 = vpop.f32.mrf.mxu0
      %v1279 = vadd.f32 0.0, %v1278
      %1280 = vdwg.mxu0
      %v1281 = vsel %vm945, %v1262, -inf
      %1282 = vmax.xlane.f32.xlu0 %v1281
      %v1283 = vpop.xlane.xlu0 %1282
      %v1284 = vsel %vm945, %v1264, -inf
      %1285 = vmax.xlane.f32.xlu0 %v1284
      %v1286 = vpop.xlane.xlu0 %1285
      %v1287 = vsel %vm945, %v1267, -inf
      %1288 = vmax.xlane.f32.xlu0 %v1287
      %v1289 = vpop.xlane.xlu0 %1288
      %v1290 = vsel %vm945, %v1269, -inf
      %1291 = vmax.xlane.f32.xlu0 %v1290
      %v1292 = vpop.xlane.xlu0 %1291
      %v1293 = vsel %vm945, %v1272, -inf
      %1294 = vmax.xlane.f32.xlu0 %v1293
      %v1295 = vpop.xlane.xlu0 %1294
      %v1296 = vsel %vm945, %v1274, -inf
      %1297 = vmax.xlane.f32.xlu0 %v1296
      %v1298 = vpop.xlane.xlu0 %1297
      %v1299 = vsel %vm945, %v1277, -inf
      %1300 = vmax.xlane.f32.xlu0 %v1299
      %v1301 = vpop.xlane.xlu0 %1300
      %v1302 = vsel %vm945, %v1279, -inf
      %1303 = vmax.xlane.f32.xlu0 %v1302
      %v1304 = vpop.xlane.xlu0 %1303
      %v1305 = vsub.f32 %v1262, %v1283
      %v1306 = vsub.f32 %v1264, %v1286
      %v1307 = vsub.f32 %v1267, %v1289
      %v1308 = vsub.f32 %v1269, %v1292
      %v1309 = vsub.f32 %v1272, %v1295
      %v1310 = vsub.f32 %v1274, %v1298
      %v1311 = vsub.f32 %v1277, %v1301
      %v1312 = vsub.f32 %v1279, %v1304
      %v1313 = vmul.f32 %v1305, 1.442695
      %v1314 = vpow.pop %v1313
      %v1315 = vmul.f32 %v1306, 1.442695
      %v1316 = vpow.pop %v1315
      %v1317 = vmul.f32 %v1307, 1.442695
      %v1318 = vpow.pop %v1317
      %v1319 = vmul.f32 %v1308, 1.442695
      %v1320 = vpow.pop %v1319
      %v1321 = vmul.f32 %v1309, 1.442695
      %v1322 = vpow.pop %v1321
      %v1323 = vmul.f32 %v1310, 1.442695
      %v1324 = vpow.pop %v1323
      %v1325 = vmul.f32 %v1311, 1.442695
      %v1326 = vpow.pop %v1325
      %v1327 = vmul.f32 %v1312, 1.442695
      %v1328 = vpow.pop %v1327
      %v1329 = vsel %vm945, %v1314, 0.0
      %1330 = vadd.xlane.f32.xlu0 %v1329
      %v1331 = vpop.xlane.xlu0 %1330
      %v1332 = vsel %vm945, %v1316, 0.0
      %1333 = vadd.xlane.f32.xlu0 %v1332
      %v1334 = vpop.xlane.xlu0 %1333
      %v1335 = vsel %vm945, %v1318, 0.0
      %1336 = vadd.xlane.f32.xlu0 %v1335
      %v1337 = vpop.xlane.xlu0 %1336
      %v1338 = vsel %vm945, %v1320, 0.0
      %1339 = vadd.xlane.f32.xlu0 %v1338
      %v1340 = vpop.xlane.xlu0 %1339
      %v1341 = vsel %vm945, %v1322, 0.0
      %1342 = vadd.xlane.f32.xlu0 %v1341
      %v1343 = vpop.xlane.xlu0 %1342
      %v1344 = vsel %vm945, %v1324, 0.0
      %1345 = vadd.xlane.f32.xlu0 %v1344
      %v1346 = vpop.xlane.xlu0 %1345
      %v1347 = vsel %vm945, %v1326, 0.0
      %1348 = vadd.xlane.f32.xlu0 %v1347
      %v1349 = vpop.xlane.xlu0 %1348
      %v1350 = vsel %vm945, %v1328, 0.0
      %1351 = vadd.xlane.f32.xlu0 %v1350
      %v1352 = vpop.xlane.xlu0 %1351
      %v1353 = vpack.c.bf16 %v1316, %v1314
      %v1354 = vpack.c.bf16 %v1320, %v1318
      %v1355 = vpack.c.bf16 %v1324, %v1322
      %v1356 = vpack.c.bf16 %v1328, %v1326
      %v1358 = vsel %vm945, %v1353, 0
      %v1361 = vsel %vm945, %v1354, 0
      %v1364 = vsel %vm945, %v1355, 0
      %v1367 = vsel %vm945, %v1356, 0
      %1369 = vmatpush.bf16.msra.mxu0 0
      %1370 = vmatpush.bf16.msra.mxu0 0
      %1371 = vmatpush.bf16.msra.mxu0 0
      %1372 = vmatpush.bf16.msra.mxu0 0
      %1373 = vmatpush.bf16.msra.mxu0 %v1214
      %1374 = vmatpush.bf16.msra.mxu0 %v1213
      %1375 = vmatpush.bf16.msra.mxu0 %v1212
      %1376 = vmatpush.bf16.msra.mxu0 %v1211
      %1377 = vmatmul.bf16.gmra.mxu0 %v1358
      %v1378 = vpop.f32.mrf.mxu0
      %v1379 = vadd.f32 0.0, %v1378
      %v1380 = vpop.f32.mrf.mxu0
      %v1381 = vadd.f32 0.0, %v1380
      %1382 = vmatmul.bf16.gmra.mxu0 %v1361
      %v1383 = vpop.f32.mrf.mxu0
      %v1384 = vadd.f32 0.0, %v1383
      %v1385 = vpop.f32.mrf.mxu0
      %v1386 = vadd.f32 0.0, %v1385
      %1387 = vmatmul.bf16.gmra.mxu0 %v1364
      %v1388 = vpop.f32.mrf.mxu0
      %v1389 = vadd.f32 0.0, %v1388
      %v1390 = vpop.f32.mrf.mxu0
      %v1391 = vadd.f32 0.0, %v1390
      %1392 = vmatmul.bf16.gmra.mxu0 %v1367
      %v1393 = vpop.f32.mrf.mxu0
      %v1394 = vadd.f32 0.0, %v1393
      %v1395 = vpop.f32.mrf.mxu0
      %v1396 = vadd.f32 0.0, %v1395
      %1397 = vdwg.mxu0
      %v1398 = vrcp.pop %v1331
      %v1399 = vrcp.pop %v1334
      %v1400 = vrcp.pop %v1337
      %v1401 = vrcp.pop %v1340
      %v1402 = vrcp.pop %v1343
      %v1403 = vrcp.pop %v1346
      %v1404 = vrcp.pop %v1349
      %v1405 = vrcp.pop %v1352
      %v1406 = vmul.f32 %v1379, %v1398
      %v1407 = vmul.f32 %v1381, %v1399
      %v1408 = vmul.f32 %v1384, %v1400
      %v1409 = vmul.f32 %v1386, %v1401
      %v1410 = vmul.f32 %v1389, %v1402
      %v1411 = vmul.f32 %v1391, %v1403
      %v1412 = vmul.f32 %v1394, %v1404
      %v1413 = vmul.f32 %v1396, %v1405
      %1414 = vrot.lane.b32.xlu0 %v1207, 120
      %v1415 = vpop.permute.xlu0 %1414
      %1416 = vrot.lane.b32.xlu0 %v1208, 120
      %v1417 = vpop.permute.xlu0 %1416
      %1418 = vrot.lane.b32.xlu0 %v1209, 120
      %v1419 = vpop.permute.xlu0 %1418
      %1420 = vrot.lane.b32.xlu0 %v1210, 120
      %v1421 = vpop.permute.xlu0 %1420
      %1422 = vrot.lane.b32.xlu0 %v1207, 88
      %v1423 = vpop.permute.xlu0 %1422
      %1424 = vrot.lane.b32.xlu0 %v1208, 88
      %v1425 = vpop.permute.xlu0 %1424
      %1426 = vrot.lane.b32.xlu0 %v1209, 88
      %v1427 = vpop.permute.xlu0 %1426
      %1428 = vrot.lane.b32.xlu0 %v1210, 88
      %v1429 = vpop.permute.xlu0 %1428
      %v1431 = vsel %vm1227, %v1415, 0
      %v1434 = vsel %vm1227, %v1417, 0
      %v1437 = vsel %vm1227, %v1419, 0
      %v1440 = vsel %vm1227, %v1421, 0
      %v1443 = vsel %vm1227, %v1423, 0
      %v1446 = vsel %vm1227, %v1425, 0
      %v1449 = vsel %vm1227, %v1427, 0
      %v1452 = vsel %vm1227, %v1429, 0
      %1454 = vmatpush.bf16.xpose.msra.mxu0 0
      %1455 = vmatpush.bf16.xpose.msra.mxu0 0
      %1456 = vmatpush.bf16.xpose.msra.mxu0 0
      %1457 = vmatpush.bf16.xpose.msra.mxu0 0
      %1458 = vmatpush.bf16.xpose.msra.mxu0 %v1452
      %1459 = vmatpush.bf16.xpose.msra.mxu0 %v1449
      %1460 = vmatpush.bf16.xpose.msra.mxu0 %v1446
      %1461 = vmatpush.bf16.xpose.msra.mxu0 %v1443
      %1462 = vmatmul.bf16.gmra.mxu0 %v1431
      %v1463 = vpop.f32.mrf.mxu0
      %v1464 = vadd.f32 0.0, %v1463
      %v1465 = vpop.f32.mrf.mxu0
      %v1466 = vadd.f32 0.0, %v1465
      %1467 = vmatmul.bf16.gmra.mxu0 %v1434
      %v1468 = vpop.f32.mrf.mxu0
      %v1469 = vadd.f32 0.0, %v1468
      %v1470 = vpop.f32.mrf.mxu0
      %v1471 = vadd.f32 0.0, %v1470
      %1472 = vmatmul.bf16.gmra.mxu0 %v1437
      %v1473 = vpop.f32.mrf.mxu0
      %v1474 = vadd.f32 0.0, %v1473
      %v1475 = vpop.f32.mrf.mxu0
      %v1476 = vadd.f32 0.0, %v1475
      %1477 = vmatmul.bf16.gmra.mxu0 %v1440
      %v1478 = vpop.f32.mrf.mxu0
      %v1479 = vadd.f32 0.0, %v1478
      %v1480 = vpop.f32.mrf.mxu0
      %v1481 = vadd.f32 0.0, %v1480
      %1482 = vdwg.mxu0
      %v1483 = vsel %vm945, %v1464, -inf
      %1484 = vmax.xlane.f32.xlu0 %v1483
      %v1485 = vpop.xlane.xlu0 %1484
      %v1486 = vsel %vm945, %v1466, -inf
      %1487 = vmax.xlane.f32.xlu0 %v1486
      %v1488 = vpop.xlane.xlu0 %1487
      %v1489 = vsel %vm945, %v1469, -inf
      %1490 = vmax.xlane.f32.xlu0 %v1489
      %v1491 = vpop.xlane.xlu0 %1490
      %v1492 = vsel %vm945, %v1471, -inf
      %1493 = vmax.xlane.f32.xlu0 %v1492
      %v1494 = vpop.xlane.xlu0 %1493
      %v1495 = vsel %vm945, %v1474, -inf
      %1496 = vmax.xlane.f32.xlu0 %v1495
      %v1497 = vpop.xlane.xlu0 %1496
      %v1498 = vsel %vm945, %v1476, -inf
      %1499 = vmax.xlane.f32.xlu0 %v1498
      %v1500 = vpop.xlane.xlu0 %1499
      %v1501 = vsel %vm945, %v1479, -inf
      %1502 = vmax.xlane.f32.xlu0 %v1501
      %v1503 = vpop.xlane.xlu0 %1502
      %v1504 = vsel %vm945, %v1481, -inf
      %1505 = vmax.xlane.f32.xlu0 %v1504
      %v1506 = vpop.xlane.xlu0 %1505
      %v1507 = vsub.f32 %v1464, %v1485
      %v1508 = vsub.f32 %v1466, %v1488
      %v1509 = vsub.f32 %v1469, %v1491
      %v1510 = vsub.f32 %v1471, %v1494
      %v1511 = vsub.f32 %v1474, %v1497
      %v1512 = vsub.f32 %v1476, %v1500
      %v1513 = vsub.f32 %v1479, %v1503
      %v1514 = vsub.f32 %v1481, %v1506
      %v1515 = vmul.f32 %v1507, 1.442695
      %v1516 = vpow.pop %v1515
      %v1517 = vmul.f32 %v1508, 1.442695
      %v1518 = vpow.pop %v1517
      %v1519 = vmul.f32 %v1509, 1.442695
      %v1520 = vpow.pop %v1519
      %v1521 = vmul.f32 %v1510, 1.442695
      %v1522 = vpow.pop %v1521
      %v1523 = vmul.f32 %v1511, 1.442695
      %v1524 = vpow.pop %v1523
      %v1525 = vmul.f32 %v1512, 1.442695
      %v1526 = vpow.pop %v1525
      %v1527 = vmul.f32 %v1513, 1.442695
      %v1528 = vpow.pop %v1527
      %v1529 = vmul.f32 %v1514, 1.442695
      %v1530 = vpow.pop %v1529
      %v1531 = vsel %vm945, %v1516, 0.0
      %1532 = vadd.xlane.f32.xlu0 %v1531
      %v1533 = vpop.xlane.xlu0 %1532
      %v1534 = vsel %vm945, %v1518, 0.0
      %1535 = vadd.xlane.f32.xlu0 %v1534
      %v1536 = vpop.xlane.xlu0 %1535
      %v1537 = vsel %vm945, %v1520, 0.0
      %1538 = vadd.xlane.f32.xlu0 %v1537
      %v1539 = vpop.xlane.xlu0 %1538
      %v1540 = vsel %vm945, %v1522, 0.0
      %1541 = vadd.xlane.f32.xlu0 %v1540
      %v1542 = vpop.xlane.xlu0 %1541
      %v1543 = vsel %vm945, %v1524, 0.0
      %1544 = vadd.xlane.f32.xlu0 %v1543
      %v1545 = vpop.xlane.xlu0 %1544
      %v1546 = vsel %vm945, %v1526, 0.0
      %1547 = vadd.xlane.f32.xlu0 %v1546
      %v1548 = vpop.xlane.xlu0 %1547
      %v1549 = vsel %vm945, %v1528, 0.0
      %1550 = vadd.xlane.f32.xlu0 %v1549
      %v1551 = vpop.xlane.xlu0 %1550
      %v1552 = vsel %vm945, %v1530, 0.0
      %1553 = vadd.xlane.f32.xlu0 %v1552
      %v1554 = vpop.xlane.xlu0 %1553
      %v1555 = vpack.c.bf16 %v1518, %v1516
      %v1556 = vpack.c.bf16 %v1522, %v1520
      %v1557 = vpack.c.bf16 %v1526, %v1524
      %v1558 = vpack.c.bf16 %v1530, %v1528
      %1563 = vrot.lane.b32.xlu0 %v1211, 120
      %v1564 = vpop.permute.xlu0 %1563
      %1565 = vrot.lane.b32.xlu0 %v1212, 120
      %v1566 = vpop.permute.xlu0 %1565
      %1567 = vrot.lane.b32.xlu0 %v1213, 120
      %v1568 = vpop.permute.xlu0 %1567
      %1569 = vrot.lane.b32.xlu0 %v1214, 120
      %v1570 = vpop.permute.xlu0 %1569
      %v1576 = vsel %vm945, %v1555, 0
      %v1579 = vsel %vm945, %v1556, 0
      %v1582 = vsel %vm945, %v1557, 0
      %v1585 = vsel %vm945, %v1558, 0
      %1587 = vmatpush.bf16.msra.mxu0 0
      %1588 = vmatpush.bf16.msra.mxu0 0
      %1589 = vmatpush.bf16.msra.mxu0 0
      %1590 = vmatpush.bf16.msra.mxu0 0
      %1591 = vmatpush.bf16.msra.mxu0 %v1570
      %1592 = vmatpush.bf16.msra.mxu0 %v1568
      %1593 = vmatpush.bf16.msra.mxu0 %v1566
      %1594 = vmatpush.bf16.msra.mxu0 %v1564
      %1595 = vmatmul.bf16.gmra.mxu0 %v1576
      %v1596 = vpop.f32.mrf.mxu0
      %v1597 = vadd.f32 0.0, %v1596
      %v1598 = vpop.f32.mrf.mxu0
      %v1599 = vadd.f32 0.0, %v1598
      %1600 = vmatmul.bf16.gmra.mxu0 %v1579
      %v1601 = vpop.f32.mrf.mxu0
      %v1602 = vadd.f32 0.0, %v1601
      %v1603 = vpop.f32.mrf.mxu0
      %v1604 = vadd.f32 0.0, %v1603
      %1605 = vmatmul.bf16.gmra.mxu0 %v1582
      %v1606 = vpop.f32.mrf.mxu0
      %v1607 = vadd.f32 0.0, %v1606
      %v1608 = vpop.f32.mrf.mxu0
      %v1609 = vadd.f32 0.0, %v1608
      %1610 = vmatmul.bf16.gmra.mxu0 %v1585
      %v1611 = vpop.f32.mrf.mxu0
      %v1612 = vadd.f32 0.0, %v1611
      %v1613 = vpop.f32.mrf.mxu0
      %v1614 = vadd.f32 0.0, %v1613
      %1615 = vdwg.mxu0
      %v1616 = vrcp.pop %v1533
      %v1617 = vrcp.pop %v1536
      %v1618 = vrcp.pop %v1539
      %v1619 = vrcp.pop %v1542
      %v1620 = vrcp.pop %v1545
      %v1621 = vrcp.pop %v1548
      %v1622 = vrcp.pop %v1551
      %v1623 = vrcp.pop %v1554
      %v1624 = vmul.f32 %v1597, %v1616
      %v1625 = vmul.f32 %v1599, %v1617
      %v1626 = vmul.f32 %v1602, %v1618
      %v1627 = vmul.f32 %v1604, %v1619
      %v1628 = vmul.f32 %v1607, %v1620
      %v1629 = vmul.f32 %v1609, %v1621
      %v1630 = vmul.f32 %v1612, %v1622
      %v1631 = vmul.f32 %v1614, %v1623
      %1632 = vrot.lane.b32.xlu0 %v1207, 112
      %v1633 = vpop.permute.xlu0 %1632
      %1634 = vrot.lane.b32.xlu0 %v1208, 112
      %v1635 = vpop.permute.xlu0 %1634
      %1636 = vrot.lane.b32.xlu0 %v1209, 112
      %v1637 = vpop.permute.xlu0 %1636
      %1638 = vrot.lane.b32.xlu0 %v1210, 112
      %v1639 = vpop.permute.xlu0 %1638
      %1640 = vrot.lane.b32.xlu0 %v1207, 80
      %v1641 = vpop.permute.xlu0 %1640
      %1642 = vrot.lane.b32.xlu0 %v1208, 80
      %v1643 = vpop.permute.xlu0 %1642
      %1644 = vrot.lane.b32.xlu0 %v1209, 80
      %v1645 = vpop.permute.xlu0 %1644
      %1646 = vrot.lane.b32.xlu0 %v1210, 80
      %v1647 = vpop.permute.xlu0 %1646
      %v1649 = vsel %vm1227, %v1633, 0
      %v1652 = vsel %vm1227, %v1635, 0
      %v1655 = vsel %vm1227, %v1637, 0
      %v1658 = vsel %vm1227, %v1639, 0
      %v1661 = vsel %vm1227, %v1641, 0
      %v1664 = vsel %vm1227, %v1643, 0
      %v1667 = vsel %vm1227, %v1645, 0
      %v1670 = vsel %vm1227, %v1647, 0
      %1672 = vmatpush.bf16.xpose.msra.mxu0 0
      %1673 = vmatpush.bf16.xpose.msra.mxu0 0
      %1674 = vmatpush.bf16.xpose.msra.mxu0 0
      %1675 = vmatpush.bf16.xpose.msra.mxu0 0
      %1676 = vmatpush.bf16.xpose.msra.mxu0 %v1670
      %1677 = vmatpush.bf16.xpose.msra.mxu0 %v1667
      %1678 = vmatpush.bf16.xpose.msra.mxu0 %v1664
      %1679 = vmatpush.bf16.xpose.msra.mxu0 %v1661
      %1680 = vmatmul.bf16.gmra.mxu0 %v1649
      %v1681 = vpop.f32.mrf.mxu0
      %v1682 = vadd.f32 0.0, %v1681
      %v1683 = vpop.f32.mrf.mxu0
      %v1684 = vadd.f32 0.0, %v1683
      %1685 = vmatmul.bf16.gmra.mxu0 %v1652
      %v1686 = vpop.f32.mrf.mxu0
      %v1687 = vadd.f32 0.0, %v1686
      %v1688 = vpop.f32.mrf.mxu0
      %v1689 = vadd.f32 0.0, %v1688
      %1690 = vmatmul.bf16.gmra.mxu0 %v1655
      %v1691 = vpop.f32.mrf.mxu0
      %v1692 = vadd.f32 0.0, %v1691
      %v1693 = vpop.f32.mrf.mxu0
      %v1694 = vadd.f32 0.0, %v1693
      %1695 = vmatmul.bf16.gmra.mxu0 %v1658
      %v1696 = vpop.f32.mrf.mxu0
      %v1697 = vadd.f32 0.0, %v1696
      %v1698 = vpop.f32.mrf.mxu0
      %v1699 = vadd.f32 0.0, %v1698
      %1700 = vdwg.mxu0
      %v1701 = vsel %vm945, %v1682, -inf
      %1702 = vmax.xlane.f32.xlu0 %v1701
      %v1703 = vpop.xlane.xlu0 %1702
      %v1704 = vsel %vm945, %v1684, -inf
      %1705 = vmax.xlane.f32.xlu0 %v1704
      %v1706 = vpop.xlane.xlu0 %1705
      %v1707 = vsel %vm945, %v1687, -inf
      %1708 = vmax.xlane.f32.xlu0 %v1707
      %v1709 = vpop.xlane.xlu0 %1708
      %v1710 = vsel %vm945, %v1689, -inf
      %1711 = vmax.xlane.f32.xlu0 %v1710
      %v1712 = vpop.xlane.xlu0 %1711
      %v1713 = vsel %vm945, %v1692, -inf
      %1714 = vmax.xlane.f32.xlu0 %v1713
      %v1715 = vpop.xlane.xlu0 %1714
      %v1716 = vsel %vm945, %v1694, -inf
      %1717 = vmax.xlane.f32.xlu0 %v1716
      %v1718 = vpop.xlane.xlu0 %1717
      %v1719 = vsel %vm945, %v1697, -inf
      %1720 = vmax.xlane.f32.xlu0 %v1719
      %v1721 = vpop.xlane.xlu0 %1720
      %v1722 = vsel %vm945, %v1699, -inf
      %1723 = vmax.xlane.f32.xlu0 %v1722
      %v1724 = vpop.xlane.xlu0 %1723
      %v1725 = vsub.f32 %v1682, %v1703
      %v1726 = vsub.f32 %v1684, %v1706
      %v1727 = vsub.f32 %v1687, %v1709
      %v1728 = vsub.f32 %v1689, %v1712
      %v1729 = vsub.f32 %v1692, %v1715
      %v1730 = vsub.f32 %v1694, %v1718
      %v1731 = vsub.f32 %v1697, %v1721
      %v1732 = vsub.f32 %v1699, %v1724
      %v1733 = vmul.f32 %v1725, 1.442695
      %v1734 = vpow.pop %v1733
      %v1735 = vmul.f32 %v1726, 1.442695
      %v1736 = vpow.pop %v1735
      %v1737 = vmul.f32 %v1727, 1.442695
      %v1738 = vpow.pop %v1737
      %v1739 = vmul.f32 %v1728, 1.442695
      %v1740 = vpow.pop %v1739
      %v1741 = vmul.f32 %v1729, 1.442695
      %v1742 = vpow.pop %v1741
      %v1743 = vmul.f32 %v1730, 1.442695
      %v1744 = vpow.pop %v1743
      %v1745 = vmul.f32 %v1731, 1.442695
      %v1746 = vpow.pop %v1745
      %v1747 = vmul.f32 %v1732, 1.442695
      %v1748 = vpow.pop %v1747
      %v1749 = vsel %vm945, %v1734, 0.0
      %1750 = vadd.xlane.f32.xlu0 %v1749
      %v1751 = vpop.xlane.xlu0 %1750
      %v1752 = vsel %vm945, %v1736, 0.0
      %1753 = vadd.xlane.f32.xlu0 %v1752
      %v1754 = vpop.xlane.xlu0 %1753
      %v1755 = vsel %vm945, %v1738, 0.0
      %1756 = vadd.xlane.f32.xlu0 %v1755
      %v1757 = vpop.xlane.xlu0 %1756
      %v1758 = vsel %vm945, %v1740, 0.0
      %1759 = vadd.xlane.f32.xlu0 %v1758
      %v1760 = vpop.xlane.xlu0 %1759
      %v1761 = vsel %vm945, %v1742, 0.0
      %1762 = vadd.xlane.f32.xlu0 %v1761
      %v1763 = vpop.xlane.xlu0 %1762
      %v1764 = vsel %vm945, %v1744, 0.0
      %1765 = vadd.xlane.f32.xlu0 %v1764
      %v1766 = vpop.xlane.xlu0 %1765
      %v1767 = vsel %vm945, %v1746, 0.0
      %1768 = vadd.xlane.f32.xlu0 %v1767
      %v1769 = vpop.xlane.xlu0 %1768
      %v1770 = vsel %vm945, %v1748, 0.0
      %1771 = vadd.xlane.f32.xlu0 %v1770
      %v1772 = vpop.xlane.xlu0 %1771
      %v1773 = vpack.c.bf16 %v1736, %v1734
      %v1774 = vpack.c.bf16 %v1740, %v1738
      %v1775 = vpack.c.bf16 %v1744, %v1742
      %v1776 = vpack.c.bf16 %v1748, %v1746
      %1777 = vrot.lane.b32.xlu0 %v1211, 112
      %v1778 = vpop.permute.xlu0 %1777
      %1779 = vrot.lane.b32.xlu0 %v1212, 112
      %v1780 = vpop.permute.xlu0 %1779
      %1781 = vrot.lane.b32.xlu0 %v1213, 112
      %v1782 = vpop.permute.xlu0 %1781
      %1783 = vrot.lane.b32.xlu0 %v1214, 112
      %v1784 = vpop.permute.xlu0 %1783
      %v1790 = vsel %vm945, %v1773, 0
      %v1793 = vsel %vm945, %v1774, 0
      %v1796 = vsel %vm945, %v1775, 0
      %v1799 = vsel %vm945, %v1776, 0
      %1801 = vmatpush.bf16.msra.mxu0 0
      %1802 = vmatpush.bf16.msra.mxu0 0
      %1803 = vmatpush.bf16.msra.mxu0 0
      %1804 = vmatpush.bf16.msra.mxu0 0
      %1805 = vmatpush.bf16.msra.mxu0 %v1784
      %1806 = vmatpush.bf16.msra.mxu0 %v1782
      %1807 = vmatpush.bf16.msra.mxu0 %v1780
      %1808 = vmatpush.bf16.msra.mxu0 %v1778
      %1809 = vmatmul.bf16.gmra.mxu0 %v1790
      %v1810 = vpop.f32.mrf.mxu0
      %v1811 = vadd.f32 0.0, %v1810
      %v1812 = vpop.f32.mrf.mxu0
      %v1813 = vadd.f32 0.0, %v1812
      %1814 = vmatmul.bf16.gmra.mxu0 %v1793
      %v1815 = vpop.f32.mrf.mxu0
      %v1816 = vadd.f32 0.0, %v1815
      %v1817 = vpop.f32.mrf.mxu0
      %v1818 = vadd.f32 0.0, %v1817
      %1819 = vmatmul.bf16.gmra.mxu0 %v1796
      %v1820 = vpop.f32.mrf.mxu0
      %v1821 = vadd.f32 0.0, %v1820
      %v1822 = vpop.f32.mrf.mxu0
      %v1823 = vadd.f32 0.0, %v1822
      %1824 = vmatmul.bf16.gmra.mxu0 %v1799
      %v1825 = vpop.f32.mrf.mxu0
      %v1826 = vadd.f32 0.0, %v1825
      %v1827 = vpop.f32.mrf.mxu0
      %v1828 = vadd.f32 0.0, %v1827
      %1829 = vdwg.mxu0
      %v1830 = vrcp.pop %v1751
      %v1831 = vrcp.pop %v1754
      %v1832 = vrcp.pop %v1757
      %v1833 = vrcp.pop %v1760
      %v1834 = vrcp.pop %v1763
      %v1835 = vrcp.pop %v1766
      %v1836 = vrcp.pop %v1769
      %v1837 = vrcp.pop %v1772
      %v1838 = vmul.f32 %v1811, %v1830
      %v1839 = vmul.f32 %v1813, %v1831
      %v1840 = vmul.f32 %v1816, %v1832
      %v1841 = vmul.f32 %v1818, %v1833
      %v1842 = vmul.f32 %v1821, %v1834
      %v1843 = vmul.f32 %v1823, %v1835
      %v1844 = vmul.f32 %v1826, %v1836
      %v1845 = vmul.f32 %v1828, %v1837
      %1846 = vrot.lane.b32.xlu0 %v1207, 104
      %v1847 = vpop.permute.xlu0 %1846
      %1848 = vrot.lane.b32.xlu0 %v1208, 104
      %v1849 = vpop.permute.xlu0 %1848
      %1850 = vrot.lane.b32.xlu0 %v1209, 104
      %v1851 = vpop.permute.xlu0 %1850
      %1852 = vrot.lane.b32.xlu0 %v1210, 104
      %v1853 = vpop.permute.xlu0 %1852
      %1854 = vrot.lane.b32.xlu0 %v1207, 72
      %v1855 = vpop.permute.xlu0 %1854
      %1856 = vrot.lane.b32.xlu0 %v1208, 72
      %v1857 = vpop.permute.xlu0 %1856
      %1858 = vrot.lane.b32.xlu0 %v1209, 72
      %v1859 = vpop.permute.xlu0 %1858
      %1860 = vrot.lane.b32.xlu0 %v1210, 72
      %v1861 = vpop.permute.xlu0 %1860
      %v1863 = vsel %vm1227, %v1847, 0
      %v1866 = vsel %vm1227, %v1849, 0
      %v1869 = vsel %vm1227, %v1851, 0
      %v1872 = vsel %vm1227, %v1853, 0
      %v1875 = vsel %vm1227, %v1855, 0
      %v1878 = vsel %vm1227, %v1857, 0
      %v1881 = vsel %vm1227, %v1859, 0
      %v1884 = vsel %vm1227, %v1861, 0
      %1886 = vmatpush.bf16.xpose.msra.mxu0 0
      %1887 = vmatpush.bf16.xpose.msra.mxu0 0
      %1888 = vmatpush.bf16.xpose.msra.mxu0 0
      %1889 = vmatpush.bf16.xpose.msra.mxu0 0
      %1890 = vmatpush.bf16.xpose.msra.mxu0 %v1884
      %1891 = vmatpush.bf16.xpose.msra.mxu0 %v1881
      %1892 = vmatpush.bf16.xpose.msra.mxu0 %v1878
      %1893 = vmatpush.bf16.xpose.msra.mxu0 %v1875
      %1894 = vmatmul.bf16.gmra.mxu0 %v1863
      %v1895 = vpop.f32.mrf.mxu0
      %v1896 = vadd.f32 0.0, %v1895
      %v1897 = vpop.f32.mrf.mxu0
      %v1898 = vadd.f32 0.0, %v1897
      %1899 = vmatmul.bf16.gmra.mxu0 %v1866
      %v1900 = vpop.f32.mrf.mxu0
      %v1901 = vadd.f32 0.0, %v1900
      %v1902 = vpop.f32.mrf.mxu0
      %v1903 = vadd.f32 0.0, %v1902
      %1904 = vmatmul.bf16.gmra.mxu0 %v1869
      %v1905 = vpop.f32.mrf.mxu0
      %v1906 = vadd.f32 0.0, %v1905
      %v1907 = vpop.f32.mrf.mxu0
      %v1908 = vadd.f32 0.0, %v1907
      %1909 = vmatmul.bf16.gmra.mxu0 %v1872
      %v1910 = vpop.f32.mrf.mxu0
      %v1911 = vadd.f32 0.0, %v1910
      %v1912 = vpop.f32.mrf.mxu0
      %v1913 = vadd.f32 0.0, %v1912
      %1914 = vdwg.mxu0
      %v1915 = vsel %vm945, %v1896, -inf
      %1916 = vmax.xlane.f32.xlu0 %v1915
      %v1917 = vpop.xlane.xlu0 %1916
      %v1918 = vsel %vm945, %v1898, -inf
      %1919 = vmax.xlane.f32.xlu0 %v1918
      %v1920 = vpop.xlane.xlu0 %1919
      %v1921 = vsel %vm945, %v1901, -inf
      %1922 = vmax.xlane.f32.xlu0 %v1921
      %v1923 = vpop.xlane.xlu0 %1922
      %v1924 = vsel %vm945, %v1903, -inf
      %1925 = vmax.xlane.f32.xlu0 %v1924
      %v1926 = vpop.xlane.xlu0 %1925
      %v1927 = vsel %vm945, %v1906, -inf
      %1928 = vmax.xlane.f32.xlu0 %v1927
      %v1929 = vpop.xlane.xlu0 %1928
      %v1930 = vsel %vm945, %v1908, -inf
      %1931 = vmax.xlane.f32.xlu0 %v1930
      %v1932 = vpop.xlane.xlu0 %1931
      %v1933 = vsel %vm945, %v1911, -inf
      %1934 = vmax.xlane.f32.xlu0 %v1933
      %v1935 = vpop.xlane.xlu0 %1934
      %v1936 = vsel %vm945, %v1913, -inf
      %1937 = vmax.xlane.f32.xlu0 %v1936
      %v1938 = vpop.xlane.xlu0 %1937
      %v1939 = vsub.f32 %v1896, %v1917
      %v1940 = vsub.f32 %v1898, %v1920
      %v1941 = vsub.f32 %v1901, %v1923
      %v1942 = vsub.f32 %v1903, %v1926
      %v1943 = vsub.f32 %v1906, %v1929
      %v1944 = vsub.f32 %v1908, %v1932
      %v1945 = vsub.f32 %v1911, %v1935
      %v1946 = vsub.f32 %v1913, %v1938
      %v1947 = vmul.f32 %v1939, 1.442695
      %v1948 = vpow.pop %v1947
      %v1949 = vmul.f32 %v1940, 1.442695
      %v1950 = vpow.pop %v1949
      %v1951 = vmul.f32 %v1941, 1.442695
      %v1952 = vpow.pop %v1951
      %v1953 = vmul.f32 %v1942, 1.442695
      %v1954 = vpow.pop %v1953
      %v1955 = vmul.f32 %v1943, 1.442695
      %v1956 = vpow.pop %v1955
      %v1957 = vmul.f32 %v1944, 1.442695
      %v1958 = vpow.pop %v1957
      %v1959 = vmul.f32 %v1945, 1.442695
      %v1960 = vpow.pop %v1959
      %v1961 = vmul.f32 %v1946, 1.442695
      %v1962 = vpow.pop %v1961
      %v1963 = vsel %vm945, %v1948, 0.0
      %1964 = vadd.xlane.f32.xlu0 %v1963
      %v1965 = vpop.xlane.xlu0 %1964
      %v1966 = vsel %vm945, %v1950, 0.0
      %1967 = vadd.xlane.f32.xlu0 %v1966
      %v1968 = vpop.xlane.xlu0 %1967
      %v1969 = vsel %vm945, %v1952, 0.0
      %1970 = vadd.xlane.f32.xlu0 %v1969
      %v1971 = vpop.xlane.xlu0 %1970
      %v1972 = vsel %vm945, %v1954, 0.0
      %1973 = vadd.xlane.f32.xlu0 %v1972
      %v1974 = vpop.xlane.xlu0 %1973
      %v1975 = vsel %vm945, %v1956, 0.0
      %1976 = vadd.xlane.f32.xlu0 %v1975
      %v1977 = vpop.xlane.xlu0 %1976
      %v1978 = vsel %vm945, %v1958, 0.0
      %1979 = vadd.xlane.f32.xlu0 %v1978
      %v1980 = vpop.xlane.xlu0 %1979
      %v1981 = vsel %vm945, %v1960, 0.0
      %1982 = vadd.xlane.f32.xlu0 %v1981
      %v1983 = vpop.xlane.xlu0 %1982
      %v1984 = vsel %vm945, %v1962, 0.0
      %1985 = vadd.xlane.f32.xlu0 %v1984
      %v1986 = vpop.xlane.xlu0 %1985
      %v1987 = vpack.c.bf16 %v1950, %v1948
      %v1988 = vpack.c.bf16 %v1954, %v1952
      %v1989 = vpack.c.bf16 %v1958, %v1956
      %v1990 = vpack.c.bf16 %v1962, %v1960
      %1991 = vrot.lane.b32.xlu0 %v1211, 104
      %v1992 = vpop.permute.xlu0 %1991
      %1993 = vrot.lane.b32.xlu0 %v1212, 104
      %v1994 = vpop.permute.xlu0 %1993
      %1995 = vrot.lane.b32.xlu0 %v1213, 104
      %v1996 = vpop.permute.xlu0 %1995
      %1997 = vrot.lane.b32.xlu0 %v1214, 104
      %v1998 = vpop.permute.xlu0 %1997
      %v2004 = vsel %vm945, %v1987, 0
      %v2007 = vsel %vm945, %v1988, 0
      %v2010 = vsel %vm945, %v1989, 0
      %v2013 = vsel %vm945, %v1990, 0
      %2015 = vmatpush.bf16.msra.mxu0 0
      %2016 = vmatpush.bf16.msra.mxu0 0
      %2017 = vmatpush.bf16.msra.mxu0 0
      %2018 = vmatpush.bf16.msra.mxu0 0
      %2019 = vmatpush.bf16.msra.mxu0 %v1998
      %2020 = vmatpush.bf16.msra.mxu0 %v1996
      %2021 = vmatpush.bf16.msra.mxu0 %v1994
      %2022 = vmatpush.bf16.msra.mxu0 %v1992
      %2023 = vmatmul.bf16.gmra.mxu0 %v2004
      %v2024 = vpop.f32.mrf.mxu0
      %v2025 = vadd.f32 0.0, %v2024
      %v2026 = vpop.f32.mrf.mxu0
      %v2027 = vadd.f32 0.0, %v2026
      %2028 = vmatmul.bf16.gmra.mxu0 %v2007
      %v2029 = vpop.f32.mrf.mxu0
      %v2030 = vadd.f32 0.0, %v2029
      %v2031 = vpop.f32.mrf.mxu0
      %v2032 = vadd.f32 0.0, %v2031
      %2033 = vmatmul.bf16.gmra.mxu0 %v2010
      %v2034 = vpop.f32.mrf.mxu0
      %v2035 = vadd.f32 0.0, %v2034
      %v2036 = vpop.f32.mrf.mxu0
      %v2037 = vadd.f32 0.0, %v2036
      %2038 = vmatmul.bf16.gmra.mxu0 %v2013
      %v2039 = vpop.f32.mrf.mxu0
      %v2040 = vadd.f32 0.0, %v2039
      %v2041 = vpop.f32.mrf.mxu0
      %v2042 = vadd.f32 0.0, %v2041
      %2043 = vdwg.mxu0
      %v2044 = vrcp.pop %v1965
      %v2045 = vrcp.pop %v1968
      %v2046 = vrcp.pop %v1971
      %v2047 = vrcp.pop %v1974
      %v2048 = vrcp.pop %v1977
      %v2049 = vrcp.pop %v1980
      %v2050 = vrcp.pop %v1983
      %v2051 = vrcp.pop %v1986
      %v2052 = vmul.f32 %v2025, %v2044
      %v2053 = vmul.f32 %v2027, %v2045
      %v2054 = vmul.f32 %v2030, %v2046
      %v2055 = vmul.f32 %v2032, %v2047
      %v2056 = vmul.f32 %v2035, %v2048
      %v2057 = vmul.f32 %v2037, %v2049
      %v2058 = vmul.f32 %v2040, %v2050
      %v2059 = vmul.f32 %v2042, %v2051
      %2068 = vrot.lane.b32.xlu0 %v1624, 8
      %v2069 = vpop.permute.xlu0 %2068
      %2070 = vrot.lane.b32.xlu0 %v1625, 8
      %v2071 = vpop.permute.xlu0 %2070
      %2072 = vrot.lane.b32.xlu0 %v1626, 8
      %v2073 = vpop.permute.xlu0 %2072
      %2074 = vrot.lane.b32.xlu0 %v1627, 8
      %v2075 = vpop.permute.xlu0 %2074
      %2076 = vrot.lane.b32.xlu0 %v1628, 8
      %v2077 = vpop.permute.xlu0 %2076
      %2078 = vrot.lane.b32.xlu0 %v1629, 8
      %v2079 = vpop.permute.xlu0 %2078
      %2080 = vrot.lane.b32.xlu0 %v1630, 8
      %v2081 = vpop.permute.xlu0 %2080
      %2082 = vrot.lane.b32.xlu0 %v1631, 8
      %v2083 = vpop.permute.xlu0 %2082
      %2100 = vrot.lane.b32.xlu0 %v1838, 16
      %v2101 = vpop.permute.xlu0 %2100
      %2102 = vrot.lane.b32.xlu0 %v1839, 16
      %v2103 = vpop.permute.xlu0 %2102
      %2104 = vrot.lane.b32.xlu0 %v1840, 16
      %v2105 = vpop.permute.xlu0 %2104
      %2106 = vrot.lane.b32.xlu0 %v1841, 16
      %v2107 = vpop.permute.xlu0 %2106
      %2108 = vrot.lane.b32.xlu0 %v1842, 16
      %v2109 = vpop.permute.xlu0 %2108
      %2110 = vrot.lane.b32.xlu0 %v1843, 16
      %v2111 = vpop.permute.xlu0 %2110
      %2112 = vrot.lane.b32.xlu0 %v1844, 16
      %v2113 = vpop.permute.xlu0 %2112
      %2114 = vrot.lane.b32.xlu0 %v1845, 16
      %v2115 = vpop.permute.xlu0 %2114
      %2132 = vrot.lane.b32.xlu0 %v2052, 24
      %v2133 = vpop.permute.xlu0 %2132
      %2134 = vrot.lane.b32.xlu0 %v2053, 24
      %v2135 = vpop.permute.xlu0 %2134
      %2136 = vrot.lane.b32.xlu0 %v2054, 24
      %v2137 = vpop.permute.xlu0 %2136
      %2138 = vrot.lane.b32.xlu0 %v2055, 24
      %v2139 = vpop.permute.xlu0 %2138
      %2140 = vrot.lane.b32.xlu0 %v2056, 24
      %v2141 = vpop.permute.xlu0 %2140
      %2142 = vrot.lane.b32.xlu0 %v2057, 24
      %v2143 = vpop.permute.xlu0 %2142
      %2144 = vrot.lane.b32.xlu0 %v2058, 24
      %v2145 = vpop.permute.xlu0 %2144
      %2146 = vrot.lane.b32.xlu0 %v2059, 24
      %v2147 = vpop.permute.xlu0 %2146
      %v2156 = vsel %vm1227, %v1406, %v2069
      %v2157 = vsel %vm1227, %v1407, %v2071
      %v2158 = vsel %vm1227, %v1408, %v2073
      %v2159 = vsel %vm1227, %v1409, %v2075
      %v2160 = vsel %vm1227, %v1410, %v2077
      %v2161 = vsel %vm1227, %v1411, %v2079
      %v2162 = vsel %vm1227, %v1412, %v2081
      %v2163 = vsel %vm1227, %v1413, %v2083
      %vm2164 = vcmask 130048
      %v2165 = vsel %vm2164, %v2156, %v2101
      %v2166 = vsel %vm2164, %v2157, %v2103
      %v2167 = vsel %vm2164, %v2158, %v2105
      %v2168 = vsel %vm2164, %v2159, %v2107
      %v2169 = vsel %vm2164, %v2160, %v2109
      %v2170 = vsel %vm2164, %v2161, %v2111
      %v2171 = vsel %vm2164, %v2162, %v2113
      %v2172 = vsel %vm2164, %v2163, %v2115
      %vm2173 = vcmask 195584
      %v2174 = vsel %vm2173, %v2165, %v2133
      %v2175 = vsel %vm2173, %v2166, %v2135
      %v2176 = vsel %vm2173, %v2167, %v2137
      %v2177 = vsel %vm2173, %v2168, %v2139
      %v2178 = vsel %vm2173, %v2169, %v2141
      %v2179 = vsel %vm2173, %v2170, %v2143
      %v2180 = vsel %vm2173, %v2171, %v2145
      %v2181 = vsel %vm2173, %v2172, %v2147
      %v2182 = vpack.c.bf16 %v2175, %v2174
      %v2183 = vpack.c.bf16 %v2177, %v2176
      %v2184 = vpack.c.bf16 %v2179, %v2178
      %v2185 = vpack.c.bf16 %v2181, %v2180
      %v2187 = vperm.slane %v845, 0
      %v2193 = vunpack.c.l.b16 %v841
      %v2194 = vunpack.c.l.b16 %v842
      %v2195 = vunpack.c.l.b16 %v843
      %v2196 = vunpack.c.l.b16 %v844
      %v2197 = vpack.c.b16 %v2194, %v2193
      %v2198 = vpack.c.b16 %v2196, %v2195
      %v2202 = vsel %vm879, %v2182, 0
      %v2205 = vsel %vm879, %v2183, 0
      %v2208 = vsel %vm879, %v2184, 0
      %v2211 = vsel %vm879, %v2185, 0
      %2213 = vmatpush.bf16.msra.mxu0 0
      %2214 = vmatpush.bf16.msra.mxu0 0
      %2215 = vmatpush.bf16.msra.mxu0 0
      %2216 = vmatpush.bf16.msra.mxu0 0
      %2217 = vmatpush.bf16.msra.mxu0 0
      %2218 = vmatpush.bf16.msra.mxu0 0
      %2219 = vmatpush.bf16.msra.mxu0 %v2198
      %2220 = vmatpush.bf16.msra.mxu0 %v2197
      %2221 = vmatmul.bf16.gmra.mxu0 %v2202
      %v2222 = vpop.f32.mrf.mxu0
      %v2223 = vadd.f32 %v2187, %v2222
      %v2224 = vpop.f32.mrf.mxu0
      %v2225 = vadd.f32 %v2187, %v2224
      %2226 = vmatmul.bf16.gmra.mxu0 %v2205
      %v2227 = vpop.f32.mrf.mxu0
      %v2228 = vadd.f32 %v2187, %v2227
      %v2229 = vpop.f32.mrf.mxu0
      %v2230 = vadd.f32 %v2187, %v2229
      %2231 = vmatmul.bf16.gmra.mxu0 %v2208
      %v2232 = vpop.f32.mrf.mxu0
      %v2233 = vadd.f32 %v2187, %v2232
      %v2234 = vpop.f32.mrf.mxu0
      %v2235 = vadd.f32 %v2187, %v2234
      %2236 = vmatmul.bf16.gmra.mxu0 %v2211
      %v2237 = vpop.f32.mrf.mxu0
      %v2238 = vadd.f32 %v2187, %v2237
      %v2239 = vpop.f32.mrf.mxu0
      %v2240 = vadd.f32 %v2187, %v2239
      %2241 = vdwg.mxu0
      %v2242 = vadd.f32 %v799, %v2223
      %v2243 = vadd.f32 %v800, %v2225
      %v2244 = vadd.f32 %v801, %v2228
      %v2245 = vadd.f32 %v802, %v2230
      %v2246 = vadd.f32 %v803, %v2233
      %v2247 = vadd.f32 %v804, %v2235
      %v2248 = vadd.f32 %v805, %v2238
      %v2249 = vadd.f32 %v806, %v2240
      %v2250 = vsel %vm879, %v2242, 0.0
      %2251 = vadd.xlane.f32.xlu0 %v2250
      %v2252 = vpop.xlane.xlu0 %2251
      %v2253 = vsel %vm879, %v2243, 0.0
      %2254 = vadd.xlane.f32.xlu0 %v2253
      %v2255 = vpop.xlane.xlu0 %2254
      %v2256 = vsel %vm879, %v2244, 0.0
      %2257 = vadd.xlane.f32.xlu0 %v2256
      %v2258 = vpop.xlane.xlu0 %2257
      %v2259 = vsel %vm879, %v2245, 0.0
      %2260 = vadd.xlane.f32.xlu0 %v2259
      %v2261 = vpop.xlane.xlu0 %2260
      %v2262 = vsel %vm879, %v2246, 0.0
      %2263 = vadd.xlane.f32.xlu0 %v2262
      %v2264 = vpop.xlane.xlu0 %2263
      %v2265 = vsel %vm879, %v2247, 0.0
      %2266 = vadd.xlane.f32.xlu0 %v2265
      %v2267 = vpop.xlane.xlu0 %2266
      %v2268 = vsel %vm879, %v2248, 0.0
      %2269 = vadd.xlane.f32.xlu0 %v2268
      %v2270 = vpop.xlane.xlu0 %2269
      %v2271 = vsel %vm879, %v2249, 0.0
      %2272 = vadd.xlane.f32.xlu0 %v2271
      %v2273 = vpop.xlane.xlu0 %2272
      %v2274 = vrcp.pop 32.0
      %v2275 = vmul.f32 32.0, %v2274
      %v2276 = vsub.f32 1.0, %v2275
      %v2277 = vmul.f32 %v2274, %v2276
      %v2278 = vadd.f32 %v2274, %v2277
      %vm2279 = vweird.f32 %v2274
      %v2280 = vsel %vm2279, %v2274, %v2278
      %v2281 = vmul.f32 %v2252, %v2280
      %v2282 = vmul.f32 %v2255, %v2280
      %v2283 = vmul.f32 %v2258, %v2280
      %v2284 = vmul.f32 %v2261, %v2280
      %v2285 = vmul.f32 %v2264, %v2280
      %v2286 = vmul.f32 %v2267, %v2280
      %v2287 = vmul.f32 %v2270, %v2280
      %v2288 = vmul.f32 %v2273, %v2280
      %v2289 = vsub.f32 %v2242, %v2281
      %v2290 = vsub.f32 %v2243, %v2282
      %v2291 = vsub.f32 %v2244, %v2283
      %v2292 = vsub.f32 %v2245, %v2284
      %v2293 = vsub.f32 %v2246, %v2285
      %v2294 = vsub.f32 %v2247, %v2286
      %v2295 = vsub.f32 %v2248, %v2287
      %v2296 = vsub.f32 %v2249, %v2288
      %v2297 = vmul.f32 %v2289, %v2289
      %v2298 = vmul.f32 %v2290, %v2290
      %v2299 = vmul.f32 %v2291, %v2291
      %v2300 = vmul.f32 %v2292, %v2292
      %v2301 = vmul.f32 %v2293, %v2293
      %v2302 = vmul.f32 %v2294, %v2294
      %v2303 = vmul.f32 %v2295, %v2295
      %v2304 = vmul.f32 %v2296, %v2296
      %v2305 = vsel %vm879, %v2297, 0.0
      %2306 = vadd.xlane.f32.xlu0 %v2305
      %v2307 = vpop.xlane.xlu0 %2306
      %v2308 = vsel %vm879, %v2298, 0.0
      %2309 = vadd.xlane.f32.xlu0 %v2308
      %v2310 = vpop.xlane.xlu0 %2309
      %v2311 = vsel %vm879, %v2299, 0.0
      %2312 = vadd.xlane.f32.xlu0 %v2311
      %v2313 = vpop.xlane.xlu0 %2312
      %v2314 = vsel %vm879, %v2300, 0.0
      %2315 = vadd.xlane.f32.xlu0 %v2314
      %v2316 = vpop.xlane.xlu0 %2315
      %v2317 = vsel %vm879, %v2301, 0.0
      %2318 = vadd.xlane.f32.xlu0 %v2317
      %v2319 = vpop.xlane.xlu0 %2318
      %v2320 = vsel %vm879, %v2302, 0.0
      %2321 = vadd.xlane.f32.xlu0 %v2320
      %v2322 = vpop.xlane.xlu0 %2321
      %v2323 = vsel %vm879, %v2303, 0.0
      %2324 = vadd.xlane.f32.xlu0 %v2323
      %v2325 = vpop.xlane.xlu0 %2324
      %v2326 = vsel %vm879, %v2304, 0.0
      %2327 = vadd.xlane.f32.xlu0 %v2326
      %v2328 = vpop.xlane.xlu0 %2327
      %v2329 = vmul.f32 %v2307, %v2280
      %v2330 = vmul.f32 %v2310, %v2280
      %v2331 = vmul.f32 %v2313, %v2280
      %v2332 = vmul.f32 %v2316, %v2280
      %v2333 = vmul.f32 %v2319, %v2280
      %v2334 = vmul.f32 %v2322, %v2280
      %v2335 = vmul.f32 %v2325, %v2280
      %v2336 = vmul.f32 %v2328, %v2280
      %v2337 = vadd.f32 %v2329, 1e-05
      %v2338 = vadd.f32 %v2330, 1e-05
      %v2339 = vadd.f32 %v2331, 1e-05
      %v2340 = vadd.f32 %v2332, 1e-05
      %v2341 = vadd.f32 %v2333, 1e-05
      %v2342 = vadd.f32 %v2334, 1e-05
      %v2343 = vadd.f32 %v2335, 1e-05
      %v2344 = vadd.f32 %v2336, 1e-05
      %v2345 = vrsqrt.pop %v2337
      %v2346 = vmul.f32 %v2345, %v2337
      %v2347 = vmul.f32 %v2346, %v2345
      %v2348 = vmul.f32 0.5, %v2347
      %v2349 = vsub.f32 1.5, %v2348
      %v2350 = vmul.f32 %v2345, %v2349
      %vm2351 = vweird.f32 %v2337
      %vm2352 = vweird.f32 %v2345
      %vm2353 = vmor %vm2351, %vm2352
      %v2354 = vsel %vm2353, %v2345, %v2350
      %v2355 = vrsqrt.pop %v2338
      %v2356 = vmul.f32 %v2355, %v2338
      %v2357 = vmul.f32 %v2356, %v2355
      %v2358 = vmul.f32 0.5, %v2357
      %v2359 = vsub.f32 1.5, %v2358
      %v2360 = vmul.f32 %v2355, %v2359
      %vm2361 = vweird.f32 %v2338
      %vm2362 = vweird.f32 %v2355
      %vm2363 = vmor %vm2361, %vm2362
      %v2364 = vsel %vm2363, %v2355, %v2360
      %v2365 = vrsqrt.pop %v2339
      %v2366 = vmul.f32 %v2365, %v2339
      %v2367 = vmul.f32 %v2366, %v2365
      %v2368 = vmul.f32 0.5, %v2367
      %v2369 = vsub.f32 1.5, %v2368
      %v2370 = vmul.f32 %v2365, %v2369
      %vm2371 = vweird.f32 %v2339
      %vm2372 = vweird.f32 %v2365
      %vm2373 = vmor %vm2371, %vm2372
      %v2374 = vsel %vm2373, %v2365, %v2370
      %v2375 = vrsqrt.pop %v2340
      %v2376 = vmul.f32 %v2375, %v2340
      %v2377 = vmul.f32 %v2376, %v2375
      %v2378 = vmul.f32 0.5, %v2377
      %v2379 = vsub.f32 1.5, %v2378
      %v2380 = vmul.f32 %v2375, %v2379
      %vm2381 = vweird.f32 %v2340
      %vm2382 = vweird.f32 %v2375
      %vm2383 = vmor %vm2381, %vm2382
      %v2384 = vsel %vm2383, %v2375, %v2380
      %v2385 = vrsqrt.pop %v2341
      %v2386 = vmul.f32 %v2385, %v2341
      %v2387 = vmul.f32 %v2386, %v2385
      %v2388 = vmul.f32 0.5, %v2387
      %v2389 = vsub.f32 1.5, %v2388
      %v2390 = vmul.f32 %v2385, %v2389
      %vm2391 = vweird.f32 %v2341
      %vm2392 = vweird.f32 %v2385
      %vm2393 = vmor %vm2391, %vm2392
      %v2394 = vsel %vm2393, %v2385, %v2390
      %v2395 = vrsqrt.pop %v2342
      %v2396 = vmul.f32 %v2395, %v2342
      %v2397 = vmul.f32 %v2396, %v2395
      %v2398 = vmul.f32 0.5, %v2397
      %v2399 = vsub.f32 1.5, %v2398
      %v2400 = vmul.f32 %v2395, %v2399
      %vm2401 = vweird.f32 %v2342
      %vm2402 = vweird.f32 %v2395
      %vm2403 = vmor %vm2401, %vm2402
      %v2404 = vsel %vm2403, %v2395, %v2400
      %v2405 = vrsqrt.pop %v2343
      %v2406 = vmul.f32 %v2405, %v2343
      %v2407 = vmul.f32 %v2406, %v2405
      %v2408 = vmul.f32 0.5, %v2407
      %v2409 = vsub.f32 1.5, %v2408
      %v2410 = vmul.f32 %v2405, %v2409
      %vm2411 = vweird.f32 %v2343
      %vm2412 = vweird.f32 %v2405
      %vm2413 = vmor %vm2411, %vm2412
      %v2414 = vsel %vm2413, %v2405, %v2410
      %v2415 = vrsqrt.pop %v2344
      %v2416 = vmul.f32 %v2415, %v2344
      %v2417 = vmul.f32 %v2416, %v2415
      %v2418 = vmul.f32 0.5, %v2417
      %v2419 = vsub.f32 1.5, %v2418
      %v2420 = vmul.f32 %v2415, %v2419
      %vm2421 = vweird.f32 %v2344
      %vm2422 = vweird.f32 %v2415
      %vm2423 = vmor %vm2421, %vm2422
      %v2424 = vsel %vm2423, %v2415, %v2420
      %v2425 = vmul.f32 %v2289, %v2354
      %v2426 = vmul.f32 %v2290, %v2364
      %v2427 = vmul.f32 %v2291, %v2374
      %v2428 = vmul.f32 %v2292, %v2384
      %v2429 = vmul.f32 %v2293, %v2394
      %v2430 = vmul.f32 %v2294, %v2404
      %v2431 = vmul.f32 %v2295, %v2414
      %v2432 = vmul.f32 %v2296, %v2424
      %v2434 = vperm.slane %v846, 0
      %v2436 = vmul.f32 %v2425, %v2434
      %v2437 = vmul.f32 %v2426, %v2434
      %v2438 = vmul.f32 %v2427, %v2434
      %v2439 = vmul.f32 %v2428, %v2434
      %v2440 = vmul.f32 %v2429, %v2434
      %v2441 = vmul.f32 %v2430, %v2434
      %v2442 = vmul.f32 %v2431, %v2434
      %v2443 = vmul.f32 %v2432, %v2434
      %v2445 = vperm.slane %v847, 0
      %v2447 = vadd.f32 %v2436, %v2445
      %v2448 = vadd.f32 %v2437, %v2445
      %v2449 = vadd.f32 %v2438, %v2445
      %v2450 = vadd.f32 %v2439, %v2445
      %v2451 = vadd.f32 %v2440, %v2445
      %v2452 = vadd.f32 %v2441, %v2445
      %v2453 = vadd.f32 %v2442, %v2445
      %v2454 = vadd.f32 %v2443, %v2445
      %v2455 = vadd.f32 %v2447, %v1056
      %v2456 = vadd.f32 %v2448, %v1059
      %v2457 = vadd.f32 %v2449, %v1062
      %v2458 = vadd.f32 %v2450, %v1065
      %v2459 = vadd.f32 %v2451, %v1068
      %v2460 = vadd.f32 %v2452, %v1071
      %v2461 = vadd.f32 %v2453, %v1074
      %v2462 = vadd.f32 %v2454, %v1077
      %v2463 = vsel %vm879, %v2455, 0.0
      %2464 = vadd.xlane.f32.xlu0 %v2463
      %v2465 = vpop.xlane.xlu0 %2464
      %v2466 = vsel %vm879, %v2456, 0.0
      %2467 = vadd.xlane.f32.xlu0 %v2466
      %v2468 = vpop.xlane.xlu0 %2467
      %v2469 = vsel %vm879, %v2457, 0.0
      %2470 = vadd.xlane.f32.xlu0 %v2469
      %v2471 = vpop.xlane.xlu0 %2470
      %v2472 = vsel %vm879, %v2458, 0.0
      %2473 = vadd.xlane.f32.xlu0 %v2472
      %v2474 = vpop.xlane.xlu0 %2473
      %v2475 = vsel %vm879, %v2459, 0.0
      %2476 = vadd.xlane.f32.xlu0 %v2475
      %v2477 = vpop.xlane.xlu0 %2476
      %v2478 = vsel %vm879, %v2460, 0.0
      %2479 = vadd.xlane.f32.xlu0 %v2478
      %v2480 = vpop.xlane.xlu0 %2479
      %v2481 = vsel %vm879, %v2461, 0.0
      %2482 = vadd.xlane.f32.xlu0 %v2481
      %v2483 = vpop.xlane.xlu0 %2482
      %v2484 = vsel %vm879, %v2462, 0.0
      %2485 = vadd.xlane.f32.xlu0 %v2484
      %v2486 = vpop.xlane.xlu0 %2485
      %v2487 = vmul.f32 %v2465, %v2280
      %v2488 = vmul.f32 %v2468, %v2280
      %v2489 = vmul.f32 %v2471, %v2280
      %v2490 = vmul.f32 %v2474, %v2280
      %v2491 = vmul.f32 %v2477, %v2280
      %v2492 = vmul.f32 %v2480, %v2280
      %v2493 = vmul.f32 %v2483, %v2280
      %v2494 = vmul.f32 %v2486, %v2280
      %v2495 = vsub.f32 %v2455, %v2487
      %v2496 = vsub.f32 %v2456, %v2488
      %v2497 = vsub.f32 %v2457, %v2489
      %v2498 = vsub.f32 %v2458, %v2490
      %v2499 = vsub.f32 %v2459, %v2491
      %v2500 = vsub.f32 %v2460, %v2492
      %v2501 = vsub.f32 %v2461, %v2493
      %v2502 = vsub.f32 %v2462, %v2494
      %v2503 = vmul.f32 %v2495, %v2495
      %v2504 = vmul.f32 %v2496, %v2496
      %v2505 = vmul.f32 %v2497, %v2497
      %v2506 = vmul.f32 %v2498, %v2498
      %v2507 = vmul.f32 %v2499, %v2499
      %v2508 = vmul.f32 %v2500, %v2500
      %v2509 = vmul.f32 %v2501, %v2501
      %v2510 = vmul.f32 %v2502, %v2502
      %v2511 = vsel %vm879, %v2503, 0.0
      %2512 = vadd.xlane.f32.xlu0 %v2511
      %v2513 = vpop.xlane.xlu0 %2512
      %v2514 = vsel %vm879, %v2504, 0.0
      %2515 = vadd.xlane.f32.xlu0 %v2514
      %v2516 = vpop.xlane.xlu0 %2515
      %v2517 = vsel %vm879, %v2505, 0.0
      %2518 = vadd.xlane.f32.xlu0 %v2517
      %v2519 = vpop.xlane.xlu0 %2518
      %v2520 = vsel %vm879, %v2506, 0.0
      %2521 = vadd.xlane.f32.xlu0 %v2520
      %v2522 = vpop.xlane.xlu0 %2521
      %v2523 = vsel %vm879, %v2507, 0.0
      %2524 = vadd.xlane.f32.xlu0 %v2523
      %v2525 = vpop.xlane.xlu0 %2524
      %v2526 = vsel %vm879, %v2508, 0.0
      %2527 = vadd.xlane.f32.xlu0 %v2526
      %v2528 = vpop.xlane.xlu0 %2527
      %v2529 = vsel %vm879, %v2509, 0.0
      %2530 = vadd.xlane.f32.xlu0 %v2529
      %v2531 = vpop.xlane.xlu0 %2530
      %v2532 = vsel %vm879, %v2510, 0.0
      %2533 = vadd.xlane.f32.xlu0 %v2532
      %v2534 = vpop.xlane.xlu0 %2533
      %v2535 = vmul.f32 %v2513, %v2280
      %v2536 = vmul.f32 %v2516, %v2280
      %v2537 = vmul.f32 %v2519, %v2280
      %v2538 = vmul.f32 %v2522, %v2280
      %v2539 = vmul.f32 %v2525, %v2280
      %v2540 = vmul.f32 %v2528, %v2280
      %v2541 = vmul.f32 %v2531, %v2280
      %v2542 = vmul.f32 %v2534, %v2280
      %v2543 = vadd.f32 %v2535, 1e-05
      %v2544 = vadd.f32 %v2536, 1e-05
      %v2545 = vadd.f32 %v2537, 1e-05
      %v2546 = vadd.f32 %v2538, 1e-05
      %v2547 = vadd.f32 %v2539, 1e-05
      %v2548 = vadd.f32 %v2540, 1e-05
      %v2549 = vadd.f32 %v2541, 1e-05
      %v2550 = vadd.f32 %v2542, 1e-05
      %v2551 = vrsqrt.pop %v2543
      %v2552 = vmul.f32 %v2551, %v2543
      %v2553 = vmul.f32 %v2552, %v2551
      %v2554 = vmul.f32 0.5, %v2553
      %v2555 = vsub.f32 1.5, %v2554
      %v2556 = vmul.f32 %v2551, %v2555
      %vm2557 = vweird.f32 %v2543
      %vm2558 = vweird.f32 %v2551
      %vm2559 = vmor %vm2557, %vm2558
      %v2560 = vsel %vm2559, %v2551, %v2556
      %v2561 = vrsqrt.pop %v2544
      %v2562 = vmul.f32 %v2561, %v2544
      %v2563 = vmul.f32 %v2562, %v2561
      %v2564 = vmul.f32 0.5, %v2563
      %v2565 = vsub.f32 1.5, %v2564
      %v2566 = vmul.f32 %v2561, %v2565
      %vm2567 = vweird.f32 %v2544
      %vm2568 = vweird.f32 %v2561
      %vm2569 = vmor %vm2567, %vm2568
      %v2570 = vsel %vm2569, %v2561, %v2566
      %v2571 = vrsqrt.pop %v2545
      %v2572 = vmul.f32 %v2571, %v2545
      %v2573 = vmul.f32 %v2572, %v2571
      %v2574 = vmul.f32 0.5, %v2573
      %v2575 = vsub.f32 1.5, %v2574
      %v2576 = vmul.f32 %v2571, %v2575
      %vm2577 = vweird.f32 %v2545
      %vm2578 = vweird.f32 %v2571
      %vm2579 = vmor %vm2577, %vm2578
      %v2580 = vsel %vm2579, %v2571, %v2576
      %v2581 = vrsqrt.pop %v2546
      %v2582 = vmul.f32 %v2581, %v2546
      %v2583 = vmul.f32 %v2582, %v2581
      %v2584 = vmul.f32 0.5, %v2583
      %v2585 = vsub.f32 1.5, %v2584
      %v2586 = vmul.f32 %v2581, %v2585
      %vm2587 = vweird.f32 %v2546
      %vm2588 = vweird.f32 %v2581
      %vm2589 = vmor %vm2587, %vm2588
      %v2590 = vsel %vm2589, %v2581, %v2586
      %v2591 = vrsqrt.pop %v2547
      %v2592 = vmul.f32 %v2591, %v2547
      %v2593 = vmul.f32 %v2592, %v2591
      %v2594 = vmul.f32 0.5, %v2593
      %v2595 = vsub.f32 1.5, %v2594
      %v2596 = vmul.f32 %v2591, %v2595
      %vm2597 = vweird.f32 %v2547
      %vm2598 = vweird.f32 %v2591
      %vm2599 = vmor %vm2597, %vm2598
      %v2600 = vsel %vm2599, %v2591, %v2596
      %v2601 = vrsqrt.pop %v2548
      %v2602 = vmul.f32 %v2601, %v2548
      %v2603 = vmul.f32 %v2602, %v2601
      %v2604 = vmul.f32 0.5, %v2603
      %v2605 = vsub.f32 1.5, %v2604
      %v2606 = vmul.f32 %v2601, %v2605
      %vm2607 = vweird.f32 %v2548
      %vm2608 = vweird.f32 %v2601
      %vm2609 = vmor %vm2607, %vm2608
      %v2610 = vsel %vm2609, %v2601, %v2606
      %v2611 = vrsqrt.pop %v2549
      %v2612 = vmul.f32 %v2611, %v2549
      %v2613 = vmul.f32 %v2612, %v2611
      %v2614 = vmul.f32 0.5, %v2613
      %v2615 = vsub.f32 1.5, %v2614
      %v2616 = vmul.f32 %v2611, %v2615
      %vm2617 = vweird.f32 %v2549
      %vm2618 = vweird.f32 %v2611
      %vm2619 = vmor %vm2617, %vm2618
      %v2620 = vsel %vm2619, %v2611, %v2616
      %v2621 = vrsqrt.pop %v2550
      %v2622 = vmul.f32 %v2621, %v2550
      %v2623 = vmul.f32 %v2622, %v2621
      %v2624 = vmul.f32 0.5, %v2623
      %v2625 = vsub.f32 1.5, %v2624
      %v2626 = vmul.f32 %v2621, %v2625
      %vm2627 = vweird.f32 %v2550
      %vm2628 = vweird.f32 %v2621
      %vm2629 = vmor %vm2627, %vm2628
      %v2630 = vsel %vm2629, %v2621, %v2626
      %v2631 = vmul.f32 %v2495, %v2560
      %v2632 = vmul.f32 %v2496, %v2570
      %v2633 = vmul.f32 %v2497, %v2580
      %v2634 = vmul.f32 %v2498, %v2590
      %v2635 = vmul.f32 %v2499, %v2600
      %v2636 = vmul.f32 %v2500, %v2610
      %v2637 = vmul.f32 %v2501, %v2620
      %v2638 = vmul.f32 %v2502, %v2630
      %v2640 = vperm.slane %v858, 0
      %v2642 = vmul.f32 %v2631, %v2640
      %v2643 = vmul.f32 %v2632, %v2640
      %v2644 = vmul.f32 %v2633, %v2640
      %v2645 = vmul.f32 %v2634, %v2640
      %v2646 = vmul.f32 %v2635, %v2640
      %v2647 = vmul.f32 %v2636, %v2640
      %v2648 = vmul.f32 %v2637, %v2640
      %v2649 = vmul.f32 %v2638, %v2640
      %v2651 = vperm.slane %v859, 0
      %v2653 = vadd.f32 %v2642, %v2651
      %v2654 = vadd.f32 %v2643, %v2651
      %v2655 = vadd.f32 %v2644, %v2651
      %v2656 = vadd.f32 %v2645, %v2651
      %v2657 = vadd.f32 %v2646, %v2651
      %v2658 = vadd.f32 %v2647, %v2651
      %v2659 = vadd.f32 %v2648, %v2651
      %v2660 = vadd.f32 %v2649, %v2651
      %v2661 = vpack.c.bf16 %v2654, %v2653
      %v2662 = vpack.c.bf16 %v2656, %v2655
      %v2663 = vpack.c.bf16 %v2658, %v2657
      %v2664 = vpack.c.bf16 %v2660, %v2659
      %v2666 = vperm.slane %v864, 0
      %v2672 = vunpack.c.l.b16 %v860
      %v2673 = vunpack.c.l.b16 %v861
      %v2674 = vunpack.c.l.b16 %v862
      %v2675 = vunpack.c.l.b16 %v863
      %v2676 = vpack.c.b16 %v2673, %v2672
      %v2677 = vpack.c.b16 %v2675, %v2674
      %v2681 = vsel %vm879, %v2661, 0
      %v2684 = vsel %vm879, %v2662, 0
      %v2687 = vsel %vm879, %v2663, 0
      %v2690 = vsel %vm879, %v2664, 0
      %2692 = vmatpush.bf16.msra.mxu0 0
      %2693 = vmatpush.bf16.msra.mxu0 0
      %2694 = vmatpush.bf16.msra.mxu0 0
      %2695 = vmatpush.bf16.msra.mxu0 0
      %2696 = vmatpush.bf16.msra.mxu0 0
      %2697 = vmatpush.bf16.msra.mxu0 0
      %2698 = vmatpush.bf16.msra.mxu0 %v2677
      %2699 = vmatpush.bf16.msra.mxu0 %v2676
      %2700 = vmatmul.bf16.gmra.mxu0 %v2681
      %v2701 = vpop.f32.mrf.mxu0
      %v2702 = vadd.f32 %v2666, %v2701
      %v2703 = vpop.f32.mrf.mxu0
      %v2704 = vadd.f32 %v2666, %v2703
      %2705 = vmatmul.bf16.gmra.mxu0 %v2684
      %v2706 = vpop.f32.mrf.mxu0
      %v2707 = vadd.f32 %v2666, %v2706
      %v2708 = vpop.f32.mrf.mxu0
      %v2709 = vadd.f32 %v2666, %v2708
      %2710 = vmatmul.bf16.gmra.mxu0 %v2687
      %v2711 = vpop.f32.mrf.mxu0
      %v2712 = vadd.f32 %v2666, %v2711
      %v2713 = vpop.f32.mrf.mxu0
      %v2714 = vadd.f32 %v2666, %v2713
      %2715 = vmatmul.bf16.gmra.mxu0 %v2690
      %v2716 = vpop.f32.mrf.mxu0
      %v2717 = vadd.f32 %v2666, %v2716
      %v2718 = vpop.f32.mrf.mxu0
      %v2719 = vadd.f32 %v2666, %v2718
      %2720 = vdwg.mxu0
      %v2721 = vmul.f32 %v2702, 0.5
      %v2722 = vmul.f32 %v2704, 0.5
      %v2723 = vmul.f32 %v2707, 0.5
      %v2724 = vmul.f32 %v2709, 0.5
      %v2725 = vmul.f32 %v2712, 0.5
      %v2726 = vmul.f32 %v2714, 0.5
      %v2727 = vmul.f32 %v2717, 0.5
      %v2728 = vmul.f32 %v2719, 0.5
      %v2729 = vmul.f32 %v2702, 0.044715
      %v2730 = vmul.f32 %v2704, 0.044715
      %v2731 = vmul.f32 %v2707, 0.044715
      %v2732 = vmul.f32 %v2709, 0.044715
      %v2733 = vmul.f32 %v2712, 0.044715
      %v2734 = vmul.f32 %v2714, 0.044715
      %v2735 = vmul.f32 %v2717, 0.044715
      %v2736 = vmul.f32 %v2719, 0.044715
      %v2737 = vmul.f32 %v2729, %v2702
      %v2738 = vmul.f32 %v2730, %v2704
      %v2739 = vmul.f32 %v2731, %v2707
      %v2740 = vmul.f32 %v2732, %v2709
      %v2741 = vmul.f32 %v2733, %v2712
      %v2742 = vmul.f32 %v2734, %v2714
      %v2743 = vmul.f32 %v2735, %v2717
      %v2744 = vmul.f32 %v2736, %v2719
      %v2745 = vmul.f32 %v2737, %v2702
      %v2746 = vmul.f32 %v2738, %v2704
      %v2747 = vmul.f32 %v2739, %v2707
      %v2748 = vmul.f32 %v2740, %v2709
      %v2749 = vmul.f32 %v2741, %v2712
      %v2750 = vmul.f32 %v2742, %v2714
      %v2751 = vmul.f32 %v2743, %v2717
      %v2752 = vmul.f32 %v2744, %v2719
      %v2753 = vadd.f32 %v2702, %v2745
      %v2754 = vadd.f32 %v2704, %v2746
      %v2755 = vadd.f32 %v2707, %v2747
      %v2756 = vadd.f32 %v2709, %v2748
      %v2757 = vadd.f32 %v2712, %v2749
      %v2758 = vadd.f32 %v2714, %v2750
      %v2759 = vadd.f32 %v2717, %v2751
      %v2760 = vadd.f32 %v2719, %v2752
      %v2761 = vmul.f32 %v2753, 0.7978846
      %v2762 = vmul.f32 %v2754, 0.7978846
      %v2763 = vmul.f32 %v2755, 0.7978846
      %v2764 = vmul.f32 %v2756, 0.7978846
      %v2765 = vmul.f32 %v2757, 0.7978846
      %v2766 = vmul.f32 %v2758, 0.7978846
      %v2767 = vmul.f32 %v2759, 0.7978846
      %v2768 = vmul.f32 %v2760, 0.7978846
      %v2769 = vtanh.pop %v2761
      %v2770 = vtanh.pop %v2762
      %v2771 = vtanh.pop %v2763
      %v2772 = vtanh.pop %v2764
      %v2773 = vtanh.pop %v2765
      %v2774 = vtanh.pop %v2766
      %v2775 = vtanh.pop %v2767
      %v2776 = vtanh.pop %v2768
      %v2777 = vadd.f32 %v2769, 1.0
      %v2778 = vadd.f32 %v2770, 1.0
      %v2779 = vadd.f32 %v2771, 1.0
      %v2780 = vadd.f32 %v2772, 1.0
      %v2781 = vadd.f32 %v2773, 1.0
      %v2782 = vadd.f32 %v2774, 1.0
      %v2783 = vadd.f32 %v2775, 1.0
      %v2784 = vadd.f32 %v2776, 1.0
      %v2785 = vmul.f32 %v2721, %v2777
      %v2786 = vmul.f32 %v2722, %v2778
      %v2787 = vmul.f32 %v2723, %v2779
      %v2788 = vmul.f32 %v2724, %v2780
      %v2789 = vmul.f32 %v2725, %v2781
      %v2790 = vmul.f32 %v2726, %v2782
      %v2791 = vmul.f32 %v2727, %v2783
      %v2792 = vmul.f32 %v2728, %v2784
      %v2793 = vpack.c.bf16 %v2786, %v2785
      %v2794 = vpack.c.bf16 %v2788, %v2787
      %v2795 = vpack.c.bf16 %v2790, %v2789
      %v2796 = vpack.c.bf16 %v2792, %v2791
      %v2798 = vperm.slane %v873, 0
      %v2808 = vunpack.c.l.b16 %v865
      %v2809 = vunpack.c.l.b16 %v866
      %v2810 = vunpack.c.l.b16 %v867
      %v2811 = vunpack.c.l.b16 %v868
      %v2812 = vunpack.c.l.b16 %v869
      %v2813 = vunpack.c.l.b16 %v870
      %v2814 = vunpack.c.l.b16 %v871
      %v2815 = vunpack.c.l.b16 %v872
      %v2816 = vpack.c.b16 %v2809, %v2808
      %v2817 = vpack.c.b16 %v2811, %v2810
      %v2818 = vpack.c.b16 %v2813, %v2812
      %v2819 = vpack.c.b16 %v2815, %v2814
      %v2825 = vsel %vm945, %v2793, 0
      %v2828 = vsel %vm945, %v2794, 0
      %v2831 = vsel %vm945, %v2795, 0
      %v2834 = vsel %vm945, %v2796, 0
      %2836 = vmatpush.bf16.msra.mxu0 0
      %2837 = vmatpush.bf16.msra.mxu0 0
      %2838 = vmatpush.bf16.msra.mxu0 0
      %2839 = vmatpush.bf16.msra.mxu0 0
      %2840 = vmatpush.bf16.msra.mxu0 %v2819
      %2841 = vmatpush.bf16.msra.mxu0 %v2818
      %2842 = vmatpush.bf16.msra.mxu0 %v2817
      %2843 = vmatpush.bf16.msra.mxu0 %v2816
      %2844 = vmatmul.bf16.gmra.mxu0 %v2825
      %v2845 = vpop.f32.mrf.mxu0
      %v2846 = vadd.f32 %v2798, %v2845
      %v2847 = vpop.f32.mrf.mxu0
      %v2848 = vadd.f32 %v2798, %v2847
      %2849 = vmatmul.bf16.gmra.mxu0 %v2828
      %v2850 = vpop.f32.mrf.mxu0
      %v2851 = vadd.f32 %v2798, %v2850
      %v2852 = vpop.f32.mrf.mxu0
      %v2853 = vadd.f32 %v2798, %v2852
      %2854 = vmatmul.bf16.gmra.mxu0 %v2831
      %v2855 = vpop.f32.mrf.mxu0
      %v2856 = vadd.f32 %v2798, %v2855
      %v2857 = vpop.f32.mrf.mxu0
      %v2858 = vadd.f32 %v2798, %v2857
      %2859 = vmatmul.bf16.gmra.mxu0 %v2834
      %v2860 = vpop.f32.mrf.mxu0
      %v2861 = vadd.f32 %v2798, %v2860
      %v2862 = vpop.f32.mrf.mxu0
      %v2863 = vadd.f32 %v2798, %v2862
      %2864 = vdwg.mxu0
      %v2865 = vadd.f32 %v2653, %v2846
      %v2866 = vadd.f32 %v2654, %v2848
      %v2867 = vadd.f32 %v2655, %v2851
      %v2868 = vadd.f32 %v2656, %v2853
      %v2869 = vadd.f32 %v2657, %v2856
      %v2870 = vadd.f32 %v2658, %v2858
      %v2871 = vadd.f32 %v2659, %v2861
      %v2872 = vadd.f32 %v2660, %v2863
      %v2873 = vsel %vm879, %v2865, 0.0
      %2874 = vadd.xlane.f32.xlu0 %v2873
      %v2875 = vpop.xlane.xlu0 %2874
      %v2876 = vsel %vm879, %v2866, 0.0
      %2877 = vadd.xlane.f32.xlu0 %v2876
      %v2878 = vpop.xlane.xlu0 %2877
      %v2879 = vsel %vm879, %v2867, 0.0
      %2880 = vadd.xlane.f32.xlu0 %v2879
      %v2881 = vpop.xlane.xlu0 %2880
      %v2882 = vsel %vm879, %v2868, 0.0
      %2883 = vadd.xlane.f32.xlu0 %v2882
      %v2884 = vpop.xlane.xlu0 %2883
      %v2885 = vsel %vm879, %v2869, 0.0
      %2886 = vadd.xlane.f32.xlu0 %v2885
      %v2887 = vpop.xlane.xlu0 %2886
      %v2888 = vsel %vm879, %v2870, 0.0
      %2889 = vadd.xlane.f32.xlu0 %v2888
      %v2890 = vpop.xlane.xlu0 %2889
      %v2891 = vsel %vm879, %v2871, 0.0
      %2892 = vadd.xlane.f32.xlu0 %v2891
      %v2893 = vpop.xlane.xlu0 %2892
      %v2894 = vsel %vm879, %v2872, 0.0
      %2895 = vadd.xlane.f32.xlu0 %v2894
      %v2896 = vpop.xlane.xlu0 %2895
      %v2897 = vmul.f32 %v2875, %v2280
      %v2898 = vmul.f32 %v2878, %v2280
      %v2899 = vmul.f32 %v2881, %v2280
      %v2900 = vmul.f32 %v2884, %v2280
      %v2901 = vmul.f32 %v2887, %v2280
      %v2902 = vmul.f32 %v2890, %v2280
      %v2903 = vmul.f32 %v2893, %v2280
      %v2904 = vmul.f32 %v2896, %v2280
      %v2905 = vsub.f32 %v2865, %v2897
      %v2906 = vsub.f32 %v2866, %v2898
      %v2907 = vsub.f32 %v2867, %v2899
      %v2908 = vsub.f32 %v2868, %v2900
      %v2909 = vsub.f32 %v2869, %v2901
      %v2910 = vsub.f32 %v2870, %v2902
      %v2911 = vsub.f32 %v2871, %v2903
      %v2912 = vsub.f32 %v2872, %v2904
      %v2913 = vmul.f32 %v2905, %v2905
      %v2914 = vmul.f32 %v2906, %v2906
      %v2915 = vmul.f32 %v2907, %v2907
      %v2916 = vmul.f32 %v2908, %v2908
      %v2917 = vmul.f32 %v2909, %v2909
      %v2918 = vmul.f32 %v2910, %v2910
      %v2919 = vmul.f32 %v2911, %v2911
      %v2920 = vmul.f32 %v2912, %v2912
      %v2921 = vsel %vm879, %v2913, 0.0
      %2922 = vadd.xlane.f32.xlu0 %v2921
      %v2923 = vpop.xlane.xlu0 %2922
      %v2924 = vsel %vm879, %v2914, 0.0
      %2925 = vadd.xlane.f32.xlu0 %v2924
      %v2926 = vpop.xlane.xlu0 %2925
      %v2927 = vsel %vm879, %v2915, 0.0
      %2928 = vadd.xlane.f32.xlu0 %v2927
      %v2929 = vpop.xlane.xlu0 %2928
      %v2930 = vsel %vm879, %v2916, 0.0
      %2931 = vadd.xlane.f32.xlu0 %v2930
      %v2932 = vpop.xlane.xlu0 %2931
      %v2933 = vsel %vm879, %v2917, 0.0
      %2934 = vadd.xlane.f32.xlu0 %v2933
      %v2935 = vpop.xlane.xlu0 %2934
      %v2936 = vsel %vm879, %v2918, 0.0
      %2937 = vadd.xlane.f32.xlu0 %v2936
      %v2938 = vpop.xlane.xlu0 %2937
      %v2939 = vsel %vm879, %v2919, 0.0
      %2940 = vadd.xlane.f32.xlu0 %v2939
      %v2941 = vpop.xlane.xlu0 %2940
      %v2942 = vsel %vm879, %v2920, 0.0
      %2943 = vadd.xlane.f32.xlu0 %v2942
      %v2944 = vpop.xlane.xlu0 %2943
      %v2945 = vmul.f32 %v2923, %v2280
      %v2946 = vmul.f32 %v2926, %v2280
      %v2947 = vmul.f32 %v2929, %v2280
      %v2948 = vmul.f32 %v2932, %v2280
      %v2949 = vmul.f32 %v2935, %v2280
      %v2950 = vmul.f32 %v2938, %v2280
      %v2951 = vmul.f32 %v2941, %v2280
      %v2952 = vmul.f32 %v2944, %v2280
      %v2953 = vadd.f32 %v2945, 1e-05
      %v2954 = vadd.f32 %v2946, 1e-05
      %v2955 = vadd.f32 %v2947, 1e-05
      %v2956 = vadd.f32 %v2948, 1e-05
      %v2957 = vadd.f32 %v2949, 1e-05
      %v2958 = vadd.f32 %v2950, 1e-05
      %v2959 = vadd.f32 %v2951, 1e-05
      %v2960 = vadd.f32 %v2952, 1e-05
      %v2961 = vrsqrt.pop %v2953
      %v2962 = vmul.f32 %v2961, %v2953
      %v2963 = vmul.f32 %v2962, %v2961
      %v2964 = vmul.f32 0.5, %v2963
      %v2965 = vsub.f32 1.5, %v2964
      %v2966 = vmul.f32 %v2961, %v2965
      %vm2967 = vweird.f32 %v2953
      %vm2968 = vweird.f32 %v2961
      %vm2969 = vmor %vm2967, %vm2968
      %v2970 = vsel %vm2969, %v2961, %v2966
      %v2971 = vrsqrt.pop %v2954
      %v2972 = vmul.f32 %v2971, %v2954
      %v2973 = vmul.f32 %v2972, %v2971
      %v2974 = vmul.f32 0.5, %v2973
      %v2975 = vsub.f32 1.5, %v2974
      %v2976 = vmul.f32 %v2971, %v2975
      %vm2977 = vweird.f32 %v2954
      %vm2978 = vweird.f32 %v2971
      %vm2979 = vmor %vm2977, %vm2978
      %v2980 = vsel %vm2979, %v2971, %v2976
      %v2981 = vrsqrt.pop %v2955
      %v2982 = vmul.f32 %v2981, %v2955
      %v2983 = vmul.f32 %v2982, %v2981
      %v2984 = vmul.f32 0.5, %v2983
      %v2985 = vsub.f32 1.5, %v2984
      %v2986 = vmul.f32 %v2981, %v2985
      %vm2987 = vweird.f32 %v2955
      %vm2988 = vweird.f32 %v2981
      %vm2989 = vmor %vm2987, %vm2988
      %v2990 = vsel %vm2989, %v2981, %v2986
      %v2991 = vrsqrt.pop %v2956
      %v2992 = vmul.f32 %v2991, %v2956
      %v2993 = vmul.f32 %v2992, %v2991
      %v2994 = vmul.f32 0.5, %v2993
      %v2995 = vsub.f32 1.5, %v2994
      %v2996 = vmul.f32 %v2991, %v2995
      %vm2997 = vweird.f32 %v2956
      %vm2998 = vweird.f32 %v2991
      %vm2999 = vmor %vm2997, %vm2998
      %v3000 = vsel %vm2999, %v2991, %v2996
      %v3001 = vrsqrt.pop %v2957
      %v3002 = vmul.f32 %v3001, %v2957
      %v3003 = vmul.f32 %v3002, %v3001
      %v3004 = vmul.f32 0.5, %v3003
      %v3005 = vsub.f32 1.5, %v3004
      %v3006 = vmul.f32 %v3001, %v3005
      %vm3007 = vweird.f32 %v2957
      %vm3008 = vweird.f32 %v3001
      %vm3009 = vmor %vm3007, %vm3008
      %v3010 = vsel %vm3009, %v3001, %v3006
      %v3011 = vrsqrt.pop %v2958
      %v3012 = vmul.f32 %v3011, %v2958
      %v3013 = vmul.f32 %v3012, %v3011
      %v3014 = vmul.f32 0.5, %v3013
      %v3015 = vsub.f32 1.5, %v3014
      %v3016 = vmul.f32 %v3011, %v3015
      %vm3017 = vweird.f32 %v2958
      %vm3018 = vweird.f32 %v3011
      %vm3019 = vmor %vm3017, %vm3018
      %v3020 = vsel %vm3019, %v3011, %v3016
      %v3021 = vrsqrt.pop %v2959
      %v3022 = vmul.f32 %v3021, %v2959
      %v3023 = vmul.f32 %v3022, %v3021
      %v3024 = vmul.f32 0.5, %v3023
      %v3025 = vsub.f32 1.5, %v3024
      %v3026 = vmul.f32 %v3021, %v3025
      %vm3027 = vweird.f32 %v2959
      %vm3028 = vweird.f32 %v3021
      %vm3029 = vmor %vm3027, %vm3028
      %v3030 = vsel %vm3029, %v3021, %v3026
      %v3031 = vrsqrt.pop %v2960
      %v3032 = vmul.f32 %v3031, %v2960
      %v3033 = vmul.f32 %v3032, %v3031
      %v3034 = vmul.f32 0.5, %v3033
      %v3035 = vsub.f32 1.5, %v3034
      %v3036 = vmul.f32 %v3031, %v3035
      %vm3037 = vweird.f32 %v2960
      %vm3038 = vweird.f32 %v3031
      %vm3039 = vmor %vm3037, %vm3038
      %v3040 = vsel %vm3039, %v3031, %v3036
      %v3041 = vmul.f32 %v2905, %v2970
      %v3042 = vmul.f32 %v2906, %v2980
      %v3043 = vmul.f32 %v2907, %v2990
      %v3044 = vmul.f32 %v2908, %v3000
      %v3045 = vmul.f32 %v2909, %v3010
      %v3046 = vmul.f32 %v2910, %v3020
      %v3047 = vmul.f32 %v2911, %v3030
      %v3048 = vmul.f32 %v2912, %v3040
      %v3050 = vperm.slane %v874, 0
      %v3052 = vmul.f32 %v3041, %v3050
      %v3053 = vmul.f32 %v3042, %v3050
      %v3054 = vmul.f32 %v3043, %v3050
      %v3055 = vmul.f32 %v3044, %v3050
      %v3056 = vmul.f32 %v3045, %v3050
      %v3057 = vmul.f32 %v3046, %v3050
      %v3058 = vmul.f32 %v3047, %v3050
      %v3059 = vmul.f32 %v3048, %v3050
      %v3061 = vperm.slane %v875, 0
      %v3063 = vadd.f32 %v3052, %v3061
      %v3064 = vadd.f32 %v3053, %v3061
      %v3065 = vadd.f32 %v3054, %v3061
      %v3066 = vadd.f32 %v3055, %v3061
      %v3067 = vadd.f32 %v3056, %v3061
      %v3068 = vadd.f32 %v3057, %v3061
      %v3069 = vadd.f32 %v3058, %v3061
      %v3070 = vadd.f32 %v3059, %v3061
      %v3071 = vadd.f32 %v3063, %v807
      %v3072 = vadd.f32 %v3064, %v808
      %v3073 = vadd.f32 %v3065, %v809
      %v3074 = vadd.f32 %v3066, %v810
      %v3075 = vadd.f32 %v3067, %v811
      %v3076 = vadd.f32 %v3068, %v812
      %v3077 = vadd.f32 %v3069, %v813
      %v3078 = vadd.f32 %v3070, %v814
      %v3079 = vpack.c.bf16 %v3072, %v3071
      %v3080 = vpack.c.bf16 %v3074, %v3073
      %v3081 = vpack.c.bf16 %v3076, %v3075
      %v3082 = vpack.c.bf16 %v3078, %v3077
      %v3084 = vsel %vm879, %v3079, 0
      %v3087 = vsel %vm879, %v3080, 0
      %v3090 = vsel %vm879, %v3081, 0
      %v3093 = vsel %vm879, %v3082, 0
      %3095 = vmatpush.bf16.msra.mxu0 0
      %3096 = vmatpush.bf16.msra.mxu0 0
      %3097 = vmatpush.bf16.msra.mxu0 0
      %3098 = vmatpush.bf16.msra.mxu0 0
      %3099 = vmatpush.bf16.msra.mxu0 0
      %3100 = vmatpush.bf16.msra.mxu0 0
      %3101 = vmatpush.bf16.msra.mxu0 %v1103
      %3102 = vmatpush.bf16.msra.mxu0 %v1102
      %3103 = vmatmul.bf16.gmra.mxu0 %v3084
      %v3104 = vpop.f32.mrf.mxu0
      %v3105 = vadd.f32 %v1092, %v3104
      %v3106 = vpop.f32.mrf.mxu0
      %v3107 = vadd.f32 %v1092, %v3106
      %3108 = vmatmul.bf16.gmra.mxu0 %v3087
      %v3109 = vpop.f32.mrf.mxu0
      %v3110 = vadd.f32 %v1092, %v3109
      %v3111 = vpop.f32.mrf.mxu0
      %v3112 = vadd.f32 %v1092, %v3111
      %3113 = vmatmul.bf16.gmra.mxu0 %v3090
      %v3114 = vpop.f32.mrf.mxu0
      %v3115 = vadd.f32 %v1092, %v3114
      %v3116 = vpop.f32.mrf.mxu0
      %v3117 = vadd.f32 %v1092, %v3116
      %3118 = vmatmul.bf16.gmra.mxu0 %v3093
      %v3119 = vpop.f32.mrf.mxu0
      %v3120 = vadd.f32 %v1092, %v3119
      %v3121 = vpop.f32.mrf.mxu0
      %v3122 = vadd.f32 %v1092, %v3121
      %3123 = vdwg.mxu0
      %v3124 = vpack.c.bf16 %v3064, %v3063
      %v3125 = vpack.c.bf16 %v3066, %v3065
      %v3126 = vpack.c.bf16 %v3068, %v3067
      %v3127 = vpack.c.bf16 %v3070, %v3069
      %v3129 = vsel %vm879, %v3124, 0
      %v3132 = vsel %vm879, %v3125, 0
      %v3135 = vsel %vm879, %v3126, 0
      %v3138 = vsel %vm879, %v3127, 0
      %3140 = vmatpush.bf16.msra.mxu0 0
      %3141 = vmatpush.bf16.msra.mxu0 0
      %3142 = vmatpush.bf16.msra.mxu0 0
      %3143 = vmatpush.bf16.msra.mxu0 0
      %3144 = vmatpush.bf16.msra.mxu0 0
      %3145 = vmatpush.bf16.msra.mxu0 0
      %3146 = vmatpush.bf16.msra.mxu0 %v1163
      %3147 = vmatpush.bf16.msra.mxu0 %v1162
      %3148 = vmatmul.bf16.gmra.mxu0 %v3129
      %v3149 = vpop.f32.mrf.mxu0
      %v3150 = vadd.f32 %v1152, %v3149
      %v3151 = vpop.f32.mrf.mxu0
      %v3152 = vadd.f32 %v1152, %v3151
      %3153 = vmatmul.bf16.gmra.mxu0 %v3132
      %v3154 = vpop.f32.mrf.mxu0
      %v3155 = vadd.f32 %v1152, %v3154
      %v3156 = vpop.f32.mrf.mxu0
      %v3157 = vadd.f32 %v1152, %v3156
      %3158 = vmatmul.bf16.gmra.mxu0 %v3135
      %v3159 = vpop.f32.mrf.mxu0
      %v3160 = vadd.f32 %v1152, %v3159
      %v3161 = vpop.f32.mrf.mxu0
      %v3162 = vadd.f32 %v1152, %v3161
      %3163 = vmatmul.bf16.gmra.mxu0 %v3138
      %v3164 = vpop.f32.mrf.mxu0
      %v3165 = vadd.f32 %v1152, %v3164
      %v3166 = vpop.f32.mrf.mxu0
      %v3167 = vadd.f32 %v1152, %v3166
      %3168 = vdwg.mxu0
      %v3169 = vpack.c.bf16 %v3107, %v3105
      %v3170 = vpack.c.bf16 %v3112, %v3110
      %v3171 = vpack.c.bf16 %v3117, %v3115
      %v3172 = vpack.c.bf16 %v3122, %v3120
      %v3173 = vpack.c.bf16 %v3152, %v3150
      %v3174 = vpack.c.bf16 %v3157, %v3155
      %v3175 = vpack.c.bf16 %v3162, %v3160
      %v3176 = vpack.c.bf16 %v3167, %v3165
      %3181 = vrot.lane.b32.xlu0 %v3169, 96
      %v3182 = vpop.permute.xlu0 %3181
      %3183 = vrot.lane.b32.xlu0 %v3170, 96
      %v3184 = vpop.permute.xlu0 %3183
      %3185 = vrot.lane.b32.xlu0 %v3171, 96
      %v3186 = vpop.permute.xlu0 %3185
      %3187 = vrot.lane.b32.xlu0 %v3172, 96
      %v3188 = vpop.permute.xlu0 %3187
      %v3190 = vsel %vm1227, %v3169, 0
      %v3193 = vsel %vm1227, %v3170, 0
      %v3196 = vsel %vm1227, %v3171, 0
      %v3199 = vsel %vm1227, %v3172, 0
      %v3202 = vsel %vm1227, %v3182, 0
      %v3205 = vsel %vm1227, %v3184, 0
      %v3208 = vsel %vm1227, %v3186, 0
      %v3211 = vsel %vm1227, %v3188, 0
      %3213 = vmatpush.bf16.xpose.msra.mxu0 0
      %3214 = vmatpush.bf16.xpose.msra.mxu0 0
      %3215 = vmatpush.bf16.xpose.msra.mxu0 0
      %3216 = vmatpush.bf16.xpose.msra.mxu0 0
      %3217 = vmatpush.bf16.xpose.msra.mxu0 %v3211
      %3218 = vmatpush.bf16.xpose.msra.mxu0 %v3208
      %3219 = vmatpush.bf16.xpose.msra.mxu0 %v3205
      %3220 = vmatpush.bf16.xpose.msra.mxu0 %v3202
      %3221 = vmatmul.bf16.gmra.mxu0 %v3190
      %v3222 = vpop.f32.mrf.mxu0
      %v3223 = vadd.f32 0.0, %v3222
      %v3224 = vpop.f32.mrf.mxu0
      %v3225 = vadd.f32 0.0, %v3224
      %3226 = vmatmul.bf16.gmra.mxu0 %v3193
      %v3227 = vpop.f32.mrf.mxu0
      %v3228 = vadd.f32 0.0, %v3227
      %v3229 = vpop.f32.mrf.mxu0
      %v3230 = vadd.f32 0.0, %v3229
      %3231 = vmatmul.bf16.gmra.mxu0 %v3196
      %v3232 = vpop.f32.mrf.mxu0
      %v3233 = vadd.f32 0.0, %v3232
      %v3234 = vpop.f32.mrf.mxu0
      %v3235 = vadd.f32 0.0, %v3234
      %3236 = vmatmul.bf16.gmra.mxu0 %v3199
      %v3237 = vpop.f32.mrf.mxu0
      %v3238 = vadd.f32 0.0, %v3237
      %v3239 = vpop.f32.mrf.mxu0
      %v3240 = vadd.f32 0.0, %v3239
      %3241 = vdwg.mxu0
      %v3242 = vsel %vm945, %v3223, -inf
      %3243 = vmax.xlane.f32.xlu0 %v3242
      %v3244 = vpop.xlane.xlu0 %3243
      %v3245 = vsel %vm945, %v3225, -inf
      %3246 = vmax.xlane.f32.xlu0 %v3245
      %v3247 = vpop.xlane.xlu0 %3246
      %v3248 = vsel %vm945, %v3228, -inf
      %3249 = vmax.xlane.f32.xlu0 %v3248
      %v3250 = vpop.xlane.xlu0 %3249
      %v3251 = vsel %vm945, %v3230, -inf
      %3252 = vmax.xlane.f32.xlu0 %v3251
      %v3253 = vpop.xlane.xlu0 %3252
      %v3254 = vsel %vm945, %v3233, -inf
      %3255 = vmax.xlane.f32.xlu0 %v3254
      %v3256 = vpop.xlane.xlu0 %3255
      %v3257 = vsel %vm945, %v3235, -inf
      %3258 = vmax.xlane.f32.xlu0 %v3257
      %v3259 = vpop.xlane.xlu0 %3258
      %v3260 = vsel %vm945, %v3238, -inf
      %3261 = vmax.xlane.f32.xlu0 %v3260
      %v3262 = vpop.xlane.xlu0 %3261
      %v3263 = vsel %vm945, %v3240, -inf
      %3264 = vmax.xlane.f32.xlu0 %v3263
      %v3265 = vpop.xlane.xlu0 %3264
      %v3266 = vsub.f32 %v3223, %v3244
      %v3267 = vsub.f32 %v3225, %v3247
      %v3268 = vsub.f32 %v3228, %v3250
      %v3269 = vsub.f32 %v3230, %v3253
      %v3270 = vsub.f32 %v3233, %v3256
      %v3271 = vsub.f32 %v3235, %v3259
      %v3272 = vsub.f32 %v3238, %v3262
      %v3273 = vsub.f32 %v3240, %v3265
      %v3274 = vmul.f32 %v3266, 1.442695
      %v3275 = vpow.pop %v3274
      %v3276 = vmul.f32 %v3267, 1.442695
      %v3277 = vpow.pop %v3276
      %v3278 = vmul.f32 %v3268, 1.442695
      %v3279 = vpow.pop %v3278
      %v3280 = vmul.f32 %v3269, 1.442695
      %v3281 = vpow.pop %v3280
      %v3282 = vmul.f32 %v3270, 1.442695
      %v3283 = vpow.pop %v3282
      %v3284 = vmul.f32 %v3271, 1.442695
      %v3285 = vpow.pop %v3284
      %v3286 = vmul.f32 %v3272, 1.442695
      %v3287 = vpow.pop %v3286
      %v3288 = vmul.f32 %v3273, 1.442695
      %v3289 = vpow.pop %v3288
      %v3290 = vsel %vm945, %v3275, 0.0
      %3291 = vadd.xlane.f32.xlu0 %v3290
      %v3292 = vpop.xlane.xlu0 %3291
      %v3293 = vsel %vm945, %v3277, 0.0
      %3294 = vadd.xlane.f32.xlu0 %v3293
      %v3295 = vpop.xlane.xlu0 %3294
      %v3296 = vsel %vm945, %v3279, 0.0
      %3297 = vadd.xlane.f32.xlu0 %v3296
      %v3298 = vpop.xlane.xlu0 %3297
      %v3299 = vsel %vm945, %v3281, 0.0
      %3300 = vadd.xlane.f32.xlu0 %v3299
      %v3301 = vpop.xlane.xlu0 %3300
      %v3302 = vsel %vm945, %v3283, 0.0
      %3303 = vadd.xlane.f32.xlu0 %v3302
      %v3304 = vpop.xlane.xlu0 %3303
      %v3305 = vsel %vm945, %v3285, 0.0
      %3306 = vadd.xlane.f32.xlu0 %v3305
      %v3307 = vpop.xlane.xlu0 %3306
      %v3308 = vsel %vm945, %v3287, 0.0
      %3309 = vadd.xlane.f32.xlu0 %v3308
      %v3310 = vpop.xlane.xlu0 %3309
      %v3311 = vsel %vm945, %v3289, 0.0
      %3312 = vadd.xlane.f32.xlu0 %v3311
      %v3313 = vpop.xlane.xlu0 %3312
      %v3314 = vpack.c.bf16 %v3277, %v3275
      %v3315 = vpack.c.bf16 %v3281, %v3279
      %v3316 = vpack.c.bf16 %v3285, %v3283
      %v3317 = vpack.c.bf16 %v3289, %v3287
      %v3319 = vsel %vm945, %v3314, 0
      %v3322 = vsel %vm945, %v3315, 0
      %v3325 = vsel %vm945, %v3316, 0
      %v3328 = vsel %vm945, %v3317, 0
      %3330 = vmatpush.bf16.msra.mxu0 0
      %3331 = vmatpush.bf16.msra.mxu0 0
      %3332 = vmatpush.bf16.msra.mxu0 0
      %3333 = vmatpush.bf16.msra.mxu0 0
      %3334 = vmatpush.bf16.msra.mxu0 %v3176
      %3335 = vmatpush.bf16.msra.mxu0 %v3175
      %3336 = vmatpush.bf16.msra.mxu0 %v3174
      %3337 = vmatpush.bf16.msra.mxu0 %v3173
      %3338 = vmatmul.bf16.gmra.mxu0 %v3319
      %v3339 = vpop.f32.mrf.mxu0
      %v3340 = vadd.f32 0.0, %v3339
      %v3341 = vpop.f32.mrf.mxu0
      %v3342 = vadd.f32 0.0, %v3341
      %3343 = vmatmul.bf16.gmra.mxu0 %v3322
      %v3344 = vpop.f32.mrf.mxu0
      %v3345 = vadd.f32 0.0, %v3344
      %v3346 = vpop.f32.mrf.mxu0
      %v3347 = vadd.f32 0.0, %v3346
      %3348 = vmatmul.bf16.gmra.mxu0 %v3325
      %v3349 = vpop.f32.mrf.mxu0
      %v3350 = vadd.f32 0.0, %v3349
      %v3351 = vpop.f32.mrf.mxu0
      %v3352 = vadd.f32 0.0, %v3351
      %3353 = vmatmul.bf16.gmra.mxu0 %v3328
      %v3354 = vpop.f32.mrf.mxu0
      %v3355 = vadd.f32 0.0, %v3354
      %v3356 = vpop.f32.mrf.mxu0
      %v3357 = vadd.f32 0.0, %v3356
      %3358 = vdwg.mxu0
      %v3359 = vrcp.pop %v3292
      %v3360 = vrcp.pop %v3295
      %v3361 = vrcp.pop %v3298
      %v3362 = vrcp.pop %v3301
      %v3363 = vrcp.pop %v3304
      %v3364 = vrcp.pop %v3307
      %v3365 = vrcp.pop %v3310
      %v3366 = vrcp.pop %v3313
      %v3367 = vmul.f32 %v3340, %v3359
      %v3368 = vmul.f32 %v3342, %v3360
      %v3369 = vmul.f32 %v3345, %v3361
      %v3370 = vmul.f32 %v3347, %v3362
      %v3371 = vmul.f32 %v3350, %v3363
      %v3372 = vmul.f32 %v3352, %v3364
      %v3373 = vmul.f32 %v3355, %v3365
      %v3374 = vmul.f32 %v3357, %v3366
      %3375 = vrot.lane.b32.xlu0 %v3169, 120
      %v3376 = vpop.permute.xlu0 %3375
      %3377 = vrot.lane.b32.xlu0 %v3170, 120
      %v3378 = vpop.permute.xlu0 %3377
      %3379 = vrot.lane.b32.xlu0 %v3171, 120
      %v3380 = vpop.permute.xlu0 %3379
      %3381 = vrot.lane.b32.xlu0 %v3172, 120
      %v3382 = vpop.permute.xlu0 %3381
      %3383 = vrot.lane.b32.xlu0 %v3169, 88
      %v3384 = vpop.permute.xlu0 %3383
      %3385 = vrot.lane.b32.xlu0 %v3170, 88
      %v3386 = vpop.permute.xlu0 %3385
      %3387 = vrot.lane.b32.xlu0 %v3171, 88
      %v3388 = vpop.permute.xlu0 %3387
      %3389 = vrot.lane.b32.xlu0 %v3172, 88
      %v3390 = vpop.permute.xlu0 %3389
      %v3392 = vsel %vm1227, %v3376, 0
      %v3395 = vsel %vm1227, %v3378, 0
      %v3398 = vsel %vm1227, %v3380, 0
      %v3401 = vsel %vm1227, %v3382, 0
      %v3404 = vsel %vm1227, %v3384, 0
      %v3407 = vsel %vm1227, %v3386, 0
      %v3410 = vsel %vm1227, %v3388, 0
      %v3413 = vsel %vm1227, %v3390, 0
      %3415 = vmatpush.bf16.xpose.msra.mxu0 0
      %3416 = vmatpush.bf16.xpose.msra.mxu0 0
      %3417 = vmatpush.bf16.xpose.msra.mxu0 0
      %3418 = vmatpush.bf16.xpose.msra.mxu0 0
      %3419 = vmatpush.bf16.xpose.msra.mxu0 %v3413
      %3420 = vmatpush.bf16.xpose.msra.mxu0 %v3410
      %3421 = vmatpush.bf16.xpose.msra.mxu0 %v3407
      %3422 = vmatpush.bf16.xpose.msra.mxu0 %v3404
      %3423 = vmatmul.bf16.gmra.mxu0 %v3392
      %v3424 = vpop.f32.mrf.mxu0
      %v3425 = vadd.f32 0.0, %v3424
      %v3426 = vpop.f32.mrf.mxu0
      %v3427 = vadd.f32 0.0, %v3426
      %3428 = vmatmul.bf16.gmra.mxu0 %v3395
      %v3429 = vpop.f32.mrf.mxu0
      %v3430 = vadd.f32 0.0, %v3429
      %v3431 = vpop.f32.mrf.mxu0
      %v3432 = vadd.f32 0.0, %v3431
      %3433 = vmatmul.bf16.gmra.mxu0 %v3398
      %v3434 = vpop.f32.mrf.mxu0
      %v3435 = vadd.f32 0.0, %v3434
      %v3436 = vpop.f32.mrf.mxu0
      %v3437 = vadd.f32 0.0, %v3436
      %3438 = vmatmul.bf16.gmra.mxu0 %v3401
      %v3439 = vpop.f32.mrf.mxu0
      %v3440 = vadd.f32 0.0, %v3439
      %v3441 = vpop.f32.mrf.mxu0
      %v3442 = vadd.f32 0.0, %v3441
      %3443 = vdwg.mxu0
      %v3444 = vsel %vm945, %v3425, -inf
      %3445 = vmax.xlane.f32.xlu0 %v3444
      %v3446 = vpop.xlane.xlu0 %3445
      %v3447 = vsel %vm945, %v3427, -inf
      %3448 = vmax.xlane.f32.xlu0 %v3447
      %v3449 = vpop.xlane.xlu0 %3448
      %v3450 = vsel %vm945, %v3430, -inf
      %3451 = vmax.xlane.f32.xlu0 %v3450
      %v3452 = vpop.xlane.xlu0 %3451
      %v3453 = vsel %vm945, %v3432, -inf
      %3454 = vmax.xlane.f32.xlu0 %v3453
      %v3455 = vpop.xlane.xlu0 %3454
      %v3456 = vsel %vm945, %v3435, -inf
      %3457 = vmax.xlane.f32.xlu0 %v3456
      %v3458 = vpop.xlane.xlu0 %3457
      %v3459 = vsel %vm945, %v3437, -inf
      %3460 = vmax.xlane.f32.xlu0 %v3459
      %v3461 = vpop.xlane.xlu0 %3460
      %v3462 = vsel %vm945, %v3440, -inf
      %3463 = vmax.xlane.f32.xlu0 %v3462
      %v3464 = vpop.xlane.xlu0 %3463
      %v3465 = vsel %vm945, %v3442, -inf
      %3466 = vmax.xlane.f32.xlu0 %v3465
      %v3467 = vpop.xlane.xlu0 %3466
      %v3468 = vsub.f32 %v3425, %v3446
      %v3469 = vsub.f32 %v3427, %v3449
      %v3470 = vsub.f32 %v3430, %v3452
      %v3471 = vsub.f32 %v3432, %v3455
      %v3472 = vsub.f32 %v3435, %v3458
      %v3473 = vsub.f32 %v3437, %v3461
      %v3474 = vsub.f32 %v3440, %v3464
      %v3475 = vsub.f32 %v3442, %v3467
      %v3476 = vmul.f32 %v3468, 1.442695
      %v3477 = vpow.pop %v3476
      %v3478 = vmul.f32 %v3469, 1.442695
      %v3479 = vpow.pop %v3478
      %v3480 = vmul.f32 %v3470, 1.442695
      %v3481 = vpow.pop %v3480
      %v3482 = vmul.f32 %v3471, 1.442695
      %v3483 = vpow.pop %v3482
      %v3484 = vmul.f32 %v3472, 1.442695
      %v3485 = vpow.pop %v3484
      %v3486 = vmul.f32 %v3473, 1.442695
      %v3487 = vpow.pop %v3486
      %v3488 = vmul.f32 %v3474, 1.442695
      %v3489 = vpow.pop %v3488
      %v3490 = vmul.f32 %v3475, 1.442695
      %v3491 = vpow.pop %v3490
      %v3492 = vsel %vm945, %v3477, 0.0
      %3493 = vadd.xlane.f32.xlu0 %v3492
      %v3494 = vpop.xlane.xlu0 %3493
      %v3495 = vsel %vm945, %v3479, 0.0
      %3496 = vadd.xlane.f32.xlu0 %v3495
      %v3497 = vpop.xlane.xlu0 %3496
      %v3498 = vsel %vm945, %v3481, 0.0
      %3499 = vadd.xlane.f32.xlu0 %v3498
      %v3500 = vpop.xlane.xlu0 %3499
      %v3501 = vsel %vm945, %v3483, 0.0
      %3502 = vadd.xlane.f32.xlu0 %v3501
      %v3503 = vpop.xlane.xlu0 %3502
      %v3504 = vsel %vm945, %v3485, 0.0
      %3505 = vadd.xlane.f32.xlu0 %v3504
      %v3506 = vpop.xlane.xlu0 %3505
      %v3507 = vsel %vm945, %v3487, 0.0
      %3508 = vadd.xlane.f32.xlu0 %v3507
      %v3509 = vpop.xlane.xlu0 %3508
      %v3510 = vsel %vm945, %v3489, 0.0
      %3511 = vadd.xlane.f32.xlu0 %v3510
      %v3512 = vpop.xlane.xlu0 %3511
      %v3513 = vsel %vm945, %v3491, 0.0
      %3514 = vadd.xlane.f32.xlu0 %v3513
      %v3515 = vpop.xlane.xlu0 %3514
      %v3516 = vpack.c.bf16 %v3479, %v3477
      %v3517 = vpack.c.bf16 %v3483, %v3481
      %v3518 = vpack.c.bf16 %v3487, %v3485
      %v3519 = vpack.c.bf16 %v3491, %v3489
      %3524 = vrot.lane.b32.xlu0 %v3173, 120
      %v3525 = vpop.permute.xlu0 %3524
      %3526 = vrot.lane.b32.xlu0 %v3174, 120
      %v3527 = vpop.permute.xlu0 %3526
      %3528 = vrot.lane.b32.xlu0 %v3175, 120
      %v3529 = vpop.permute.xlu0 %3528
      %3530 = vrot.lane.b32.xlu0 %v3176, 120
      %v3531 = vpop.permute.xlu0 %3530
      %v3537 = vsel %vm945, %v3516, 0
      %v3540 = vsel %vm945, %v3517, 0
      %v3543 = vsel %vm945, %v3518, 0
      %v3546 = vsel %vm945, %v3519, 0
      %3548 = vmatpush.bf16.msra.mxu0 0
      %3549 = vmatpush.bf16.msra.mxu0 0
      %3550 = vmatpush.bf16.msra.mxu0 0
      %3551 = vmatpush.bf16.msra.mxu0 0
      %3552 = vmatpush.bf16.msra.mxu0 %v3531
      %3553 = vmatpush.bf16.msra.mxu0 %v3529
      %3554 = vmatpush.bf16.msra.mxu0 %v3527
      %3555 = vmatpush.bf16.msra.mxu0 %v3525
      %3556 = vmatmul.bf16.gmra.mxu0 %v3537
      %v3557 = vpop.f32.mrf.mxu0
      %v3558 = vadd.f32 0.0, %v3557
      %v3559 = vpop.f32.mrf.mxu0
      %v3560 = vadd.f32 0.0, %v3559
      %3561 = vmatmul.bf16.gmra.mxu0 %v3540
      %v3562 = vpop.f32.mrf.mxu0
      %v3563 = vadd.f32 0.0, %v3562
      %v3564 = vpop.f32.mrf.mxu0
      %v3565 = vadd.f32 0.0, %v3564
      %3566 = vmatmul.bf16.gmra.mxu0 %v3543
      %v3567 = vpop.f32.mrf.mxu0
      %v3568 = vadd.f32 0.0, %v3567
      %v3569 = vpop.f32.mrf.mxu0
      %v3570 = vadd.f32 0.0, %v3569
      %3571 = vmatmul.bf16.gmra.mxu0 %v3546
      %v3572 = vpop.f32.mrf.mxu0
      %v3573 = vadd.f32 0.0, %v3572
      %v3574 = vpop.f32.mrf.mxu0
      %v3575 = vadd.f32 0.0, %v3574
      %3576 = vdwg.mxu0
      %v3577 = vrcp.pop %v3494
      %v3578 = vrcp.pop %v3497
      %v3579 = vrcp.pop %v3500
      %v3580 = vrcp.pop %v3503
      %v3581 = vrcp.pop %v3506
      %v3582 = vrcp.pop %v3509
      %v3583 = vrcp.pop %v3512
      %v3584 = vrcp.pop %v3515
      %v3585 = vmul.f32 %v3558, %v3577
      %v3586 = vmul.f32 %v3560, %v3578
      %v3587 = vmul.f32 %v3563, %v3579
      %v3588 = vmul.f32 %v3565, %v3580
      %v3589 = vmul.f32 %v3568, %v3581
      %v3590 = vmul.f32 %v3570, %v3582
      %v3591 = vmul.f32 %v3573, %v3583
      %v3592 = vmul.f32 %v3575, %v3584
      %3593 = vrot.lane.b32.xlu0 %v3169, 112
      %v3594 = vpop.permute.xlu0 %3593
      %3595 = vrot.lane.b32.xlu0 %v3170, 112
      %v3596 = vpop.permute.xlu0 %3595
      %3597 = vrot.lane.b32.xlu0 %v3171, 112
      %v3598 = vpop.permute.xlu0 %3597
      %3599 = vrot.lane.b32.xlu0 %v3172, 112
      %v3600 = vpop.permute.xlu0 %3599
      %3601 = vrot.lane.b32.xlu0 %v3169, 80
      %v3602 = vpop.permute.xlu0 %3601
      %3603 = vrot.lane.b32.xlu0 %v3170, 80
      %v3604 = vpop.permute.xlu0 %3603
      %3605 = vrot.lane.b32.xlu0 %v3171, 80
      %v3606 = vpop.permute.xlu0 %3605
      %3607 = vrot.lane.b32.xlu0 %v3172, 80
      %v3608 = vpop.permute.xlu0 %3607
      %v3610 = vsel %vm1227, %v3594, 0
      %v3613 = vsel %vm1227, %v3596, 0
      %v3616 = vsel %vm1227, %v3598, 0
      %v3619 = vsel %vm1227, %v3600, 0
      %v3622 = vsel %vm1227, %v3602, 0
      %v3625 = vsel %vm1227, %v3604, 0
      %v3628 = vsel %vm1227, %v3606, 0
      %v3631 = vsel %vm1227, %v3608, 0
      %3633 = vmatpush.bf16.xpose.msra.mxu0 0
      %3634 = vmatpush.bf16.xpose.msra.mxu0 0
      %3635 = vmatpush.bf16.xpose.msra.mxu0 0
      %3636 = vmatpush.bf16.xpose.msra.mxu0 0
      %3637 = vmatpush.bf16.xpose.msra.mxu0 %v3631
      %3638 = vmatpush.bf16.xpose.msra.mxu0 %v3628
      %3639 = vmatpush.bf16.xpose.msra.mxu0 %v3625
      %3640 = vmatpush.bf16.xpose.msra.mxu0 %v3622
      %3641 = vmatmul.bf16.gmra.mxu0 %v3610
      %v3642 = vpop.f32.mrf.mxu0
      %v3643 = vadd.f32 0.0, %v3642
      %v3644 = vpop.f32.mrf.mxu0
      %v3645 = vadd.f32 0.0, %v3644
      %3646 = vmatmul.bf16.gmra.mxu0 %v3613
      %v3647 = vpop.f32.mrf.mxu0
      %v3648 = vadd.f32 0.0, %v3647
      %v3649 = vpop.f32.mrf.mxu0
      %v3650 = vadd.f32 0.0, %v3649
      %3651 = vmatmul.bf16.gmra.mxu0 %v3616
      %v3652 = vpop.f32.mrf.mxu0
      %v3653 = vadd.f32 0.0, %v3652
      %v3654 = vpop.f32.mrf.mxu0
      %v3655 = vadd.f32 0.0, %v3654
      %3656 = vmatmul.bf16.gmra.mxu0 %v3619
      %v3657 = vpop.f32.mrf.mxu0
      %v3658 = vadd.f32 0.0, %v3657
      %v3659 = vpop.f32.mrf.mxu0
      %v3660 = vadd.f32 0.0, %v3659
      %3661 = vdwg.mxu0
      %v3662 = vsel %vm945, %v3643, -inf
      %3663 = vmax.xlane.f32.xlu0 %v3662
      %v3664 = vpop.xlane.xlu0 %3663
      %v3665 = vsel %vm945, %v3645, -inf
      %3666 = vmax.xlane.f32.xlu0 %v3665
      %v3667 = vpop.xlane.xlu0 %3666
      %v3668 = vsel %vm945, %v3648, -inf
      %3669 = vmax.xlane.f32.xlu0 %v3668
      %v3670 = vpop.xlane.xlu0 %3669
      %v3671 = vsel %vm945, %v3650, -inf
      %3672 = vmax.xlane.f32.xlu0 %v3671
      %v3673 = vpop.xlane.xlu0 %3672
      %v3674 = vsel %vm945, %v3653, -inf
      %3675 = vmax.xlane.f32.xlu0 %v3674
      %v3676 = vpop.xlane.xlu0 %3675
      %v3677 = vsel %vm945, %v3655, -inf
      %3678 = vmax.xlane.f32.xlu0 %v3677
      %v3679 = vpop.xlane.xlu0 %3678
      %v3680 = vsel %vm945, %v3658, -inf
      %3681 = vmax.xlane.f32.xlu0 %v3680
      %v3682 = vpop.xlane.xlu0 %3681
      %v3683 = vsel %vm945, %v3660, -inf
      %3684 = vmax.xlane.f32.xlu0 %v3683
      %v3685 = vpop.xlane.xlu0 %3684
      %v3686 = vsub.f32 %v3643, %v3664
      %v3687 = vsub.f32 %v3645, %v3667
      %v3688 = vsub.f32 %v3648, %v3670
      %v3689 = vsub.f32 %v3650, %v3673
      %v3690 = vsub.f32 %v3653, %v3676
      %v3691 = vsub.f32 %v3655, %v3679
      %v3692 = vsub.f32 %v3658, %v3682
      %v3693 = vsub.f32 %v3660, %v3685
      %v3694 = vmul.f32 %v3686, 1.442695
      %v3695 = vpow.pop %v3694
      %v3696 = vmul.f32 %v3687, 1.442695
      %v3697 = vpow.pop %v3696
      %v3698 = vmul.f32 %v3688, 1.442695
      %v3699 = vpow.pop %v3698
      %v3700 = vmul.f32 %v3689, 1.442695
      %v3701 = vpow.pop %v3700
      %v3702 = vmul.f32 %v3690, 1.442695
      %v3703 = vpow.pop %v3702
      %v3704 = vmul.f32 %v3691, 1.442695
      %v3705 = vpow.pop %v3704
      %v3706 = vmul.f32 %v3692, 1.442695
      %v3707 = vpow.pop %v3706
      %v3708 = vmul.f32 %v3693, 1.442695
      %v3709 = vpow.pop %v3708
      %v3710 = vsel %vm945, %v3695, 0.0
      %3711 = vadd.xlane.f32.xlu0 %v3710
      %v3712 = vpop.xlane.xlu0 %3711
      %v3713 = vsel %vm945, %v3697, 0.0
      %3714 = vadd.xlane.f32.xlu0 %v3713
      %v3715 = vpop.xlane.xlu0 %3714
      %v3716 = vsel %vm945, %v3699, 0.0
      %3717 = vadd.xlane.f32.xlu0 %v3716
      %v3718 = vpop.xlane.xlu0 %3717
      %v3719 = vsel %vm945, %v3701, 0.0
      %3720 = vadd.xlane.f32.xlu0 %v3719
      %v3721 = vpop.xlane.xlu0 %3720
      %v3722 = vsel %vm945, %v3703, 0.0
      %3723 = vadd.xlane.f32.xlu0 %v3722
      %v3724 = vpop.xlane.xlu0 %3723
      %v3725 = vsel %vm945, %v3705, 0.0
      %3726 = vadd.xlane.f32.xlu0 %v3725
      %v3727 = vpop.xlane.xlu0 %3726
      %v3728 = vsel %vm945, %v3707, 0.0
      %3729 = vadd.xlane.f32.xlu0 %v3728
      %v3730 = vpop.xlane.xlu0 %3729
      %v3731 = vsel %vm945, %v3709, 0.0
      %3732 = vadd.xlane.f32.xlu0 %v3731
      %v3733 = vpop.xlane.xlu0 %3732
      %v3734 = vpack.c.bf16 %v3697, %v3695
      %v3735 = vpack.c.bf16 %v3701, %v3699
      %v3736 = vpack.c.bf16 %v3705, %v3703
      %v3737 = vpack.c.bf16 %v3709, %v3707
      %3738 = vrot.lane.b32.xlu0 %v3173, 112
      %v3739 = vpop.permute.xlu0 %3738
      %3740 = vrot.lane.b32.xlu0 %v3174, 112
      %v3741 = vpop.permute.xlu0 %3740
      %3742 = vrot.lane.b32.xlu0 %v3175, 112
      %v3743 = vpop.permute.xlu0 %3742
      %3744 = vrot.lane.b32.xlu0 %v3176, 112
      %v3745 = vpop.permute.xlu0 %3744
      %v3751 = vsel %vm945, %v3734, 0
      %v3754 = vsel %vm945, %v3735, 0
      %v3757 = vsel %vm945, %v3736, 0
      %v3760 = vsel %vm945, %v3737, 0
      %3762 = vmatpush.bf16.msra.mxu0 0
      %3763 = vmatpush.bf16.msra.mxu0 0
      %3764 = vmatpush.bf16.msra.mxu0 0
      %3765 = vmatpush.bf16.msra.mxu0 0
      %3766 = vmatpush.bf16.msra.mxu0 %v3745
      %3767 = vmatpush.bf16.msra.mxu0 %v3743
      %3768 = vmatpush.bf16.msra.mxu0 %v3741
      %3769 = vmatpush.bf16.msra.mxu0 %v3739
      %3770 = vmatmul.bf16.gmra.mxu0 %v3751
      %v3771 = vpop.f32.mrf.mxu0
      %v3772 = vadd.f32 0.0, %v3771
      %v3773 = vpop.f32.mrf.mxu0
      %v3774 = vadd.f32 0.0, %v3773
      %3775 = vmatmul.bf16.gmra.mxu0 %v3754
      %v3776 = vpop.f32.mrf.mxu0
      %v3777 = vadd.f32 0.0, %v3776
      %v3778 = vpop.f32.mrf.mxu0
      %v3779 = vadd.f32 0.0, %v3778
      %3780 = vmatmul.bf16.gmra.mxu0 %v3757
      %v3781 = vpop.f32.mrf.mxu0
      %v3782 = vadd.f32 0.0, %v3781
      %v3783 = vpop.f32.mrf.mxu0
      %v3784 = vadd.f32 0.0, %v3783
      %3785 = vmatmul.bf16.gmra.mxu0 %v3760
      %v3786 = vpop.f32.mrf.mxu0
      %v3787 = vadd.f32 0.0, %v3786
      %v3788 = vpop.f32.mrf.mxu0
      %v3789 = vadd.f32 0.0, %v3788
      %3790 = vdwg.mxu0
      %v3791 = vrcp.pop %v3712
      %v3792 = vrcp.pop %v3715
      %v3793 = vrcp.pop %v3718
      %v3794 = vrcp.pop %v3721
      %v3795 = vrcp.pop %v3724
      %v3796 = vrcp.pop %v3727
      %v3797 = vrcp.pop %v3730
      %v3798 = vrcp.pop %v3733
      %v3799 = vmul.f32 %v3772, %v3791
      %v3800 = vmul.f32 %v3774, %v3792
      %v3801 = vmul.f32 %v3777, %v3793
      %v3802 = vmul.f32 %v3779, %v3794
      %v3803 = vmul.f32 %v3782, %v3795
      %v3804 = vmul.f32 %v3784, %v3796
      %v3805 = vmul.f32 %v3787, %v3797
      %v3806 = vmul.f32 %v3789, %v3798
      %3807 = vrot.lane.b32.xlu0 %v3169, 104
      %v3808 = vpop.permute.xlu0 %3807
      %3809 = vrot.lane.b32.xlu0 %v3170, 104
      %v3810 = vpop.permute.xlu0 %3809
      %3811 = vrot.lane.b32.xlu0 %v3171, 104
      %v3812 = vpop.permute.xlu0 %3811
      %3813 = vrot.lane.b32.xlu0 %v3172, 104
      %v3814 = vpop.permute.xlu0 %3813
      %3815 = vrot.lane.b32.xlu0 %v3169, 72
      %v3816 = vpop.permute.xlu0 %3815
      %3817 = vrot.lane.b32.xlu0 %v3170, 72
      %v3818 = vpop.permute.xlu0 %3817
      %3819 = vrot.lane.b32.xlu0 %v3171, 72
      %v3820 = vpop.permute.xlu0 %3819
      %3821 = vrot.lane.b32.xlu0 %v3172, 72
      %v3822 = vpop.permute.xlu0 %3821
      %v3824 = vsel %vm1227, %v3808, 0
      %v3827 = vsel %vm1227, %v3810, 0
      %v3830 = vsel %vm1227, %v3812, 0
      %v3833 = vsel %vm1227, %v3814, 0
      %v3836 = vsel %vm1227, %v3816, 0
      %v3839 = vsel %vm1227, %v3818, 0
      %v3842 = vsel %vm1227, %v3820, 0
      %v3845 = vsel %vm1227, %v3822, 0
      %3847 = vmatpush.bf16.xpose.msra.mxu0 0
      %3848 = vmatpush.bf16.xpose.msra.mxu0 0
      %3849 = vmatpush.bf16.xpose.msra.mxu0 0
      %3850 = vmatpush.bf16.xpose.msra.mxu0 0
      %3851 = vmatpush.bf16.xpose.msra.mxu0 %v3845
      %3852 = vmatpush.bf16.xpose.msra.mxu0 %v3842
      %3853 = vmatpush.bf16.xpose.msra.mxu0 %v3839
      %3854 = vmatpush.bf16.xpose.msra.mxu0 %v3836
      %3855 = vmatmul.bf16.gmra.mxu0 %v3824
      %v3856 = vpop.f32.mrf.mxu0
      %v3857 = vadd.f32 0.0, %v3856
      %v3858 = vpop.f32.mrf.mxu0
      %v3859 = vadd.f32 0.0, %v3858
      %3860 = vmatmul.bf16.gmra.mxu0 %v3827
      %v3861 = vpop.f32.mrf.mxu0
      %v3862 = vadd.f32 0.0, %v3861
      %v3863 = vpop.f32.mrf.mxu0
      %v3864 = vadd.f32 0.0, %v3863
      %3865 = vmatmul.bf16.gmra.mxu0 %v3830
      %v3866 = vpop.f32.mrf.mxu0
      %v3867 = vadd.f32 0.0, %v3866
      %v3868 = vpop.f32.mrf.mxu0
      %v3869 = vadd.f32 0.0, %v3868
      %3870 = vmatmul.bf16.gmra.mxu0 %v3833
      %v3871 = vpop.f32.mrf.mxu0
      %v3872 = vadd.f32 0.0, %v3871
      %v3873 = vpop.f32.mrf.mxu0
      %v3874 = vadd.f32 0.0, %v3873
      %3875 = vdwg.mxu0
      %v3876 = vsel %vm945, %v3857, -inf
      %3877 = vmax.xlane.f32.xlu0 %v3876
      %v3878 = vpop.xlane.xlu0 %3877
      %v3879 = vsel %vm945, %v3859, -inf
      %3880 = vmax.xlane.f32.xlu0 %v3879
      %v3881 = vpop.xlane.xlu0 %3880
      %v3882 = vsel %vm945, %v3862, -inf
      %3883 = vmax.xlane.f32.xlu0 %v3882
      %v3884 = vpop.xlane.xlu0 %3883
      %v3885 = vsel %vm945, %v3864, -inf
      %3886 = vmax.xlane.f32.xlu0 %v3885
      %v3887 = vpop.xlane.xlu0 %3886
      %v3888 = vsel %vm945, %v3867, -inf
      %3889 = vmax.xlane.f32.xlu0 %v3888
      %v3890 = vpop.xlane.xlu0 %3889
      %v3891 = vsel %vm945, %v3869, -inf
      %3892 = vmax.xlane.f32.xlu0 %v3891
      %v3893 = vpop.xlane.xlu0 %3892
      %v3894 = vsel %vm945, %v3872, -inf
      %3895 = vmax.xlane.f32.xlu0 %v3894
      %v3896 = vpop.xlane.xlu0 %3895
      %v3897 = vsel %vm945, %v3874, -inf
      %3898 = vmax.xlane.f32.xlu0 %v3897
      %v3899 = vpop.xlane.xlu0 %3898
      %v3900 = vsub.f32 %v3857, %v3878
      %v3901 = vsub.f32 %v3859, %v3881
      %v3902 = vsub.f32 %v3862, %v3884
      %v3903 = vsub.f32 %v3864, %v3887
      %v3904 = vsub.f32 %v3867, %v3890
      %v3905 = vsub.f32 %v3869, %v3893
      %v3906 = vsub.f32 %v3872, %v3896
      %v3907 = vsub.f32 %v3874, %v3899
      %v3908 = vmul.f32 %v3900, 1.442695
      %v3909 = vpow.pop %v3908
      %v3910 = vmul.f32 %v3901, 1.442695
      %v3911 = vpow.pop %v3910
      %v3912 = vmul.f32 %v3902, 1.442695
      %v3913 = vpow.pop %v3912
      %v3914 = vmul.f32 %v3903, 1.442695
      %v3915 = vpow.pop %v3914
      %v3916 = vmul.f32 %v3904, 1.442695
      %v3917 = vpow.pop %v3916
      %v3918 = vmul.f32 %v3905, 1.442695
      %v3919 = vpow.pop %v3918
      %v3920 = vmul.f32 %v3906, 1.442695
      %v3921 = vpow.pop %v3920
      %v3922 = vmul.f32 %v3907, 1.442695
      %v3923 = vpow.pop %v3922
      %v3924 = vsel %vm945, %v3909, 0.0
      %3925 = vadd.xlane.f32.xlu0 %v3924
      %v3926 = vpop.xlane.xlu0 %3925
      %v3927 = vsel %vm945, %v3911, 0.0
      %3928 = vadd.xlane.f32.xlu0 %v3927
      %v3929 = vpop.xlane.xlu0 %3928
      %v3930 = vsel %vm945, %v3913, 0.0
      %3931 = vadd.xlane.f32.xlu0 %v3930
      %v3932 = vpop.xlane.xlu0 %3931
      %v3933 = vsel %vm945, %v3915, 0.0
      %3934 = vadd.xlane.f32.xlu0 %v3933
      %v3935 = vpop.xlane.xlu0 %3934
      %v3936 = vsel %vm945, %v3917, 0.0
      %3937 = vadd.xlane.f32.xlu0 %v3936
      %v3938 = vpop.xlane.xlu0 %3937
      %v3939 = vsel %vm945, %v3919, 0.0
      %3940 = vadd.xlane.f32.xlu0 %v3939
      %v3941 = vpop.xlane.xlu0 %3940
      %v3942 = vsel %vm945, %v3921, 0.0
      %3943 = vadd.xlane.f32.xlu0 %v3942
      %v3944 = vpop.xlane.xlu0 %3943
      %v3945 = vsel %vm945, %v3923, 0.0
      %3946 = vadd.xlane.f32.xlu0 %v3945
      %v3947 = vpop.xlane.xlu0 %3946
      %v3948 = vpack.c.bf16 %v3911, %v3909
      %v3949 = vpack.c.bf16 %v3915, %v3913
      %v3950 = vpack.c.bf16 %v3919, %v3917
      %v3951 = vpack.c.bf16 %v3923, %v3921
      %3952 = vrot.lane.b32.xlu0 %v3173, 104
      %v3953 = vpop.permute.xlu0 %3952
      %3954 = vrot.lane.b32.xlu0 %v3174, 104
      %v3955 = vpop.permute.xlu0 %3954
      %3956 = vrot.lane.b32.xlu0 %v3175, 104
      %v3957 = vpop.permute.xlu0 %3956
      %3958 = vrot.lane.b32.xlu0 %v3176, 104
      %v3959 = vpop.permute.xlu0 %3958
      %v3965 = vsel %vm945, %v3948, 0
      %v3968 = vsel %vm945, %v3949, 0
      %v3971 = vsel %vm945, %v3950, 0
      %v3974 = vsel %vm945, %v3951, 0
      %3976 = vmatpush.bf16.msra.mxu0 0
      %3977 = vmatpush.bf16.msra.mxu0 0
      %3978 = vmatpush.bf16.msra.mxu0 0
      %3979 = vmatpush.bf16.msra.mxu0 0
      %3980 = vmatpush.bf16.msra.mxu0 %v3959
      %3981 = vmatpush.bf16.msra.mxu0 %v3957
      %3982 = vmatpush.bf16.msra.mxu0 %v3955
      %3983 = vmatpush.bf16.msra.mxu0 %v3953
      %3984 = vmatmul.bf16.gmra.mxu0 %v3965
      %v3985 = vpop.f32.mrf.mxu0
      %v3986 = vadd.f32 0.0, %v3985
      %v3987 = vpop.f32.mrf.mxu0
      %v3988 = vadd.f32 0.0, %v3987
      %3989 = vmatmul.bf16.gmra.mxu0 %v3968
      %v3990 = vpop.f32.mrf.mxu0
      %v3991 = vadd.f32 0.0, %v3990
      %v3992 = vpop.f32.mrf.mxu0
      %v3993 = vadd.f32 0.0, %v3992
      %3994 = vmatmul.bf16.gmra.mxu0 %v3971
      %v3995 = vpop.f32.mrf.mxu0
      %v3996 = vadd.f32 0.0, %v3995
      %v3997 = vpop.f32.mrf.mxu0
      %v3998 = vadd.f32 0.0, %v3997
      %3999 = vmatmul.bf16.gmra.mxu0 %v3974
      %v4000 = vpop.f32.mrf.mxu0
      %v4001 = vadd.f32 0.0, %v4000
      %v4002 = vpop.f32.mrf.mxu0
      %v4003 = vadd.f32 0.0, %v4002
      %4004 = vdwg.mxu0
      %v4005 = vrcp.pop %v3926
      %v4006 = vrcp.pop %v3929
      %v4007 = vrcp.pop %v3932
      %v4008 = vrcp.pop %v3935
      %v4009 = vrcp.pop %v3938
      %v4010 = vrcp.pop %v3941
      %v4011 = vrcp.pop %v3944
      %v4012 = vrcp.pop %v3947
      %v4013 = vmul.f32 %v3986, %v4005
      %v4014 = vmul.f32 %v3988, %v4006
      %v4015 = vmul.f32 %v3991, %v4007
      %v4016 = vmul.f32 %v3993, %v4008
      %v4017 = vmul.f32 %v3996, %v4009
      %v4018 = vmul.f32 %v3998, %v4010
      %v4019 = vmul.f32 %v4001, %v4011
      %v4020 = vmul.f32 %v4003, %v4012
      %4029 = vrot.lane.b32.xlu0 %v3585, 8
      %v4030 = vpop.permute.xlu0 %4029
      %4031 = vrot.lane.b32.xlu0 %v3586, 8
      %v4032 = vpop.permute.xlu0 %4031
      %4033 = vrot.lane.b32.xlu0 %v3587, 8
      %v4034 = vpop.permute.xlu0 %4033
      %4035 = vrot.lane.b32.xlu0 %v3588, 8
      %v4036 = vpop.permute.xlu0 %4035
      %4037 = vrot.lane.b32.xlu0 %v3589, 8
      %v4038 = vpop.permute.xlu0 %4037
      %4039 = vrot.lane.b32.xlu0 %v3590, 8
      %v4040 = vpop.permute.xlu0 %4039
      %4041 = vrot.lane.b32.xlu0 %v3591, 8
      %v4042 = vpop.permute.xlu0 %4041
      %4043 = vrot.lane.b32.xlu0 %v3592, 8
      %v4044 = vpop.permute.xlu0 %4043
      %4061 = vrot.lane.b32.xlu0 %v3799, 16
      %v4062 = vpop.permute.xlu0 %4061
      %4063 = vrot.lane.b32.xlu0 %v3800, 16
      %v4064 = vpop.permute.xlu0 %4063
      %4065 = vrot.lane.b32.xlu0 %v3801, 16
      %v4066 = vpop.permute.xlu0 %4065
      %4067 = vrot.lane.b32.xlu0 %v3802, 16
      %v4068 = vpop.permute.xlu0 %4067
      %4069 = vrot.lane.b32.xlu0 %v3803, 16
      %v4070 = vpop.permute.xlu0 %4069
      %4071 = vrot.lane.b32.xlu0 %v3804, 16
      %v4072 = vpop.permute.xlu0 %4071
      %4073 = vrot.lane.b32.xlu0 %v3805, 16
      %v4074 = vpop.permute.xlu0 %4073
      %4075 = vrot.lane.b32.xlu0 %v3806, 16
      %v4076 = vpop.permute.xlu0 %4075
      %4093 = vrot.lane.b32.xlu0 %v4013, 24
      %v4094 = vpop.permute.xlu0 %4093
      %4095 = vrot.lane.b32.xlu0 %v4014, 24
      %v4096 = vpop.permute.xlu0 %4095
      %4097 = vrot.lane.b32.xlu0 %v4015, 24
      %v4098 = vpop.permute.xlu0 %4097
      %4099 = vrot.lane.b32.xlu0 %v4016, 24
      %v4100 = vpop.permute.xlu0 %4099
      %4101 = vrot.lane.b32.xlu0 %v4017, 24
      %v4102 = vpop.permute.xlu0 %4101
      %4103 = vrot.lane.b32.xlu0 %v4018, 24
      %v4104 = vpop.permute.xlu0 %4103
      %4105 = vrot.lane.b32.xlu0 %v4019, 24
      %v4106 = vpop.permute.xlu0 %4105
      %4107 = vrot.lane.b32.xlu0 %v4020, 24
      %v4108 = vpop.permute.xlu0 %4107
      %v4117 = vsel %vm1227, %v3367, %v4030
      %v4118 = vsel %vm1227, %v3368, %v4032
      %v4119 = vsel %vm1227, %v3369, %v4034
      %v4120 = vsel %vm1227, %v3370, %v4036
      %v4121 = vsel %vm1227, %v3371, %v4038
      %v4122 = vsel %vm1227, %v3372, %v4040
      %v4123 = vsel %vm1227, %v3373, %v4042
      %v4124 = vsel %vm1227, %v3374, %v4044
      %v4125 = vsel %vm2164, %v4117, %v4062
      %v4126 = vsel %vm2164, %v4118, %v4064
      %v4127 = vsel %vm2164, %v4119, %v4066
      %v4128 = vsel %vm2164, %v4120, %v4068
      %v4129 = vsel %vm2164, %v4121, %v4070
      %v4130 = vsel %vm2164, %v4122, %v4072
      %v4131 = vsel %vm2164, %v4123, %v4074
      %v4132 = vsel %vm2164, %v4124, %v4076
      %v4133 = vsel %vm2173, %v4125, %v4094
      %v4134 = vsel %vm2173, %v4126, %v4096
      %v4135 = vsel %vm2173, %v4127, %v4098
      %v4136 = vsel %vm2173, %v4128, %v4100
      %v4137 = vsel %vm2173, %v4129, %v4102
      %v4138 = vsel %vm2173, %v4130, %v4104
      %v4139 = vsel %vm2173, %v4131, %v4106
      %v4140 = vsel %vm2173, %v4132, %v4108
      %v4141 = vpack.c.bf16 %v4134, %v4133
      %v4142 = vpack.c.bf16 %v4136, %v4135
      %v4143 = vpack.c.bf16 %v4138, %v4137
      %v4144 = vpack.c.bf16 %v4140, %v4139
      %v4146 = vsel %vm879, %v4141, 0
      %v4149 = vsel %vm879, %v4142, 0
      %v4152 = vsel %vm879, %v4143, 0
      %v4155 = vsel %vm879, %v4144, 0
      %4157 = vmatpush.bf16.msra.mxu0 0
      %4158 = vmatpush.bf16.msra.mxu0 0
      %4159 = vmatpush.bf16.msra.mxu0 0
      %4160 = vmatpush.bf16.msra.mxu0 0
      %4161 = vmatpush.bf16.msra.mxu0 0
      %4162 = vmatpush.bf16.msra.mxu0 0
      %4163 = vmatpush.bf16.msra.mxu0 %v2198
      %4164 = vmatpush.bf16.msra.mxu0 %v2197
      %4165 = vmatmul.bf16.gmra.mxu0 %v4146
      %v4166 = vpop.f32.mrf.mxu0
      %v4167 = vadd.f32 %v2187, %v4166
      %v4168 = vpop.f32.mrf.mxu0
      %v4169 = vadd.f32 %v2187, %v4168
      %4170 = vmatmul.bf16.gmra.mxu0 %v4149
      %v4171 = vpop.f32.mrf.mxu0
      %v4172 = vadd.f32 %v2187, %v4171
      %v4173 = vpop.f32.mrf.mxu0
      %v4174 = vadd.f32 %v2187, %v4173
      %4175 = vmatmul.bf16.gmra.mxu0 %v4152
      %v4176 = vpop.f32.mrf.mxu0
      %v4177 = vadd.f32 %v2187, %v4176
      %v4178 = vpop.f32.mrf.mxu0
      %v4179 = vadd.f32 %v2187, %v4178
      %4180 = vmatmul.bf16.gmra.mxu0 %v4155
      %v4181 = vpop.f32.mrf.mxu0
      %v4182 = vadd.f32 %v2187, %v4181
      %v4183 = vpop.f32.mrf.mxu0
      %v4184 = vadd.f32 %v2187, %v4183
      %4185 = vdwg.mxu0
      %v4186 = vadd.f32 %v3063, %v4167
      %v4187 = vadd.f32 %v3064, %v4169
      %v4188 = vadd.f32 %v3065, %v4172
      %v4189 = vadd.f32 %v3066, %v4174
      %v4190 = vadd.f32 %v3067, %v4177
      %v4191 = vadd.f32 %v3068, %v4179
      %v4192 = vadd.f32 %v3069, %v4182
      %v4193 = vadd.f32 %v3070, %v4184
      %v4194 = vsel %vm879, %v4186, 0.0
      %4195 = vadd.xlane.f32.xlu0 %v4194
      %v4196 = vpop.xlane.xlu0 %4195
      %v4197 = vsel %vm879, %v4187, 0.0
      %4198 = vadd.xlane.f32.xlu0 %v4197
      %v4199 = vpop.xlane.xlu0 %4198
      %v4200 = vsel %vm879, %v4188, 0.0
      %4201 = vadd.xlane.f32.xlu0 %v4200
      %v4202 = vpop.xlane.xlu0 %4201
      %v4203 = vsel %vm879, %v4189, 0.0
      %4204 = vadd.xlane.f32.xlu0 %v4203
      %v4205 = vpop.xlane.xlu0 %4204
      %v4206 = vsel %vm879, %v4190, 0.0
      %4207 = vadd.xlane.f32.xlu0 %v4206
      %v4208 = vpop.xlane.xlu0 %4207
      %v4209 = vsel %vm879, %v4191, 0.0
      %4210 = vadd.xlane.f32.xlu0 %v4209
      %v4211 = vpop.xlane.xlu0 %4210
      %v4212 = vsel %vm879, %v4192, 0.0
      %4213 = vadd.xlane.f32.xlu0 %v4212
      %v4214 = vpop.xlane.xlu0 %4213
      %v4215 = vsel %vm879, %v4193, 0.0
      %4216 = vadd.xlane.f32.xlu0 %v4215
      %v4217 = vpop.xlane.xlu0 %4216
      %v4218 = vmul.f32 %v4196, %v2280
      %v4219 = vmul.f32 %v4199, %v2280
      %v4220 = vmul.f32 %v4202, %v2280
      %v4221 = vmul.f32 %v4205, %v2280
      %v4222 = vmul.f32 %v4208, %v2280
      %v4223 = vmul.f32 %v4211, %v2280
      %v4224 = vmul.f32 %v4214, %v2280
      %v4225 = vmul.f32 %v4217, %v2280
      %v4226 = vsub.f32 %v4186, %v4218
      %v4227 = vsub.f32 %v4187, %v4219
      %v4228 = vsub.f32 %v4188, %v4220
      %v4229 = vsub.f32 %v4189, %v4221
      %v4230 = vsub.f32 %v4190, %v4222
      %v4231 = vsub.f32 %v4191, %v4223
      %v4232 = vsub.f32 %v4192, %v4224
      %v4233 = vsub.f32 %v4193, %v4225
      %v4234 = vmul.f32 %v4226, %v4226
      %v4235 = vmul.f32 %v4227, %v4227
      %v4236 = vmul.f32 %v4228, %v4228
      %v4237 = vmul.f32 %v4229, %v4229
      %v4238 = vmul.f32 %v4230, %v4230
      %v4239 = vmul.f32 %v4231, %v4231
      %v4240 = vmul.f32 %v4232, %v4232
      %v4241 = vmul.f32 %v4233, %v4233
      %v4242 = vsel %vm879, %v4234, 0.0
      %4243 = vadd.xlane.f32.xlu0 %v4242
      %v4244 = vpop.xlane.xlu0 %4243
      %v4245 = vsel %vm879, %v4235, 0.0
      %4246 = vadd.xlane.f32.xlu0 %v4245
      %v4247 = vpop.xlane.xlu0 %4246
      %v4248 = vsel %vm879, %v4236, 0.0
      %4249 = vadd.xlane.f32.xlu0 %v4248
      %v4250 = vpop.xlane.xlu0 %4249
      %v4251 = vsel %vm879, %v4237, 0.0
      %4252 = vadd.xlane.f32.xlu0 %v4251
      %v4253 = vpop.xlane.xlu0 %4252
      %v4254 = vsel %vm879, %v4238, 0.0
      %4255 = vadd.xlane.f32.xlu0 %v4254
      %v4256 = vpop.xlane.xlu0 %4255
      %v4257 = vsel %vm879, %v4239, 0.0
      %4258 = vadd.xlane.f32.xlu0 %v4257
      %v4259 = vpop.xlane.xlu0 %4258
      %v4260 = vsel %vm879, %v4240, 0.0
      %4261 = vadd.xlane.f32.xlu0 %v4260
      %v4262 = vpop.xlane.xlu0 %4261
      %v4263 = vsel %vm879, %v4241, 0.0
      %4264 = vadd.xlane.f32.xlu0 %v4263
      %v4265 = vpop.xlane.xlu0 %4264
      %v4266 = vmul.f32 %v4244, %v2280
      %v4267 = vmul.f32 %v4247, %v2280
      %v4268 = vmul.f32 %v4250, %v2280
      %v4269 = vmul.f32 %v4253, %v2280
      %v4270 = vmul.f32 %v4256, %v2280
      %v4271 = vmul.f32 %v4259, %v2280
      %v4272 = vmul.f32 %v4262, %v2280
      %v4273 = vmul.f32 %v4265, %v2280
      %v4274 = vadd.f32 %v4266, 1e-05
      %v4275 = vadd.f32 %v4267, 1e-05
      %v4276 = vadd.f32 %v4268, 1e-05
      %v4277 = vadd.f32 %v4269, 1e-05
      %v4278 = vadd.f32 %v4270, 1e-05
      %v4279 = vadd.f32 %v4271, 1e-05
      %v4280 = vadd.f32 %v4272, 1e-05
      %v4281 = vadd.f32 %v4273, 1e-05
      %v4282 = vrsqrt.pop %v4274
      %v4283 = vmul.f32 %v4282, %v4274
      %v4284 = vmul.f32 %v4283, %v4282
      %v4285 = vmul.f32 0.5, %v4284
      %v4286 = vsub.f32 1.5, %v4285
      %v4287 = vmul.f32 %v4282, %v4286
      %vm4288 = vweird.f32 %v4274
      %vm4289 = vweird.f32 %v4282
      %vm4290 = vmor %vm4288, %vm4289
      %v4291 = vsel %vm4290, %v4282, %v4287
      %v4292 = vrsqrt.pop %v4275
      %v4293 = vmul.f32 %v4292, %v4275
      %v4294 = vmul.f32 %v4293, %v4292
      %v4295 = vmul.f32 0.5, %v4294
      %v4296 = vsub.f32 1.5, %v4295
      %v4297 = vmul.f32 %v4292, %v4296
      %vm4298 = vweird.f32 %v4275
      %vm4299 = vweird.f32 %v4292
      %vm4300 = vmor %vm4298, %vm4299
      %v4301 = vsel %vm4300, %v4292, %v4297
      %v4302 = vrsqrt.pop %v4276
      %v4303 = vmul.f32 %v4302, %v4276
      %v4304 = vmul.f32 %v4303, %v4302
      %v4305 = vmul.f32 0.5, %v4304
      %v4306 = vsub.f32 1.5, %v4305
      %v4307 = vmul.f32 %v4302, %v4306
      %vm4308 = vweird.f32 %v4276
      %vm4309 = vweird.f32 %v4302
      %vm4310 = vmor %vm4308, %vm4309
      %v4311 = vsel %vm4310, %v4302, %v4307
      %v4312 = vrsqrt.pop %v4277
      %v4313 = vmul.f32 %v4312, %v4277
      %v4314 = vmul.f32 %v4313, %v4312
      %v4315 = vmul.f32 0.5, %v4314
      %v4316 = vsub.f32 1.5, %v4315
      %v4317 = vmul.f32 %v4312, %v4316
      %vm4318 = vweird.f32 %v4277
      %vm4319 = vweird.f32 %v4312
      %vm4320 = vmor %vm4318, %vm4319
      %v4321 = vsel %vm4320, %v4312, %v4317
      %v4322 = vrsqrt.pop %v4278
      %v4323 = vmul.f32 %v4322, %v4278
      %v4324 = vmul.f32 %v4323, %v4322
      %v4325 = vmul.f32 0.5, %v4324
      %v4326 = vsub.f32 1.5, %v4325
      %v4327 = vmul.f32 %v4322, %v4326
      %vm4328 = vweird.f32 %v4278
      %vm4329 = vweird.f32 %v4322
      %vm4330 = vmor %vm4328, %vm4329
      %v4331 = vsel %vm4330, %v4322, %v4327
      %v4332 = vrsqrt.pop %v4279
      %v4333 = vmul.f32 %v4332, %v4279
      %v4334 = vmul.f32 %v4333, %v4332
      %v4335 = vmul.f32 0.5, %v4334
      %v4336 = vsub.f32 1.5, %v4335
      %v4337 = vmul.f32 %v4332, %v4336
      %vm4338 = vweird.f32 %v4279
      %vm4339 = vweird.f32 %v4332
      %vm4340 = vmor %vm4338, %vm4339
      %v4341 = vsel %vm4340, %v4332, %v4337
      %v4342 = vrsqrt.pop %v4280
      %v4343 = vmul.f32 %v4342, %v4280
      %v4344 = vmul.f32 %v4343, %v4342
      %v4345 = vmul.f32 0.5, %v4344
      %v4346 = vsub.f32 1.5, %v4345
      %v4347 = vmul.f32 %v4342, %v4346
      %vm4348 = vweird.f32 %v4280
      %vm4349 = vweird.f32 %v4342
      %vm4350 = vmor %vm4348, %vm4349
      %v4351 = vsel %vm4350, %v4342, %v4347
      %v4352 = vrsqrt.pop %v4281
      %v4353 = vmul.f32 %v4352, %v4281
      %v4354 = vmul.f32 %v4353, %v4352
      %v4355 = vmul.f32 0.5, %v4354
      %v4356 = vsub.f32 1.5, %v4355
      %v4357 = vmul.f32 %v4352, %v4356
      %vm4358 = vweird.f32 %v4281
      %vm4359 = vweird.f32 %v4352
      %vm4360 = vmor %vm4358, %vm4359
      %v4361 = vsel %vm4360, %v4352, %v4357
      %v4362 = vmul.f32 %v4226, %v4291
      %v4363 = vmul.f32 %v4227, %v4301
      %v4364 = vmul.f32 %v4228, %v4311
      %v4365 = vmul.f32 %v4229, %v4321
      %v4366 = vmul.f32 %v4230, %v4331
      %v4367 = vmul.f32 %v4231, %v4341
      %v4368 = vmul.f32 %v4232, %v4351
      %v4369 = vmul.f32 %v4233, %v4361
      %v4370 = vmul.f32 %v4362, %v2434
      %v4371 = vmul.f32 %v4363, %v2434
      %v4372 = vmul.f32 %v4364, %v2434
      %v4373 = vmul.f32 %v4365, %v2434
      %v4374 = vmul.f32 %v4366, %v2434
      %v4375 = vmul.f32 %v4367, %v2434
      %v4376 = vmul.f32 %v4368, %v2434
      %v4377 = vmul.f32 %v4369, %v2434
      %v4378 = vadd.f32 %v4370, %v2445
      %v4379 = vadd.f32 %v4371, %v2445
      %v4380 = vadd.f32 %v4372, %v2445
      %v4381 = vadd.f32 %v4373, %v2445
      %v4382 = vadd.f32 %v4374, %v2445
      %v4383 = vadd.f32 %v4375, %v2445
      %v4384 = vadd.f32 %v4376, %v2445
      %v4385 = vadd.f32 %v4377, %v2445
      %v4386 = vadd.f32 %v4378, %v1056
      %v4387 = vadd.f32 %v4379, %v1059
      %v4388 = vadd.f32 %v4380, %v1062
      %v4389 = vadd.f32 %v4381, %v1065
      %v4390 = vadd.f32 %v4382, %v1068
      %v4391 = vadd.f32 %v4383, %v1071
      %v4392 = vadd.f32 %v4384, %v1074
      %v4393 = vadd.f32 %v4385, %v1077
      %v4394 = vsel %vm879, %v4386, 0.0
      %4395 = vadd.xlane.f32.xlu0 %v4394
      %v4396 = vpop.xlane.xlu0 %4395
      %v4397 = vsel %vm879, %v4387, 0.0
      %4398 = vadd.xlane.f32.xlu0 %v4397
      %v4399 = vpop.xlane.xlu0 %4398
      %v4400 = vsel %vm879, %v4388, 0.0
      %4401 = vadd.xlane.f32.xlu0 %v4400
      %v4402 = vpop.xlane.xlu0 %4401
      %v4403 = vsel %vm879, %v4389, 0.0
      %4404 = vadd.xlane.f32.xlu0 %v4403
      %v4405 = vpop.xlane.xlu0 %4404
      %v4406 = vsel %vm879, %v4390, 0.0
      %4407 = vadd.xlane.f32.xlu0 %v4406
      %v4408 = vpop.xlane.xlu0 %4407
      %v4409 = vsel %vm879, %v4391, 0.0
      %4410 = vadd.xlane.f32.xlu0 %v4409
      %v4411 = vpop.xlane.xlu0 %4410
      %v4412 = vsel %vm879, %v4392, 0.0
      %4413 = vadd.xlane.f32.xlu0 %v4412
      %v4414 = vpop.xlane.xlu0 %4413
      %v4415 = vsel %vm879, %v4393, 0.0
      %4416 = vadd.xlane.f32.xlu0 %v4415
      %v4417 = vpop.xlane.xlu0 %4416
      %v4418 = vmul.f32 %v4396, %v2280
      %v4419 = vmul.f32 %v4399, %v2280
      %v4420 = vmul.f32 %v4402, %v2280
      %v4421 = vmul.f32 %v4405, %v2280
      %v4422 = vmul.f32 %v4408, %v2280
      %v4423 = vmul.f32 %v4411, %v2280
      %v4424 = vmul.f32 %v4414, %v2280
      %v4425 = vmul.f32 %v4417, %v2280
      %v4426 = vsub.f32 %v4386, %v4418
      %v4427 = vsub.f32 %v4387, %v4419
      %v4428 = vsub.f32 %v4388, %v4420
      %v4429 = vsub.f32 %v4389, %v4421
      %v4430 = vsub.f32 %v4390, %v4422
      %v4431 = vsub.f32 %v4391, %v4423
      %v4432 = vsub.f32 %v4392, %v4424
      %v4433 = vsub.f32 %v4393, %v4425
      %v4434 = vmul.f32 %v4426, %v4426
      %v4435 = vmul.f32 %v4427, %v4427
      %v4436 = vmul.f32 %v4428, %v4428
      %v4437 = vmul.f32 %v4429, %v4429
      %v4438 = vmul.f32 %v4430, %v4430
      %v4439 = vmul.f32 %v4431, %v4431
      %v4440 = vmul.f32 %v4432, %v4432
      %v4441 = vmul.f32 %v4433, %v4433
      %v4442 = vsel %vm879, %v4434, 0.0
      %4443 = vadd.xlane.f32.xlu0 %v4442
      %v4444 = vpop.xlane.xlu0 %4443
      %v4445 = vsel %vm879, %v4435, 0.0
      %4446 = vadd.xlane.f32.xlu0 %v4445
      %v4447 = vpop.xlane.xlu0 %4446
      %v4448 = vsel %vm879, %v4436, 0.0
      %4449 = vadd.xlane.f32.xlu0 %v4448
      %v4450 = vpop.xlane.xlu0 %4449
      %v4451 = vsel %vm879, %v4437, 0.0
      %4452 = vadd.xlane.f32.xlu0 %v4451
      %v4453 = vpop.xlane.xlu0 %4452
      %v4454 = vsel %vm879, %v4438, 0.0
      %4455 = vadd.xlane.f32.xlu0 %v4454
      %v4456 = vpop.xlane.xlu0 %4455
      %v4457 = vsel %vm879, %v4439, 0.0
      %4458 = vadd.xlane.f32.xlu0 %v4457
      %v4459 = vpop.xlane.xlu0 %4458
      %v4460 = vsel %vm879, %v4440, 0.0
      %4461 = vadd.xlane.f32.xlu0 %v4460
      %v4462 = vpop.xlane.xlu0 %4461
      %v4463 = vsel %vm879, %v4441, 0.0
      %4464 = vadd.xlane.f32.xlu0 %v4463
      %v4465 = vpop.xlane.xlu0 %4464
      %v4466 = vmul.f32 %v4444, %v2280
      %v4467 = vmul.f32 %v4447, %v2280
      %v4468 = vmul.f32 %v4450, %v2280
      %v4469 = vmul.f32 %v4453, %v2280
      %v4470 = vmul.f32 %v4456, %v2280
      %v4471 = vmul.f32 %v4459, %v2280
      %v4472 = vmul.f32 %v4462, %v2280
      %v4473 = vmul.f32 %v4465, %v2280
      %v4474 = vadd.f32 %v4466, 1e-05
      %v4475 = vadd.f32 %v4467, 1e-05
      %v4476 = vadd.f32 %v4468, 1e-05
      %v4477 = vadd.f32 %v4469, 1e-05
      %v4478 = vadd.f32 %v4470, 1e-05
      %v4479 = vadd.f32 %v4471, 1e-05
      %v4480 = vadd.f32 %v4472, 1e-05
      %v4481 = vadd.f32 %v4473, 1e-05
      %v4482 = vrsqrt.pop %v4474
      %v4483 = vmul.f32 %v4482, %v4474
      %v4484 = vmul.f32 %v4483, %v4482
      %v4485 = vmul.f32 0.5, %v4484
      %v4486 = vsub.f32 1.5, %v4485
      %v4487 = vmul.f32 %v4482, %v4486
      %vm4488 = vweird.f32 %v4474
      %vm4489 = vweird.f32 %v4482
      %vm4490 = vmor %vm4488, %vm4489
      %v4491 = vsel %vm4490, %v4482, %v4487
      %v4492 = vrsqrt.pop %v4475
      %v4493 = vmul.f32 %v4492, %v4475
      %v4494 = vmul.f32 %v4493, %v4492
      %v4495 = vmul.f32 0.5, %v4494
      %v4496 = vsub.f32 1.5, %v4495
      %v4497 = vmul.f32 %v4492, %v4496
      %vm4498 = vweird.f32 %v4475
      %vm4499 = vweird.f32 %v4492
      %vm4500 = vmor %vm4498, %vm4499
      %v4501 = vsel %vm4500, %v4492, %v4497
      %v4502 = vrsqrt.pop %v4476
      %v4503 = vmul.f32 %v4502, %v4476
      %v4504 = vmul.f32 %v4503, %v4502
      %v4505 = vmul.f32 0.5, %v4504
      %v4506 = vsub.f32 1.5, %v4505
      %v4507 = vmul.f32 %v4502, %v4506
      %vm4508 = vweird.f32 %v4476
      %vm4509 = vweird.f32 %v4502
      %vm4510 = vmor %vm4508, %vm4509
      %v4511 = vsel %vm4510, %v4502, %v4507
      %v4512 = vrsqrt.pop %v4477
      %v4513 = vmul.f32 %v4512, %v4477
      %v4514 = vmul.f32 %v4513, %v4512
      %v4515 = vmul.f32 0.5, %v4514
      %v4516 = vsub.f32 1.5, %v4515
      %v4517 = vmul.f32 %v4512, %v4516
      %vm4518 = vweird.f32 %v4477
      %vm4519 = vweird.f32 %v4512
      %vm4520 = vmor %vm4518, %vm4519
      %v4521 = vsel %vm4520, %v4512, %v4517
      %v4522 = vrsqrt.pop %v4478
      %v4523 = vmul.f32 %v4522, %v4478
      %v4524 = vmul.f32 %v4523, %v4522
      %v4525 = vmul.f32 0.5, %v4524
      %v4526 = vsub.f32 1.5, %v4525
      %v4527 = vmul.f32 %v4522, %v4526
      %vm4528 = vweird.f32 %v4478
      %vm4529 = vweird.f32 %v4522
      %vm4530 = vmor %vm4528, %vm4529
      %v4531 = vsel %vm4530, %v4522, %v4527
      %v4532 = vrsqrt.pop %v4479
      %v4533 = vmul.f32 %v4532, %v4479
      %v4534 = vmul.f32 %v4533, %v4532
      %v4535 = vmul.f32 0.5, %v4534
      %v4536 = vsub.f32 1.5, %v4535
      %v4537 = vmul.f32 %v4532, %v4536
      %vm4538 = vweird.f32 %v4479
      %vm4539 = vweird.f32 %v4532
      %vm4540 = vmor %vm4538, %vm4539
      %v4541 = vsel %vm4540, %v4532, %v4537
      %v4542 = vrsqrt.pop %v4480
      %v4543 = vmul.f32 %v4542, %v4480
      %v4544 = vmul.f32 %v4543, %v4542
      %v4545 = vmul.f32 0.5, %v4544
      %v4546 = vsub.f32 1.5, %v4545
      %v4547 = vmul.f32 %v4542, %v4546
      %vm4548 = vweird.f32 %v4480
      %vm4549 = vweird.f32 %v4542
      %vm4550 = vmor %vm4548, %vm4549
      %v4551 = vsel %vm4550, %v4542, %v4547
      %v4552 = vrsqrt.pop %v4481
      %v4553 = vmul.f32 %v4552, %v4481
      %v4554 = vmul.f32 %v4553, %v4552
      %v4555 = vmul.f32 0.5, %v4554
      %v4556 = vsub.f32 1.5, %v4555
      %v4557 = vmul.f32 %v4552, %v4556
      %vm4558 = vweird.f32 %v4481
      %vm4559 = vweird.f32 %v4552
      %vm4560 = vmor %vm4558, %vm4559
      %v4561 = vsel %vm4560, %v4552, %v4557
      %v4562 = vmul.f32 %v4426, %v4491
      %v4563 = vmul.f32 %v4427, %v4501
      %v4564 = vmul.f32 %v4428, %v4511
      %v4565 = vmul.f32 %v4429, %v4521
      %v4566 = vmul.f32 %v4430, %v4531
      %v4567 = vmul.f32 %v4431, %v4541
      %v4568 = vmul.f32 %v4432, %v4551
      %v4569 = vmul.f32 %v4433, %v4561
      %v4570 = vmul.f32 %v4562, %v2640
      %v4571 = vmul.f32 %v4563, %v2640
      %v4572 = vmul.f32 %v4564, %v2640
      %v4573 = vmul.f32 %v4565, %v2640
      %v4574 = vmul.f32 %v4566, %v2640
      %v4575 = vmul.f32 %v4567, %v2640
      %v4576 = vmul.f32 %v4568, %v2640
      %v4577 = vmul.f32 %v4569, %v2640
      %v4578 = vadd.f32 %v4570, %v2651
      %v4579 = vadd.f32 %v4571, %v2651
      %v4580 = vadd.f32 %v4572, %v2651
      %v4581 = vadd.f32 %v4573, %v2651
      %v4582 = vadd.f32 %v4574, %v2651
      %v4583 = vadd.f32 %v4575, %v2651
      %v4584 = vadd.f32 %v4576, %v2651
      %v4585 = vadd.f32 %v4577, %v2651
      %v4586 = vpack.c.bf16 %v4579, %v4578
      %v4587 = vpack.c.bf16 %v4581, %v4580
      %v4588 = vpack.c.bf16 %v4583, %v4582
      %v4589 = vpack.c.bf16 %v4585, %v4584
      %v4591 = vsel %vm879, %v4586, 0
      %v4594 = vsel %vm879, %v4587, 0
      %v4597 = vsel %vm879, %v4588, 0
      %v4600 = vsel %vm879, %v4589, 0
      %4602 = vmatpush.bf16.msra.mxu0 0
      %4603 = vmatpush.bf16.msra.mxu0 0
      %4604 = vmatpush.bf16.msra.mxu0 0
      %4605 = vmatpush.bf16.msra.mxu0 0
      %4606 = vmatpush.bf16.msra.mxu0 0
      %4607 = vmatpush.bf16.msra.mxu0 0
      %4608 = vmatpush.bf16.msra.mxu0 %v2677
      %4609 = vmatpush.bf16.msra.mxu0 %v2676
      %4610 = vmatmul.bf16.gmra.mxu0 %v4591
      %v4611 = vpop.f32.mrf.mxu0
      %v4612 = vadd.f32 %v2666, %v4611
      %v4613 = vpop.f32.mrf.mxu0
      %v4614 = vadd.f32 %v2666, %v4613
      %4615 = vmatmul.bf16.gmra.mxu0 %v4594
      %v4616 = vpop.f32.mrf.mxu0
      %v4617 = vadd.f32 %v2666, %v4616
      %v4618 = vpop.f32.mrf.mxu0
      %v4619 = vadd.f32 %v2666, %v4618
      %4620 = vmatmul.bf16.gmra.mxu0 %v4597
      %v4621 = vpop.f32.mrf.mxu0
      %v4622 = vadd.f32 %v2666, %v4621
      %v4623 = vpop.f32.mrf.mxu0
      %v4624 = vadd.f32 %v2666, %v4623
      %4625 = vmatmul.bf16.gmra.mxu0 %v4600
      %v4626 = vpop.f32.mrf.mxu0
      %v4627 = vadd.f32 %v2666, %v4626
      %v4628 = vpop.f32.mrf.mxu0
      %v4629 = vadd.f32 %v2666, %v4628
      %4630 = vdwg.mxu0
      %v4631 = vmul.f32 %v4612, 0.5
      %v4632 = vmul.f32 %v4614, 0.5
      %v4633 = vmul.f32 %v4617, 0.5
      %v4634 = vmul.f32 %v4619, 0.5
      %v4635 = vmul.f32 %v4622, 0.5
      %v4636 = vmul.f32 %v4624, 0.5
      %v4637 = vmul.f32 %v4627, 0.5
      %v4638 = vmul.f32 %v4629, 0.5
      %v4639 = vmul.f32 %v4612, 0.044715
      %v4640 = vmul.f32 %v4614, 0.044715
      %v4641 = vmul.f32 %v4617, 0.044715
      %v4642 = vmul.f32 %v4619, 0.044715
      %v4643 = vmul.f32 %v4622, 0.044715
      %v4644 = vmul.f32 %v4624, 0.044715
      %v4645 = vmul.f32 %v4627, 0.044715
      %v4646 = vmul.f32 %v4629, 0.044715
      %v4647 = vmul.f32 %v4639, %v4612
      %v4648 = vmul.f32 %v4640, %v4614
      %v4649 = vmul.f32 %v4641, %v4617
      %v4650 = vmul.f32 %v4642, %v4619
      %v4651 = vmul.f32 %v4643, %v4622
      %v4652 = vmul.f32 %v4644, %v4624
      %v4653 = vmul.f32 %v4645, %v4627
      %v4654 = vmul.f32 %v4646, %v4629
      %v4655 = vmul.f32 %v4647, %v4612
      %v4656 = vmul.f32 %v4648, %v4614
      %v4657 = vmul.f32 %v4649, %v4617
      %v4658 = vmul.f32 %v4650, %v4619
      %v4659 = vmul.f32 %v4651, %v4622
      %v4660 = vmul.f32 %v4652, %v4624
      %v4661 = vmul.f32 %v4653, %v4627
      %v4662 = vmul.f32 %v4654, %v4629
      %v4663 = vadd.f32 %v4612, %v4655
      %v4664 = vadd.f32 %v4614, %v4656
      %v4665 = vadd.f32 %v4617, %v4657
      %v4666 = vadd.f32 %v4619, %v4658
      %v4667 = vadd.f32 %v4622, %v4659
      %v4668 = vadd.f32 %v4624, %v4660
      %v4669 = vadd.f32 %v4627, %v4661
      %v4670 = vadd.f32 %v4629, %v4662
      %v4671 = vmul.f32 %v4663, 0.7978846
      %v4672 = vmul.f32 %v4664, 0.7978846
      %v4673 = vmul.f32 %v4665, 0.7978846
      %v4674 = vmul.f32 %v4666, 0.7978846
      %v4675 = vmul.f32 %v4667, 0.7978846
      %v4676 = vmul.f32 %v4668, 0.7978846
      %v4677 = vmul.f32 %v4669, 0.7978846
      %v4678 = vmul.f32 %v4670, 0.7978846
      %v4679 = vtanh.pop %v4671
      %v4680 = vtanh.pop %v4672
      %v4681 = vtanh.pop %v4673
      %v4682 = vtanh.pop %v4674
      %v4683 = vtanh.pop %v4675
      %v4684 = vtanh.pop %v4676
      %v4685 = vtanh.pop %v4677
      %v4686 = vtanh.pop %v4678
      %v4687 = vadd.f32 %v4679, 1.0
      %v4688 = vadd.f32 %v4680, 1.0
      %v4689 = vadd.f32 %v4681, 1.0
      %v4690 = vadd.f32 %v4682, 1.0
      %v4691 = vadd.f32 %v4683, 1.0
      %v4692 = vadd.f32 %v4684, 1.0
      %v4693 = vadd.f32 %v4685, 1.0
      %v4694 = vadd.f32 %v4686, 1.0
      %v4695 = vmul.f32 %v4631, %v4687
      %v4696 = vmul.f32 %v4632, %v4688
      %v4697 = vmul.f32 %v4633, %v4689
      %v4698 = vmul.f32 %v4634, %v4690
      %v4699 = vmul.f32 %v4635, %v4691
      %v4700 = vmul.f32 %v4636, %v4692
      %v4701 = vmul.f32 %v4637, %v4693
      %v4702 = vmul.f32 %v4638, %v4694
      %v4703 = vpack.c.bf16 %v4696, %v4695
      %v4704 = vpack.c.bf16 %v4698, %v4697
      %v4705 = vpack.c.bf16 %v4700, %v4699
      %v4706 = vpack.c.bf16 %v4702, %v4701
      %v4708 = vsel %vm945, %v4703, 0
      %v4711 = vsel %vm945, %v4704, 0
      %v4714 = vsel %vm945, %v4705, 0
      %v4717 = vsel %vm945, %v4706, 0
      %4719 = vmatpush.bf16.msra.mxu0 0
      %4720 = vmatpush.bf16.msra.mxu0 0
      %4721 = vmatpush.bf16.msra.mxu0 0
      %4722 = vmatpush.bf16.msra.mxu0 0
      %4723 = vmatpush.bf16.msra.mxu0 %v2819
      %4724 = vmatpush.bf16.msra.mxu0 %v2818
      %4725 = vmatpush.bf16.msra.mxu0 %v2817
      %4726 = vmatpush.bf16.msra.mxu0 %v2816
      %4727 = vmatmul.bf16.gmra.mxu0 %v4708
      %v4728 = vpop.f32.mrf.mxu0
      %v4729 = vadd.f32 %v2798, %v4728
      %v4730 = vpop.f32.mrf.mxu0
      %v4731 = vadd.f32 %v2798, %v4730
      %4732 = vmatmul.bf16.gmra.mxu0 %v4711
      %v4733 = vpop.f32.mrf.mxu0
      %v4734 = vadd.f32 %v2798, %v4733
      %v4735 = vpop.f32.mrf.mxu0
      %v4736 = vadd.f32 %v2798, %v4735
      %4737 = vmatmul.bf16.gmra.mxu0 %v4714
      %v4738 = vpop.f32.mrf.mxu0
      %v4739 = vadd.f32 %v2798, %v4738
      %v4740 = vpop.f32.mrf.mxu0
      %v4741 = vadd.f32 %v2798, %v4740
      %4742 = vmatmul.bf16.gmra.mxu0 %v4717
      %v4743 = vpop.f32.mrf.mxu0
      %v4744 = vadd.f32 %v2798, %v4743
      %v4745 = vpop.f32.mrf.mxu0
      %v4746 = vadd.f32 %v2798, %v4745
      %4747 = vdwg.mxu0
      %v4748 = vadd.f32 %v4578, %v4729
      %v4749 = vadd.f32 %v4579, %v4731
      %v4750 = vadd.f32 %v4580, %v4734
      %v4751 = vadd.f32 %v4581, %v4736
      %v4752 = vadd.f32 %v4582, %v4739
      %v4753 = vadd.f32 %v4583, %v4741
      %v4754 = vadd.f32 %v4584, %v4744
      %v4755 = vadd.f32 %v4585, %v4746
      %v4756 = vsel %vm879, %v4748, 0.0
      %4757 = vadd.xlane.f32.xlu0 %v4756
      %v4758 = vpop.xlane.xlu0 %4757
      %v4759 = vsel %vm879, %v4749, 0.0
      %4760 = vadd.xlane.f32.xlu0 %v4759
      %v4761 = vpop.xlane.xlu0 %4760
      %v4762 = vsel %vm879, %v4750, 0.0
      %4763 = vadd.xlane.f32.xlu0 %v4762
      %v4764 = vpop.xlane.xlu0 %4763
      %v4765 = vsel %vm879, %v4751, 0.0
      %4766 = vadd.xlane.f32.xlu0 %v4765
      %v4767 = vpop.xlane.xlu0 %4766
      %v4768 = vsel %vm879, %v4752, 0.0
      %4769 = vadd.xlane.f32.xlu0 %v4768
      %v4770 = vpop.xlane.xlu0 %4769
      %v4771 = vsel %vm879, %v4753, 0.0
      %4772 = vadd.xlane.f32.xlu0 %v4771
      %v4773 = vpop.xlane.xlu0 %4772
      %v4774 = vsel %vm879, %v4754, 0.0
      %4775 = vadd.xlane.f32.xlu0 %v4774
      %v4776 = vpop.xlane.xlu0 %4775
      %v4777 = vsel %vm879, %v4755, 0.0
      %4778 = vadd.xlane.f32.xlu0 %v4777
      %v4779 = vpop.xlane.xlu0 %4778
      %v4780 = vmul.f32 %v4758, %v2280
      %v4781 = vmul.f32 %v4761, %v2280
      %v4782 = vmul.f32 %v4764, %v2280
      %v4783 = vmul.f32 %v4767, %v2280
      %v4784 = vmul.f32 %v4770, %v2280
      %v4785 = vmul.f32 %v4773, %v2280
      %v4786 = vmul.f32 %v4776, %v2280
      %v4787 = vmul.f32 %v4779, %v2280
      %v4788 = vsub.f32 %v4748, %v4780
      %v4789 = vsub.f32 %v4749, %v4781
      %v4790 = vsub.f32 %v4750, %v4782
      %v4791 = vsub.f32 %v4751, %v4783
      %v4792 = vsub.f32 %v4752, %v4784
      %v4793 = vsub.f32 %v4753, %v4785
      %v4794 = vsub.f32 %v4754, %v4786
      %v4795 = vsub.f32 %v4755, %v4787
      %v4796 = vmul.f32 %v4788, %v4788
      %v4797 = vmul.f32 %v4789, %v4789
      %v4798 = vmul.f32 %v4790, %v4790
      %v4799 = vmul.f32 %v4791, %v4791
      %v4800 = vmul.f32 %v4792, %v4792
      %v4801 = vmul.f32 %v4793, %v4793
      %v4802 = vmul.f32 %v4794, %v4794
      %v4803 = vmul.f32 %v4795, %v4795
      %v4804 = vsel %vm879, %v4796, 0.0
      %4805 = vadd.xlane.f32.xlu0 %v4804
      %v4806 = vpop.xlane.xlu0 %4805
      %v4807 = vsel %vm879, %v4797, 0.0
      %4808 = vadd.xlane.f32.xlu0 %v4807
      %v4809 = vpop.xlane.xlu0 %4808
      %v4810 = vsel %vm879, %v4798, 0.0
      %4811 = vadd.xlane.f32.xlu0 %v4810
      %v4812 = vpop.xlane.xlu0 %4811
      %v4813 = vsel %vm879, %v4799, 0.0
      %4814 = vadd.xlane.f32.xlu0 %v4813
      %v4815 = vpop.xlane.xlu0 %4814
      %v4816 = vsel %vm879, %v4800, 0.0
      %4817 = vadd.xlane.f32.xlu0 %v4816
      %v4818 = vpop.xlane.xlu0 %4817
      %v4819 = vsel %vm879, %v4801, 0.0
      %4820 = vadd.xlane.f32.xlu0 %v4819
      %v4821 = vpop.xlane.xlu0 %4820
      %v4822 = vsel %vm879, %v4802, 0.0
      %4823 = vadd.xlane.f32.xlu0 %v4822
      %v4824 = vpop.xlane.xlu0 %4823
      %v4825 = vsel %vm879, %v4803, 0.0
      %4826 = vadd.xlane.f32.xlu0 %v4825
      %v4827 = vpop.xlane.xlu0 %4826
      %v4828 = vmul.f32 %v4806, %v2280
      %v4829 = vmul.f32 %v4809, %v2280
      %v4830 = vmul.f32 %v4812, %v2280
      %v4831 = vmul.f32 %v4815, %v2280
      %v4832 = vmul.f32 %v4818, %v2280
      %v4833 = vmul.f32 %v4821, %v2280
      %v4834 = vmul.f32 %v4824, %v2280
      %v4835 = vmul.f32 %v4827, %v2280
      %v4836 = vadd.f32 %v4828, 1e-05
      %v4837 = vadd.f32 %v4829, 1e-05
      %v4838 = vadd.f32 %v4830, 1e-05
      %v4839 = vadd.f32 %v4831, 1e-05
      %v4840 = vadd.f32 %v4832, 1e-05
      %v4841 = vadd.f32 %v4833, 1e-05
      %v4842 = vadd.f32 %v4834, 1e-05
      %v4843 = vadd.f32 %v4835, 1e-05
      %v4844 = vrsqrt.pop %v4836
      %v4845 = vmul.f32 %v4844, %v4836
      %v4846 = vmul.f32 %v4845, %v4844
      %v4847 = vmul.f32 0.5, %v4846
      %v4848 = vsub.f32 1.5, %v4847
      %v4849 = vmul.f32 %v4844, %v4848
      %vm4850 = vweird.f32 %v4836
      %vm4851 = vweird.f32 %v4844
      %vm4852 = vmor %vm4850, %vm4851
      %v4853 = vsel %vm4852, %v4844, %v4849
      %v4854 = vrsqrt.pop %v4837
      %v4855 = vmul.f32 %v4854, %v4837
      %v4856 = vmul.f32 %v4855, %v4854
      %v4857 = vmul.f32 0.5, %v4856
      %v4858 = vsub.f32 1.5, %v4857
      %v4859 = vmul.f32 %v4854, %v4858
      %vm4860 = vweird.f32 %v4837
      %vm4861 = vweird.f32 %v4854
      %vm4862 = vmor %vm4860, %vm4861
      %v4863 = vsel %vm4862, %v4854, %v4859
      %v4864 = vrsqrt.pop %v4838
      %v4865 = vmul.f32 %v4864, %v4838
      %v4866 = vmul.f32 %v4865, %v4864
      %v4867 = vmul.f32 0.5, %v4866
      %v4868 = vsub.f32 1.5, %v4867
      %v4869 = vmul.f32 %v4864, %v4868
      %vm4870 = vweird.f32 %v4838
      %vm4871 = vweird.f32 %v4864
      %vm4872 = vmor %vm4870, %vm4871
      %v4873 = vsel %vm4872, %v4864, %v4869
      %v4874 = vrsqrt.pop %v4839
      %v4875 = vmul.f32 %v4874, %v4839
      %v4876 = vmul.f32 %v4875, %v4874
      %v4877 = vmul.f32 0.5, %v4876
      %v4878 = vsub.f32 1.5, %v4877
      %v4879 = vmul.f32 %v4874, %v4878
      %vm4880 = vweird.f32 %v4839
      %vm4881 = vweird.f32 %v4874
      %vm4882 = vmor %vm4880, %vm4881
      %v4883 = vsel %vm4882, %v4874, %v4879
      %v4884 = vrsqrt.pop %v4840
      %v4885 = vmul.f32 %v4884, %v4840
      %v4886 = vmul.f32 %v4885, %v4884
      %v4887 = vmul.f32 0.5, %v4886
      %v4888 = vsub.f32 1.5, %v4887
      %v4889 = vmul.f32 %v4884, %v4888
      %vm4890 = vweird.f32 %v4840
      %vm4891 = vweird.f32 %v4884
      %vm4892 = vmor %vm4890, %vm4891
      %v4893 = vsel %vm4892, %v4884, %v4889
      %v4894 = vrsqrt.pop %v4841
      %v4895 = vmul.f32 %v4894, %v4841
      %v4896 = vmul.f32 %v4895, %v4894
      %v4897 = vmul.f32 0.5, %v4896
      %v4898 = vsub.f32 1.5, %v4897
      %v4899 = vmul.f32 %v4894, %v4898
      %vm4900 = vweird.f32 %v4841
      %vm4901 = vweird.f32 %v4894
      %vm4902 = vmor %vm4900, %vm4901
      %v4903 = vsel %vm4902, %v4894, %v4899
      %v4904 = vrsqrt.pop %v4842
      %v4905 = vmul.f32 %v4904, %v4842
      %v4906 = vmul.f32 %v4905, %v4904
      %v4907 = vmul.f32 0.5, %v4906
      %v4908 = vsub.f32 1.5, %v4907
      %v4909 = vmul.f32 %v4904, %v4908
      %vm4910 = vweird.f32 %v4842
      %vm4911 = vweird.f32 %v4904
      %vm4912 = vmor %vm4910, %vm4911
      %v4913 = vsel %vm4912, %v4904, %v4909
      %v4914 = vrsqrt.pop %v4843
      %v4915 = vmul.f32 %v4914, %v4843
      %v4916 = vmul.f32 %v4915, %v4914
      %v4917 = vmul.f32 0.5, %v4916
      %v4918 = vsub.f32 1.5, %v4917
      %v4919 = vmul.f32 %v4914, %v4918
      %vm4920 = vweird.f32 %v4843
      %vm4921 = vweird.f32 %v4914
      %vm4922 = vmor %vm4920, %vm4921
      %v4923 = vsel %vm4922, %v4914, %v4919
      %v4924 = vmul.f32 %v4788, %v4853
      %v4925 = vmul.f32 %v4789, %v4863
      %v4926 = vmul.f32 %v4790, %v4873
      %v4927 = vmul.f32 %v4791, %v4883
      %v4928 = vmul.f32 %v4792, %v4893
      %v4929 = vmul.f32 %v4793, %v4903
      %v4930 = vmul.f32 %v4794, %v4913
      %v4931 = vmul.f32 %v4795, %v4923
      %v4932 = vmul.f32 %v4924, %v3050
      %v4933 = vmul.f32 %v4925, %v3050
      %v4934 = vmul.f32 %v4926, %v3050
      %v4935 = vmul.f32 %v4927, %v3050
      %v4936 = vmul.f32 %v4928, %v3050
      %v4937 = vmul.f32 %v4929, %v3050
      %v4938 = vmul.f32 %v4930, %v3050
      %v4939 = vmul.f32 %v4931, %v3050
      %v4940 = vadd.f32 %v4932, %v3061
      %v4941 = vadd.f32 %v4933, %v3061
      %v4942 = vadd.f32 %v4934, %v3061
      %v4943 = vadd.f32 %v4935, %v3061
      %v4944 = vadd.f32 %v4936, %v3061
      %v4945 = vadd.f32 %v4937, %v3061
      %v4946 = vadd.f32 %v4938, %v3061
      %v4947 = vadd.f32 %v4939, %v3061
      %4948 = vst.msk [vmem:[%s797] sm:$0xff] %vm879, %v4940
      %4949 = vst.msk [vmem:[%s797 + $0x8] sm:$0xff] %vm879, %v4941
      %4950 = vst.msk [vmem:[%s797 + $0x10] sm:$0xff] %vm879, %v4942
      %4951 = vst.msk [vmem:[%s797 + $0x18] sm:$0xff] %vm879, %v4943
      %4952 = vst.msk [vmem:[%s797 + $0x20] sm:$0xff] %vm879, %v4944
      %4953 = vst.msk [vmem:[%s797 + $0x28] sm:$0xff] %vm879, %v4945
      %4954 = vst.msk [vmem:[%s797 + $0x30] sm:$0xff] %vm879, %v4946
      %4955 = vst.msk [vmem:[%s797 + $0x38] sm:$0xff] %vm879, %v4947
      %p4956 = scmp.lt.s32.totalorder %s35, 1
      %s4957 = scalar_select %p4956, %s35, 1
      %s4958 = smul.addr %s4957, 8
      %s4959 = smul.addr %s4958, 8
      %s4960 = scalar_lea.vmem %s24, %s4959
      // Predicated region
      $region117: #{back_tracing_decoder_forward.1} parent=115 // pred_check
        %p4961 = pneg %p577
      $region118: #{back_tracing_decoder_forward.1} parent=115 // pred_check_branch
        %4963 = sbr.rel (%p4961) target = $region120
      $region119: #{back_tracing_decoder_forward.1} parent=115 // pred_region
        _
      $region120: #{back_tracing_decoder_forward.1} parent=115 // pred_fallthru
        _
    $region116: #{back_tracing_decoder_forward.1} parent=5 // pred_fallthru
      _
    %p4964 = scmp.le.s32.totalorder 2, %s30
    // Predicated region
    $region121: #{back_tracing_decoder_forward.1} parent=5 // pred_check
      %p4965 = pneg %p4964
    $region122: #{back_tracing_decoder_forward.1} parent=5 // pred_check_branch
      %4967 = sbr.rel (%p4965) target = $region124
    $region123: #{back_tracing_decoder_forward.1} parent=5 // pred_region
      %s4968 = ssub.s32 %s30, 2
      // Predicated region
      $region125: #{back_tracing_decoder_forward.1} parent=123 // pred_check
        %p4969 = pneg %p583
      $region126: #{back_tracing_decoder_forward.1} parent=123 // pred_check_branch
        %4971 = sbr.rel (%p4969) target = $region128
      $region127: #{back_tracing_decoder_forward.1} parent=123 // pred_region
        %p4972 = scmp.lt.s32.totalorder %s36, 1
        %s4973 = scalar_select %p4972, %s36, 1
        %s4974 = smul.addr %s4973, 8
        %s4975 = smul.addr %s4974, 8
        %s4976 = scalar_lea.vmem %s24, %s4975
      $region128: #{back_tracing_decoder_forward.1} parent=123 // pred_fallthru
        _
    $region124: #{back_tracing_decoder_forward.1} parent=5 // pred_fallthru
      _
  $region6: #{back_tracing_decoder_forward.1} parent=0 // loop_footer
    %s34 = sadd.s32 1, %s30
  $region7: #{back_tracing_decoder_forward.1} parent=0 // loop_footer_branch
    %29 = sbr.rel target = $region3
  $region8: #{back_tracing_decoder_forward.1} parent=0 // loop_exit
    _

</llo_original>
